<compile_context>
chip_gen: v6e
topology: v6e:2x2x1
jax: 0.10.0
libtpu: 0.0.40
codegen_flags: <defaults>
</compile_context>

<pallas_src>
import functools
import math

import jax
import jax.numpy as jnp
from jax import lax
from jax.experimental import pallas as pl
from jax.experimental.pallas import tpu as pltpu


LANE = 128                              # lane-dense feature width (latent_dim padded up)
TILE_M = 512                            # output-row tile of the propagation matmul
TILE_K = 512                            # contraction tile of the propagation matmul
VMEM_LIMIT = 32 * 1024 * 1024           # explicit scoped-VMEM budget (fits v5e/v6e/v7x)
RESIDENT_EMB_BYTES = 12 * 1024 * 1024   # one bf16 emb copy kept VMEM-resident if <= this


def _round_up(x, m):
    return ((x + m - 1) // m) * m


# ---------------------------------------------------------------------------
# Pallas kernels
# ---------------------------------------------------------------------------
def emb0_kernel(x_ref, w_ref, emb_ref, o_f32_ref, o_bf16_ref):
    """emb0 = embedding + [user|book] feature projections (+bias).

    One fused matmul replaces the three nn.Linear projections:
      x : block-diagonal [user_feat | book_num | book_genre | 1_user | 1_book]
      w : stacked, pre-transposed weights with the bias rows appended.
    Emits both the f32 emb0 (returned) and a bf16 copy (propagation input).
    """
    e0 = emb_ref[...] + jnp.dot(x_ref[...], w_ref[...],
                                preferred_element_type=jnp.float32)
    o_f32_ref[...] = e0
    o_bf16_ref[...] = e0.astype(jnp.bfloat16)


def propagate_kernel(adj_ref, emb_ref, acc_in_ref, *refs,
                     out_scale, tk, emb_resident, write_emb_out):
    """One LightGCNConv layer fused with the running layer-sum.

      emb_out = A_norm @ emb                  (tiled over (row, K) grid)
      acc_out = (acc_in + emb_out) * out_scale

    The K grid axis is the reduction axis: output blocks are constant along it
    and accumulated in a f32 VMEM scratch (init at k==0, store at k==last).
    adj and emb are bf16 (MXU bf16 rate, halved HBM traffic); accumulation is
    f32.  If `emb_resident`, emb is a whole-array VMEM-resident block sliced
    per k-step; otherwise it is streamed (tk, D) per k.  The final layer skips
    the dead emb_out store (`write_emb_out=False`).
    """
    if write_emb_out:
        emb_out_ref, acc_out_ref, acc_sc = refs
    else:
        emb_out_ref = None
        acc_out_ref, acc_sc = refs

    k = pl.program_id(1)

    @pl.when(k == 0)
    def _():
        acc_sc[...] = jnp.zeros_like(acc_sc)

    if emb_resident:
        off = pl.multiple_of(k * tk, tk)
        emb_tile = emb_ref[pl.ds(off, tk), :]
    else:
        emb_tile = emb_ref[...]

    acc_sc[...] += jnp.dot(adj_ref[...], emb_tile,
                           preferred_element_type=jnp.float32)

    @pl.when(k == pl.num_programs(1) - 1)
    def _():
        acc_out_ref[...] = (acc_in_ref[...] + acc_sc[...]) * out_scale
        if write_emb_out:
            emb_out_ref[...] = acc_sc[...].astype(emb_out_ref.dtype)


# ---------------------------------------------------------------------------
# pallas_call wrappers
# ---------------------------------------------------------------------------
def _emb0_call(x, w, emb, *, tm):
    n_pad, f_aug = x.shape
    d_pad = w.shape[1]
    return pl.pallas_call(
        emb0_kernel,
        out_shape=(
            jax.ShapeDtypeStruct((n_pad, d_pad), jnp.float32),
            jax.ShapeDtypeStruct((n_pad, d_pad), jnp.bfloat16),
        ),
        grid=(n_pad // tm,),
        in_specs=[
            pl.BlockSpec((tm, f_aug), lambda i: (i, 0)),       # features
            pl.BlockSpec((f_aug, d_pad), lambda i: (0, 0)),    # stacked W^T (+bias)
            pl.BlockSpec((tm, d_pad), lambda i: (i, 0)),       # embedding table
        ],
        out_specs=(
            pl.BlockSpec((tm, d_pad), lambda i: (i, 0)),
            pl.BlockSpec((tm, d_pad), lambda i: (i, 0)),
        ),
        compiler_params=pltpu.CompilerParams(
            dimension_semantics=("parallel",),
            vmem_limit_bytes=VMEM_LIMIT),
    )(x, w, emb)


def _propagate_call(adj, emb, acc, *, out_scale, tm, tk,
                    emb_resident, write_emb_out, alias_acc):
    n_pad = adj.shape[0]
    d_pad = emb.shape[1]

    if emb_resident:
        # Whole-array bf16 emb block, constant index map -> fetched once,
        # stays VMEM-resident across the grid; sliced in-kernel per k-step.
        emb_spec = pl.BlockSpec((n_pad, d_pad), lambda i, k: (0, 0))
    else:
        emb_spec = pl.BlockSpec((tk, d_pad), lambda i, k: (k, 0))

    out_shape = []
    out_specs = []
    if write_emb_out:
        out_shape.append(jax.ShapeDtypeStruct((n_pad, d_pad), jnp.bfloat16))
        out_specs.append(pl.BlockSpec((tm, d_pad), lambda i, k: (i, 0)))
    out_shape.append(jax.ShapeDtypeStruct((n_pad, d_pad), jnp.float32))
    out_specs.append(pl.BlockSpec((tm, d_pad), lambda i, k: (i, 0)))

    # acc_in -> acc_out in-place update (only for layers where acc_in is not
    # an array that is still live elsewhere, i.e. layers >= 1).
    io_aliases = {2: len(out_shape) - 1} if alias_acc else {}

    kernel = functools.partial(
        propagate_kernel, out_scale=out_scale, tk=tk,
        emb_resident=emb_resident, write_emb_out=write_emb_out)

    outs = pl.pallas_call(
        kernel,
        out_shape=tuple(out_shape),
        grid=(n_pad // tm, n_pad // tk),
        in_specs=[
            pl.BlockSpec((tm, tk), lambda i, k: (i, k)),       # adj (bf16)
            emb_spec,                                          # emb_l (bf16)
            pl.BlockSpec((tm, d_pad), lambda i, k: (i, 0)),    # running sum in
        ],
        out_specs=tuple(out_specs),
        scratch_shapes=[pltpu.VMEM((tm, d_pad), jnp.float32)],
        input_output_aliases=io_aliases,
        compiler_params=pltpu.CompilerParams(
            dimension_semantics=("parallel", "arbitrary"),
            vmem_limit_bytes=VMEM_LIMIT),
    )(adj, emb, acc)

    if write_emb_out:
        emb_out, acc_out = outs
    else:
        emb_out = None
        (acc_out,) = outs
    return emb_out, acc_out


# ---------------------------------------------------------------------------
# Forward pass (mirrors RatingPredictionGNN.forward with model='LightGCN')
# ---------------------------------------------------------------------------
@functools.partial(jax.jit,
                   static_argnames=("num_users", "num_books", "latent_dim",
                                    "num_layers"))
def rating_prediction_gnn_forward(params, edge_index, *, num_users, num_books,
                                  latent_dim, num_layers):
    N = num_users + num_books
    D = latent_dim
    D_pad = _round_up(D, LANE)
    tile_lcm = TILE_M * TILE_K // math.gcd(TILE_M, TILE_K)
    N_pad = _round_up(N, tile_lcm)

    # ---- fused feature projection operands (glue) ------------------------
    uf = params["user_features"]
    bnum = params["book_num"]
    bgen = params["book_genre"]
    Fu, Fn, Fg = uf.shape[1], bnum.shape[1], bgen.shape[1]
    F_aug = Fu + Fn + Fg + 2                      # +2 bias indicator columns

    x = jnp.zeros((N_pad, F_aug), jnp.float32)
    x = x.at[:num_users, :Fu].set(uf)
    x = x.at[num_users:N, Fu:Fu + Fn].set(bnum)
    x = x.at[num_users:N, Fu + Fn:Fu + Fn + Fg].set(bgen)
    x = x.at[:num_users, F_aug - 2].set(1.0)      # user bias indicator
    x = x.at[num_users:N, F_aug - 1].set(1.0)     # book bias indicator

    w = jnp.concatenate([
        params["Wu"].T, params["Wn"].T, params["Wg"].T,       # pre-transposed
        params["bu"][None, :], (params["bn"] + params["bg"])[None, :],
    ], axis=0)                                                 # (F_aug, D)
    w = jnp.pad(w, ((0, 0), (0, D_pad - D)))                   # lane-dense

    emb_table = jnp.pad(params["embedding"],
                        ((0, N_pad - N), (0, D_pad - D)))      # (N_pad, D_pad)

    emb0_f32, emb0_bf16 = _emb0_call(x, w, emb_table, tm=TILE_M)

    # ---- symmetric-normalized dense adjacency (glue) ----------------------
    frm, to = edge_index[0], edge_index[1]
    deg = jnp.zeros((N_pad,), jnp.float32).at[to].add(1.0)     # degree(to_) as in PyG
    deg_inv_sqrt = jnp.where(deg > 0, lax.rsqrt(deg), 0.0)     # inf -> 0
    norm = deg_inv_sqrt[frm] * deg_inv_sqrt[to]
    adj = jnp.zeros((N_pad, N_pad), jnp.float32).at[to, frm].add(norm)
    adj = adj.astype(jnp.bfloat16)   # dominant HBM stream: halve its traffic
    # TODO(synk): for production graph sizes (E << N^2) replace the dense
    # adjacency with a CSR / scalar-prefetch segment-sum propagation kernel.
    # TODO(synk): on v7x the adj stream could be float8_e4m3 (native MXU fp8),
    # halving the dominant stream again; needs accuracy validation at scale.

    # ---- LightGCN propagation + running mean ------------------------------
    emb_resident = (N_pad * D_pad * 2) <= RESIDENT_EMB_BYTES
    emb, acc = emb0_bf16, emb0_f32
    inv_scale = 1.0 / float(num_layers + 1)
    for layer in range(num_layers):
        is_last = layer == num_layers - 1
        emb, acc = _propagate_call(
            adj, emb, acc,
            out_scale=inv_scale if is_last else 1.0,
            tm=TILE_M, tk=TILE_K,
            emb_resident=emb_resident,
            write_emb_out=not is_last,      # last layer's emb_L is dead
            alias_acc=layer > 0,            # layer 0's acc (= emb0_f32) is returned
        )
    out_p = acc                             # num_layers == 0 -> emb0_f32

    return emb0_f32[:N, :D], out_p[:N, :D]


# ---------------------------------------------------------------------------
# Pure-JAX f32 reference (for a tolerance check of the kernels)
# ---------------------------------------------------------------------------
def _reference_forward(params, edge_index, num_users, num_books, num_layers):
    hp = lax.Precision.HIGHEST
    user_proj = jnp.dot(params["user_features"], params["Wu"].T,
                        precision=hp) + params["bu"]
    book_proj = (jnp.dot(params["book_num"], params["Wn"].T, precision=hp)
                 + params["bn"]
                 + jnp.dot(params["book_genre"], params["Wg"].T, precision=hp)
                 + params["bg"])
    emb0 = params["embedding"]
    emb0 = emb0.at[:num_users].add(user_proj).at[num_users:].add(book_proj)

    N = num_users + num_books
    frm, to = edge_index[0], edge_index[1]
    deg = jnp.zeros((N,), jnp.float32).at[to].add(1.0)
    dis = jnp.where(deg > 0, deg ** -0.5, 0.0)
    norm = dis[frm] * dis[to]
    adj = jnp.zeros((N, N), jnp.float32).at[to, frm].add(norm)

    embs = [emb0]
    emb = emb0
    for _ in range(num_layers):
        emb = jnp.dot(adj, emb, precision=hp)
        embs.append(emb)
    out = jnp.mean(jnp.stack(embs, axis=0), axis=0)
    return emb0, out


# ---------------------------------------------------------------------------
# Demo
# ---------------------------------------------------------------------------
if __name__ == "__main__":
    key = jax.random.PRNGKey(0)
    num_users, num_books = 200, 300          # N = 500 -> padded to 512
    latent_dim = 32
    num_layers = 2
    user_feat_dim, book_num_dim, book_genre_dim = 5, 3, 6
    N = num_users + num_books

    ks = jax.random.split(key, 12)
    user_features = jax.random.normal(ks[0], (num_users, user_feat_dim), jnp.float32)
    book_num = jax.random.normal(ks[1], (num_books, book_num_dim), jnp.float32)
    book_genre = (jax.random.uniform(ks[2], (num_books, book_genre_dim)) > 0.5
                  ).astype(jnp.float32)

    # LightGCN init: normal(std=0.1), deterministic via PRNGKey(0).
    params = {
        "user_features": user_features,
        "book_num": book_num,
        "book_genre": book_genre,
        "Wu": 0.1 * jax.random.normal(ks[3], (latent_dim, user_feat_dim), jnp.float32),
        "bu": 0.1 * jax.random.normal(ks[4], (latent_dim,), jnp.float32),
        "Wn": 0.1 * jax.random.normal(ks[5], (latent_dim, book_num_dim), jnp.float32),
        "bn": 0.1 * jax.random.normal(ks[6], (latent_dim,), jnp.float32),
        "Wg": 0.1 * jax.random.normal(ks[7], (latent_dim, book_genre_dim), jnp.float32),
        "bg": 0.1 * jax.random.normal(ks[8], (latent_dim,), jnp.float32),
        "embedding": 0.1 * jax.random.normal(ks[9], (N, latent_dim), jnp.float32),
    }
    # TODO(synk): the `prediction` MLP head is defined in __init__ but only
    # used by predict_ratings(), not by forward(), so it is not exercised here.

    # Synthetic bipartite interaction graph (edges in both directions).
    E = 2000
    u = jax.random.randint(ks[10], (E,), 0, num_users)
    b = num_users + jax.random.randint(ks[11], (E,), 0, num_books)
    frm = jnp.concatenate([u, b])
    to = jnp.concatenate([b, u])
    edge_index = jnp.stack([frm, to]).astype(jnp.int32)   # (2, 2E)

    emb0, out = rating_prediction_gnn_forward(
        params, edge_index,
        num_users=num_users, num_books=num_books,
        latent_dim=latent_dim, num_layers=num_layers,
    )
    jax.block_until_ready((emb0, out))

    assert emb0.shape == (N, latent_dim) and out.shape == (N, latent_dim)

    # Tolerance check vs f32 reference (bf16 adj / emb -> loose bound on `out`).
    emb0_ref, out_ref = _reference_forward(params, edge_index,
                                           num_users, num_books, num_layers)
    assert jnp.allclose(emb0, emb0_ref, atol=1e-2, rtol=1e-2), \
        float(jnp.max(jnp.abs(emb0 - emb0_ref)))
    assert jnp.allclose(out, out_ref, atol=3e-2, rtol=3e-2), \
        float(jnp.max(jnp.abs(out - out_ref)))

    print("KERNEL_OK")
</pallas_src>

<mosaic_0001>
module attributes {stable_mosaic.version = 11 : i64} {
  func.func private @main(%arg0: i32) attributes {dimension_semantics = [#tpu.dimension_semantics<core_parallel>], iteration_bounds = array<i64: 2>, tpu.core_type = #tpu.core_type<sc_scalar_subcore>, window_params = []} {
    return
  }
}

module attributes {stable_mosaic.version = 11 : i64} {
  func.func private @main(%arg0: i32) attributes {dimension_semantics = [#tpu.dimension_semantics<core_parallel>], iteration_bounds = array<i64: 2>, tpu.core_type = #tpu.core_type<sc_scalar_subcore>, window_params = []} {
    return
  }
}

module attributes {stable_mosaic.version = 11 : i64} {
  func.func @emb0_kernel(%arg0: i32, %arg1: memref<512x16xf32, #tpu.memory_space<vmem>>, %arg2: memref<16x128xf32, #tpu.memory_space<vmem>>, %arg3: memref<512x128xf32, #tpu.memory_space<vmem>>, %arg4: memref<512x128xf32, #tpu.memory_space<vmem>>, %arg5: memref<512x128xbf16, #tpu.memory_space<vmem>>) attributes {dimension_semantics = [#tpu.dimension_semantics<parallel>], iteration_bounds = array<i64: 1>, scalar_prefetch = 0 : i64, scratch_operands = 0 : i64, tpu.core_type = #tpu.core_type<tc>, window_params = [{transform_indices = @transform_0, window_bounds = array<i64: 512, 16>}, {pipeline_mode = #tpu.pipeline_mode<synchronous>, transform_indices = @transform_1, window_bounds = array<i64: 16, 128>}, {transform_indices = @transform_2, window_bounds = array<i64: 512, 128>}, {transform_indices = @transform_3, window_bounds = array<i64: 512, 128>}, {transform_indices = @transform_4, window_bounds = array<i64: 512, 128>}]} {
    %c0 = arith.constant 0 : index
    %c0_0 = arith.constant 0 : index
    %0 = vector.load %arg3[%c0, %c0_0] : memref<512x128xf32, #tpu.memory_space<vmem>>, vector<512x128xf32>
    %c0_1 = arith.constant 0 : index
    %c0_2 = arith.constant 0 : index
    %1 = vector.load %arg1[%c0_1, %c0_2] : memref<512x16xf32, #tpu.memory_space<vmem>>, vector<512x16xf32>
    %c0_3 = arith.constant 0 : index
    %c0_4 = arith.constant 0 : index
    %2 = vector.load %arg2[%c0_3, %c0_4] : memref<16x128xf32, #tpu.memory_space<vmem>>, vector<16x128xf32>
    %cst = arith.constant dense<0.000000e+00> : vector<512x128xf32>
    %3 = tpu.matmul %1, %2, %cst {dimension_numbers = #tpu.dot_dimension_numbers<[1], [0], [0], [1], [0, 0, 1, 1], [], []>} : vector<512x16xf32>, vector<16x128xf32>, vector<512x128xf32> -> vector<512x128xf32>
    %4 = arith.addf %0, %3 : vector<512x128xf32>
    %c0_5 = arith.constant 0 : index
    %c0_6 = arith.constant 0 : index
    %5 = vector.load %arg4[%c0_5, %c0_6] : memref<512x128xf32, #tpu.memory_space<vmem>>, vector<512x128xf32>
    tpu.vector_store %arg4[%c0_5, %c0_6], %4 {strides = array<i32>} : memref<512x128xf32, #tpu.memory_space<vmem>>, vector<512x128xf32>,
    %6 = arith.truncf %4 : vector<512x128xf32> to vector<512x128xbf16>
    %c0_7 = arith.constant 0 : index
    %c0_8 = arith.constant 0 : index
    %7 = vector.load %arg5[%c0_7, %c0_8] : memref<512x128xbf16, #tpu.memory_space<vmem>>, vector<512x128xbf16>
    tpu.vector_store %arg5[%c0_7, %c0_8], %6 {strides = array<i32>} : memref<512x128xbf16, #tpu.memory_space<vmem>>, vector<512x128xbf16>,
    return
  }
  func.func @transform_0(%arg0: i32) -> (i32, i32) {
    %c0_i32 = arith.constant 0 : i32
    %c0_i32_0 = arith.constant 0 : i32
    return %arg0, %c0_i32 : i32, i32
  }
  func.func @transform_1(%arg0: i32) -> (i32, i32) {
    %c0_i32 = arith.constant 0 : i32
    %c0_i32_0 = arith.constant 0 : i32
    %c0_i32_1 = arith.constant 0 : i32
    return %c0_i32, %c0_i32_0 : i32, i32
  }
  func.func @transform_2(%arg0: i32) -> (i32, i32) {
    %c0_i32 = arith.constant 0 : i32
    %c0_i32_0 = arith.constant 0 : i32
    return %arg0, %c0_i32 : i32, i32
  }
  func.func @transform_3(%arg0: i32) -> (i32, i32) {
    %c0_i32 = arith.constant 0 : i32
    %c0_i32_0 = arith.constant 0 : i32
    return %arg0, %c0_i32 : i32, i32
  }
  func.func @transform_4(%arg0: i32) -> (i32, i32) {
    %c0_i32 = arith.constant 0 : i32
    %c0_i32_0 = arith.constant 0 : i32
    return %arg0, %c0_i32 : i32, i32
  }
}

module attributes {stable_mosaic.version = 11 : i64} {
  func.func @propagate_kernel(%arg0: i32, %arg1: i32, %arg2: memref<512x512xbf16, #tpu.memory_space<vmem>>, %arg3: memref<512x128xbf16, #tpu.memory_space<vmem>>, %arg4: memref<512x128xf32, #tpu.memory_space<vmem>>, %arg5: memref<512x128xf32, #tpu.memory_space<vmem>>, %arg6: memref<512x128xf32, #tpu.memory_space<vmem>>) attributes {dimension_semantics = [#tpu.dimension_semantics<parallel>, #tpu.dimension_semantics<arbitrary>], iteration_bounds = array<i64: 1, 1>, scalar_prefetch = 0 : i64, scratch_operands = 1 : i64, tpu.core_type = #tpu.core_type<tc>, window_params = [{transform_indices = @transform_0, window_bounds = array<i64: 512, 512>}, {pipeline_mode = #tpu.pipeline_mode<synchronous>, transform_indices = @transform_1, window_bounds = array<i64: 512, 128>}, {transform_indices = @transform_2, window_bounds = array<i64: 512, 128>}, {transform_indices = @transform_3, window_bounds = array<i64: 512, 128>}]} {
    %c0_i32 = arith.constant 0 : i32
    %0 = arith.cmpi eq, %arg1, %c0_i32 : i32
    %1 = arith.extui %0 : i1 to i32
    %c0_i32_0 = arith.constant 0 : i32
    %2 = arith.cmpi ne, %1, %c0_i32_0 : i32
    scf.if %2 {
      %cst_9 = arith.constant 0.000000e+00 : f32
      %15 = vector.broadcast %cst_9 : f32 to vector<512x128xf32>
      %c0_10 = arith.constant 0 : index
      %c0_11 = arith.constant 0 : index
      %16 = vector.load %arg6[%c0_10, %c0_11] : memref<512x128xf32, #tpu.memory_space<vmem>>, vector<512x128xf32>
      tpu.vector_store %arg6[%c0_10, %c0_11], %15 {strides = array<i32>} : memref<512x128xf32, #tpu.memory_space<vmem>>, vector<512x128xf32>,
    } else {
    }
    %c512_i32 = arith.constant 512 : i32
    %3 = arith.muli %arg1, %c512_i32 : i32
    %4 = tpu.assume_multiple %3, 512 : i32
    %5 = arith.index_cast %4 : i32 to index
    %c0 = arith.constant 0 : index
    %6 = vector.load %arg3[%5, %c0] : memref<512x128xbf16, #tpu.memory_space<vmem>>, vector<512x128xbf16>
    %c0_1 = arith.constant 0 : index
    %c0_2 = arith.constant 0 : index
    %7 = vector.load %arg6[%c0_1, %c0_2] : memref<512x128xf32, #tpu.memory_space<vmem>>, vector<512x128xf32>
    %c0_3 = arith.constant 0 : index
    %c0_4 = arith.constant 0 : index
    %8 = vector.load %arg2[%c0_3, %c0_4] : memref<512x512xbf16, #tpu.memory_space<vmem>>, vector<512x512xbf16>
    %cst = arith.constant dense<0.000000e+00> : vector<512x128xf32>
    %9 = tpu.matmul %8, %6, %cst {dimension_numbers = #tpu.dot_dimension_numbers<[1], [0], [0], [1], [0, 0, 1, 1], [], []>} : vector<512x512xbf16>, vector<512x128xbf16>, vector<512x128xf32> -> vector<512x128xf32>
    %10 = arith.addf %7, %9 : vector<512x128xf32>
    %c0_5 = arith.constant 0 : index
    %c0_6 = arith.constant 0 : index
    %11 = vector.load %arg6[%c0_5, %c0_6] : memref<512x128xf32, #tpu.memory_space<vmem>>, vector<512x128xf32>
    tpu.vector_store %arg6[%c0_5, %c0_6], %10 {strides = array<i32>} : memref<512x128xf32, #tpu.memory_space<vmem>>, vector<512x128xf32>,
    %c0_i32_7 = arith.constant 0 : i32
    %12 = arith.cmpi eq, %arg1, %c0_i32_7 : i32
    %13 = arith.extui %12 : i1 to i32
    %c0_i32_8 = arith.constant 0 : i32
    %14 = arith.cmpi ne, %13, %c0_i32_8 : i32
    scf.if %14 {
      %c0_9 = arith.constant 0 : index
      %c0_10 = arith.constant 0 : index
      %15 = vector.load %arg4[%c0_9, %c0_10] : memref<512x128xf32, #tpu.memory_space<vmem>>, vector<512x128xf32>
      %c0_11 = arith.constant 0 : index
      %c0_12 = arith.constant 0 : index
      %16 = vector.load %arg6[%c0_11, %c0_12] : memref<512x128xf32, #tpu.memory_space<vmem>>, vector<512x128xf32>
      %17 = arith.addf %15, %16 : vector<512x128xf32>
      %cst_13 = arith.constant 0.333333343 : f32
      %18 = vector.broadcast %cst_13 : f32 to vector<512x128xf32>
      %19 = arith.mulf %17, %18 : vector<512x128xf32>
      %c0_14 = arith.constant 0 : index
      %c0_15 = arith.constant 0 : index
      %20 = vector.load %arg5[%c0_14, %c0_15] : memref<512x128xf32, #tpu.memory_space<vmem>>, vector<512x128xf32>
      tpu.vector_store %arg5[%c0_14, %c0_15], %19 {strides = array<i32>} : memref<512x128xf32, #tpu.memory_space<vmem>>, vector<512x128xf32>,
    } else {
    }
    return
  }
  func.func @transform_0(%arg0: i32, %arg1: i32) -> (i32, i32) {
    %c0_i32 = arith.constant 0 : i32
    return %arg0, %arg1 : i32, i32
  }
  func.func @transform_1(%arg0: i32, %arg1: i32) -> (i32, i32) {
    %c0_i32 = arith.constant 0 : i32
    %c0_i32_0 = arith.constant 0 : i32
    %c0_i32_1 = arith.constant 0 : i32
    return %c0_i32, %c0_i32_0 : i32, i32
  }
  func.func @transform_2(%arg0: i32, %arg1: i32) -> (i32, i32) {
    %c0_i32 = arith.constant 0 : i32
    %c0_i32_0 = arith.constant 0 : i32
    return %arg0, %c0_i32 : i32, i32
  }
  func.func @transform_3(%arg0: i32, %arg1: i32) -> (i32, i32) {
    %c0_i32 = arith.constant 0 : i32
    %c0_i32_0 = arith.constant 0 : i32
    return %arg0, %c0_i32 : i32, i32
  }
}

module attributes {stable_mosaic.version = 11 : i64} {
  func.func @propagate_kernel(%arg0: i32, %arg1: i32, %arg2: memref<512x512xbf16, #tpu.memory_space<vmem>>, %arg3: memref<512x128xbf16, #tpu.memory_space<vmem>>, %arg4: memref<512x128xf32, #tpu.memory_space<vmem>>, %arg5: memref<512x128xbf16, #tpu.memory_space<vmem>>, %arg6: memref<512x128xf32, #tpu.memory_space<vmem>>, %arg7: memref<512x128xf32, #tpu.memory_space<vmem>>) attributes {dimension_semantics = [#tpu.dimension_semantics<parallel>, #tpu.dimension_semantics<arbitrary>], iteration_bounds = array<i64: 1, 1>, scalar_prefetch = 0 : i64, scratch_operands = 1 : i64, tpu.core_type = #tpu.core_type<tc>, window_params = [{transform_indices = @transform_0, window_bounds = array<i64: 512, 512>}, {pipeline_mode = #tpu.pipeline_mode<synchronous>, transform_indices = @transform_1, window_bounds = array<i64: 512, 128>}, {transform_indices = @transform_2, window_bounds = array<i64: 512, 128>}, {transform_indices = @transform_3, window_bounds = array<i64: 512, 128>}, {transform_indices = @transform_4, window_bounds = array<i64: 512, 128>}]} {
    %c0_i32 = arith.constant 0 : i32
    %0 = arith.cmpi eq, %arg1, %c0_i32 : i32
    %1 = arith.extui %0 : i1 to i32
    %c0_i32_0 = arith.constant 0 : i32
    %2 = arith.cmpi ne, %1, %c0_i32_0 : i32
    scf.if %2 {
      %cst_9 = arith.constant 0.000000e+00 : f32
      %15 = vector.broadcast %cst_9 : f32 to vector<512x128xf32>
      %c0_10 = arith.constant 0 : index
      %c0_11 = arith.constant 0 : index
      %16 = vector.load %arg7[%c0_10, %c0_11] : memref<512x128xf32, #tpu.memory_space<vmem>>, vector<512x128xf32>
      tpu.vector_store %arg7[%c0_10, %c0_11], %15 {strides = array<i32>} : memref<512x128xf32, #tpu.memory_space<vmem>>, vector<512x128xf32>,
    } else {
    }
    %c512_i32 = arith.constant 512 : i32
    %3 = arith.muli %arg1, %c512_i32 : i32
    %4 = tpu.assume_multiple %3, 512 : i32
    %5 = arith.index_cast %4 : i32 to index
    %c0 = arith.constant 0 : index
    %6 = vector.load %arg3[%5, %c0] : memref<512x128xbf16, #tpu.memory_space<vmem>>, vector<512x128xbf16>
    %c0_1 = arith.constant 0 : index
    %c0_2 = arith.constant 0 : index
    %7 = vector.load %arg7[%c0_1, %c0_2] : memref<512x128xf32, #tpu.memory_space<vmem>>, vector<512x128xf32>
    %c0_3 = arith.constant 0 : index
    %c0_4 = arith.constant 0 : index
    %8 = vector.load %arg2[%c0_3, %c0_4] : memref<512x512xbf16, #tpu.memory_space<vmem>>, vector<512x512xbf16>
    %cst = arith.constant dense<0.000000e+00> : vector<512x128xf32>
    %9 = tpu.matmul %8, %6, %cst {dimension_numbers = #tpu.dot_dimension_numbers<[1], [0], [0], [1], [0, 0, 1, 1], [], []>} : vector<512x512xbf16>, vector<512x128xbf16>, vector<512x128xf32> -> vector<512x128xf32>
    %10 = arith.addf %7, %9 : vector<512x128xf32>
    %c0_5 = arith.constant 0 : index
    %c0_6 = arith.constant 0 : index
    %11 = vector.load %arg7[%c0_5, %c0_6] : memref<512x128xf32, #tpu.memory_space<vmem>>, vector<512x128xf32>
    tpu.vector_store %arg7[%c0_5, %c0_6], %10 {strides = array<i32>} : memref<512x128xf32, #tpu.memory_space<vmem>>, vector<512x128xf32>,
    %c0_i32_7 = arith.constant 0 : i32
    %12 = arith.cmpi eq, %arg1, %c0_i32_7 : i32
    %13 = arith.extui %12 : i1 to i32
    %c0_i32_8 = arith.constant 0 : i32
    %14 = arith.cmpi ne, %13, %c0_i32_8 : i32
    scf.if %14 {
      %c0_9 = arith.constant 0 : index
      %c0_10 = arith.constant 0 : index
      %15 = vector.load %arg4[%c0_9, %c0_10] : memref<512x128xf32, #tpu.memory_space<vmem>>, vector<512x128xf32>
      %c0_11 = arith.constant 0 : index
      %c0_12 = arith.constant 0 : index
      %16 = vector.load %arg7[%c0_11, %c0_12] : memref<512x128xf32, #tpu.memory_space<vmem>>, vector<512x128xf32>
      %17 = arith.addf %15, %16 : vector<512x128xf32>
      %cst_13 = arith.constant 1.000000e+00 : f32
      %18 = vector.broadcast %cst_13 : f32 to vector<512x128xf32>
      %19 = arith.mulf %17, %18 : vector<512x128xf32>
      %c0_14 = arith.constant 0 : index
      %c0_15 = arith.constant 0 : index
      %20 = vector.load %arg6[%c0_14, %c0_15] : memref<512x128xf32, #tpu.memory_space<vmem>>, vector<512x128xf32>
      tpu.vector_store %arg6[%c0_14, %c0_15], %19 {strides = array<i32>} : memref<512x128xf32, #tpu.memory_space<vmem>>, vector<512x128xf32>,
      %c0_16 = arith.constant 0 : index
      %c0_17 = arith.constant 0 : index
      %21 = vector.load %arg7[%c0_16, %c0_17] : memref<512x128xf32, #tpu.memory_space<vmem>>, vector<512x128xf32>
      %22 = arith.truncf %21 : vector<512x128xf32> to vector<512x128xbf16>
      %c0_18 = arith.constant 0 : index
      %c0_19 = arith.constant 0 : index
      %23 = vector.load %arg5[%c0_18, %c0_19] : memref<512x128xbf16, #tpu.memory_space<vmem>>, vector<512x128xbf16>
      tpu.vector_store %arg5[%c0_18, %c0_19], %22 {strides = array<i32>} : memref<512x128xbf16, #tpu.memory_space<vmem>>, vector<512x128xbf16>,
    } else {
    }
    return
  }
  func.func @transform_0(%arg0: i32, %arg1: i32) -> (i32, i32) {
    %c0_i32 = arith.constant 0 : i32
    return %arg0, %arg1 : i32, i32
  }
  func.func @transform_1(%arg0: i32, %arg1: i32) -> (i32, i32) {
    %c0_i32 = arith.constant 0 : i32
    %c0_i32_0 = arith.constant 0 : i32
    %c0_i32_1 = arith.constant 0 : i32
    return %c0_i32, %c0_i32_0 : i32, i32
  }
  func.func @transform_2(%arg0: i32, %arg1: i32) -> (i32, i32) {
    %c0_i32 = arith.constant 0 : i32
    %c0_i32_0 = arith.constant 0 : i32
    return %arg0, %c0_i32 : i32, i32
  }
  func.func @transform_3(%arg0: i32, %arg1: i32) -> (i32, i32) {
    %c0_i32 = arith.constant 0 : i32
    %c0_i32_0 = arith.constant 0 : i32
    return %arg0, %c0_i32 : i32, i32
  }
  func.func @transform_4(%arg0: i32, %arg1: i32) -> (i32, i32) {
    %c0_i32 = arith.constant 0 : i32
    %c0_i32_0 = arith.constant 0 : i32
    return %arg0, %c0_i32 : i32, i32
  }
}

</mosaic_0001>

<llo_original>
// kernel: mul.1
$region0: #{mul.1}
  #allocation0 [shape = 's32[1]{0}', space=sflag, size = 0x4, scoped, tag = 'scoped memory for mul.1']
  %s0 = inlined_call_operand.vmem [shape: f32[4000], index: 0, kind: input, shape index: {}]
  %s1 = inlined_call_operand.vmem [shape: f32[4000], index: 1, kind: input, shape index: {}]
  %s2 = inlined_call_operand.vmem [shape: f32[4000], index: 2, kind: output, shape index: {}]
  %v3 = vld [vmem:[%s0] sm:$0xff]
  %v4 = vld [vmem:[%s1] sm:$0xff]
  %5 = xla_tuple %v3, %v4
  %6 = xla_tuple %5
  %v7 = vmul.f32 %v3, %v4
  %8 = xla_tuple %v7
  %9 = vst [vmem:[%s2] sm:$0xff] %v7
  %s10 = scalar_lea.vmem %s0, 8
  %v11 = vld [vmem:[%s10] sm:$0xff]
  %s12 = scalar_lea.vmem %s1, 8
  %v13 = vld [vmem:[%s12] sm:$0xff]
  %14 = xla_tuple %v11, %v13
  %15 = xla_tuple %14
  %v16 = vmul.f32 %v11, %v13
  %17 = xla_tuple %v16
  %s18 = scalar_lea.vmem %s2, 8
  %19 = vst [vmem:[%s18] sm:$0xff] %v16
  %s20 = scalar_lea.vmem %s0, 16
  %v21 = vld [vmem:[%s20] sm:$0xff]
  %s22 = scalar_lea.vmem %s1, 16
  %v23 = vld [vmem:[%s22] sm:$0xff]
  %24 = xla_tuple %v21, %v23
  %25 = xla_tuple %24
  %v26 = vmul.f32 %v21, %v23
  %27 = xla_tuple %v26
  %s28 = scalar_lea.vmem %s2, 16
  %29 = vst [vmem:[%s28] sm:$0xff] %v26
  %s30 = scalar_lea.vmem %s0, 24
  %v31 = vld [vmem:[%s30] sm:$0xff]
  %s32 = scalar_lea.vmem %s1, 24
  %v33 = vld [vmem:[%s32] sm:$0xff]
  %34 = xla_tuple %v31, %v33
  %35 = xla_tuple %34
  %v36 = vmul.f32 %v31, %v33
  %37 = xla_tuple %v36
  %s38 = scalar_lea.vmem %s2, 24
  %39 = vst [vmem:[%s38] sm:$0xff] %v36

// kernel: rating_prediction_gnn_forward.3
$region0: #{rating_prediction_gnn_forward.3}
  #allocation0 [shape = 'u32[]', space=smem, size = 0x4, offset = 0x4, fixed_abs, tag = 'smem constant byte address 0x4 - core index']
  #allocation1 [shape = 'u32[144,128]{1,0:T(1,128)}', space=vmem, size = 0x12000, scoped, tag = 'internal scratch']
  %s0 = inlined_call_operand.vmem [shape: f32[512,16], index: 0, kind: input, shape index: {}]
  %s1 = inlined_call_operand.vmem [shape: f32[16,128], index: 1, kind: input, shape index: {}]
  %s2 = inlined_call_operand.vmem [shape: f32[512,128], index: 2, kind: input, shape index: {}]
  %s3 = inlined_call_operand.vmem [shape: f32[512,128], index: 3, kind: output, shape index: {0}]
  %s4 = inlined_call_operand.vmem [shape: bf16[512,128], index: 4, kind: output, shape index: {1}]
  %5 = xla_tuple %s3, %s4
  %s6 = sld [smem:[#allocation0]]
  $region30: #{rating_prediction_gnn_forward.3} parent=0
    _
  %s8 = ssub.s32 1, %s6
  %s9 = scalar_select 0, %s8, %s6
  // Predicated region
  $region2: #{rating_prediction_gnn_forward.3} parent=0 // pred_check
    _
  $region3: #{rating_prediction_gnn_forward.3} parent=0 // pred_check_branch
    %11 = sbr.rel (0) target = $region5
  $region4: #{rating_prediction_gnn_forward.3} parent=0 // pred_region
    _
  $region5: #{rating_prediction_gnn_forward.3} parent=0 // pred_fallthru
    _
  // Predicated region
  $region6: #{rating_prediction_gnn_forward.3} parent=0 // pred_check
    _
  $region7: #{rating_prediction_gnn_forward.3} parent=0 // pred_check_branch
    %13 = sbr.rel (0) target = $region9
  $region8: #{rating_prediction_gnn_forward.3} parent=0 // pred_region
    _
  $region9: #{rating_prediction_gnn_forward.3} parent=0 // pred_fallthru
    _
  // Predicated region
  $region10: #{rating_prediction_gnn_forward.3} parent=0 // pred_check
    _
  $region11: #{rating_prediction_gnn_forward.3} parent=0 // pred_check_branch
    %15 = sbr.rel (0) target = $region13
  $region12: #{rating_prediction_gnn_forward.3} parent=0 // pred_region
    _
  $region13: #{rating_prediction_gnn_forward.3} parent=0 // pred_fallthru
    _
  %v16 = vld [vmem:[%s2] sm:$0xff]
  %v17 = vld [vmem:[%s2 + $0x8] sm:$0xff]
  %v18 = vld [vmem:[%s2 + $0x10] sm:$0xff]
  %v19 = vld [vmem:[%s2 + $0x18] sm:$0xff]
  %v20 = vld [vmem:[%s2 + $0x20] sm:$0xff]
  %v21 = vld [vmem:[%s2 + $0x28] sm:$0xff]
  %v22 = vld [vmem:[%s2 + $0x30] sm:$0xff]
  %v23 = vld [vmem:[%s2 + $0x38] sm:$0xff]
  %v24 = vld [vmem:[%s2 + $0x40] sm:$0xff]
  %v25 = vld [vmem:[%s2 + $0x48] sm:$0xff]
  %v26 = vld [vmem:[%s2 + $0x50] sm:$0xff]
  %v27 = vld [vmem:[%s2 + $0x58] sm:$0xff]
  %v28 = vld [vmem:[%s2 + $0x60] sm:$0xff]
  %v29 = vld [vmem:[%s2 + $0x68] sm:$0xff]
  %v30 = vld [vmem:[%s2 + $0x70] sm:$0xff]
  %v31 = vld [vmem:[%s2 + $0x78] sm:$0xff]
  %v32 = vld [vmem:[%s2 + $0x80] sm:$0xff]
  %v33 = vld [vmem:[%s2 + $0x88] sm:$0xff]
  %v34 = vld [vmem:[%s2 + $0x90] sm:$0xff]
  %v35 = vld [vmem:[%s2 + $0x98] sm:$0xff]
  %v36 = vld [vmem:[%s2 + $0xa0] sm:$0xff]
  %v37 = vld [vmem:[%s2 + $0xa8] sm:$0xff]
  %v38 = vld [vmem:[%s2 + $0xb0] sm:$0xff]
  %v39 = vld [vmem:[%s2 + $0xb8] sm:$0xff]
  %v40 = vld [vmem:[%s2 + $0xc0] sm:$0xff]
  %v41 = vld [vmem:[%s2 + $0xc8] sm:$0xff]
  %v42 = vld [vmem:[%s2 + $0xd0] sm:$0xff]
  %v43 = vld [vmem:[%s2 + $0xd8] sm:$0xff]
  %v44 = vld [vmem:[%s2 + $0xe0] sm:$0xff]
  %v45 = vld [vmem:[%s2 + $0xe8] sm:$0xff]
  %v46 = vld [vmem:[%s2 + $0xf0] sm:$0xff]
  %v47 = vld [vmem:[%s2 + $0xf8] sm:$0xff]
  %v48 = vld [vmem:[%s2 + $0x100] sm:$0xff]
  %v49 = vld [vmem:[%s2 + $0x108] sm:$0xff]
  %v50 = vld [vmem:[%s2 + $0x110] sm:$0xff]
  %v51 = vld [vmem:[%s2 + $0x118] sm:$0xff]
  %v52 = vld [vmem:[%s2 + $0x120] sm:$0xff]
  %v53 = vld [vmem:[%s2 + $0x128] sm:$0xff]
  %v54 = vld [vmem:[%s2 + $0x130] sm:$0xff]
  %v55 = vld [vmem:[%s2 + $0x138] sm:$0xff]
  %v56 = vld [vmem:[%s2 + $0x140] sm:$0xff]
  %v57 = vld [vmem:[%s2 + $0x148] sm:$0xff]
  %v58 = vld [vmem:[%s2 + $0x150] sm:$0xff]
  %v59 = vld [vmem:[%s2 + $0x158] sm:$0xff]
  %v60 = vld [vmem:[%s2 + $0x160] sm:$0xff]
  %v61 = vld [vmem:[%s2 + $0x168] sm:$0xff]
  %v62 = vld [vmem:[%s2 + $0x170] sm:$0xff]
  %v63 = vld [vmem:[%s2 + $0x178] sm:$0xff]
  %v64 = vld [vmem:[%s2 + $0x180] sm:$0xff]
  %v65 = vld [vmem:[%s2 + $0x188] sm:$0xff]
  %v66 = vld [vmem:[%s2 + $0x190] sm:$0xff]
  %v67 = vld [vmem:[%s2 + $0x198] sm:$0xff]
  %v68 = vld [vmem:[%s2 + $0x1a0] sm:$0xff]
  %v69 = vld [vmem:[%s2 + $0x1a8] sm:$0xff]
  %v70 = vld [vmem:[%s2 + $0x1b0] sm:$0xff]
  %v71 = vld [vmem:[%s2 + $0x1b8] sm:$0xff]
  %v72 = vld [vmem:[%s2 + $0x1c0] sm:$0xff]
  %v73 = vld [vmem:[%s2 + $0x1c8] sm:$0xff]
  %v74 = vld [vmem:[%s2 + $0x1d0] sm:$0xff]
  %v75 = vld [vmem:[%s2 + $0x1d8] sm:$0xff]
  %v76 = vld [vmem:[%s2 + $0x1e0] sm:$0xff]
  %v77 = vld [vmem:[%s2 + $0x1e8] sm:$0xff]
  %v78 = vld [vmem:[%s2 + $0x1f0] sm:$0xff]
  %v79 = vld [vmem:[%s2 + $0x1f8] sm:$0xff]
  %v80 = vld [vmem:[%s0] sm:$0xff]
  %v81 = vld [vmem:[%s0 + $0x8] sm:$0xff]
  %v82 = vld [vmem:[%s0 + $0x10] sm:$0xff]
  %v83 = vld [vmem:[%s0 + $0x18] sm:$0xff]
  %v84 = vld [vmem:[%s0 + $0x20] sm:$0xff]
  %v85 = vld [vmem:[%s0 + $0x28] sm:$0xff]
  %v86 = vld [vmem:[%s0 + $0x30] sm:$0xff]
  %v87 = vld [vmem:[%s0 + $0x38] sm:$0xff]
  %v88 = vld [vmem:[%s0 + $0x40] sm:$0xff]
  %v89 = vld [vmem:[%s0 + $0x48] sm:$0xff]
  %v90 = vld [vmem:[%s0 + $0x50] sm:$0xff]
  %v91 = vld [vmem:[%s0 + $0x58] sm:$0xff]
  %v92 = vld [vmem:[%s0 + $0x60] sm:$0xff]
  %v93 = vld [vmem:[%s0 + $0x68] sm:$0xff]
  %v94 = vld [vmem:[%s0 + $0x70] sm:$0xff]
  %v95 = vld [vmem:[%s0 + $0x78] sm:$0xff]
  %v96 = vld [vmem:[%s0 + $0x80] sm:$0xff]
  %v97 = vld [vmem:[%s0 + $0x88] sm:$0xff]
  %v98 = vld [vmem:[%s0 + $0x90] sm:$0xff]
  %v99 = vld [vmem:[%s0 + $0x98] sm:$0xff]
  %v100 = vld [vmem:[%s0 + $0xa0] sm:$0xff]
  %v101 = vld [vmem:[%s0 + $0xa8] sm:$0xff]
  %v102 = vld [vmem:[%s0 + $0xb0] sm:$0xff]
  %v103 = vld [vmem:[%s0 + $0xb8] sm:$0xff]
  %v104 = vld [vmem:[%s0 + $0xc0] sm:$0xff]
  %v105 = vld [vmem:[%s0 + $0xc8] sm:$0xff]
  %v106 = vld [vmem:[%s0 + $0xd0] sm:$0xff]
  %v107 = vld [vmem:[%s0 + $0xd8] sm:$0xff]
  %v108 = vld [vmem:[%s0 + $0xe0] sm:$0xff]
  %v109 = vld [vmem:[%s0 + $0xe8] sm:$0xff]
  %v110 = vld [vmem:[%s0 + $0xf0] sm:$0xff]
  %v111 = vld [vmem:[%s0 + $0xf8] sm:$0xff]
  %v112 = vld [vmem:[%s0 + $0x100] sm:$0xff]
  %v113 = vld [vmem:[%s0 + $0x108] sm:$0xff]
  %v114 = vld [vmem:[%s0 + $0x110] sm:$0xff]
  %v115 = vld [vmem:[%s0 + $0x118] sm:$0xff]
  %v116 = vld [vmem:[%s0 + $0x120] sm:$0xff]
  %v117 = vld [vmem:[%s0 + $0x128] sm:$0xff]
  %v118 = vld [vmem:[%s0 + $0x130] sm:$0xff]
  %v119 = vld [vmem:[%s0 + $0x138] sm:$0xff]
  %v120 = vld [vmem:[%s0 + $0x140] sm:$0xff]
  %v121 = vld [vmem:[%s0 + $0x148] sm:$0xff]
  %v122 = vld [vmem:[%s0 + $0x150] sm:$0xff]
  %v123 = vld [vmem:[%s0 + $0x158] sm:$0xff]
  %v124 = vld [vmem:[%s0 + $0x160] sm:$0xff]
  %v125 = vld [vmem:[%s0 + $0x168] sm:$0xff]
  %v126 = vld [vmem:[%s0 + $0x170] sm:$0xff]
  %v127 = vld [vmem:[%s0 + $0x178] sm:$0xff]
  %v128 = vld [vmem:[%s0 + $0x180] sm:$0xff]
  %v129 = vld [vmem:[%s0 + $0x188] sm:$0xff]
  %v130 = vld [vmem:[%s0 + $0x190] sm:$0xff]
  %v131 = vld [vmem:[%s0 + $0x198] sm:$0xff]
  %v132 = vld [vmem:[%s0 + $0x1a0] sm:$0xff]
  %v133 = vld [vmem:[%s0 + $0x1a8] sm:$0xff]
  %v134 = vld [vmem:[%s0 + $0x1b0] sm:$0xff]
  %v135 = vld [vmem:[%s0 + $0x1b8] sm:$0xff]
  %v136 = vld [vmem:[%s0 + $0x1c0] sm:$0xff]
  %v137 = vld [vmem:[%s0 + $0x1c8] sm:$0xff]
  %v138 = vld [vmem:[%s0 + $0x1d0] sm:$0xff]
  %v139 = vld [vmem:[%s0 + $0x1d8] sm:$0xff]
  %v140 = vld [vmem:[%s0 + $0x1e0] sm:$0xff]
  %v141 = vld [vmem:[%s0 + $0x1e8] sm:$0xff]
  %v142 = vld [vmem:[%s0 + $0x1f0] sm:$0xff]
  %v143 = vld [vmem:[%s0 + $0x1f8] sm:$0xff]
  %v144 = vld [vmem:[%s1] sm:$0xff]
  %v145 = vld [vmem:[%s1 + $0x8] sm:$0xff]
  %vm146 = vcmask 130048
  %v148 = vsel %vm146, %v80, 0
  %v151 = vsel %vm146, %v81, 0
  %v154 = vsel %vm146, %v82, 0
  %v157 = vsel %vm146, %v83, 0
  %v160 = vsel %vm146, %v84, 0
  %v163 = vsel %vm146, %v85, 0
  %v166 = vsel %vm146, %v86, 0
  %v169 = vsel %vm146, %v87, 0
  %v172 = vsel %vm146, %v88, 0
  %v175 = vsel %vm146, %v89, 0
  %v178 = vsel %vm146, %v90, 0
  %v181 = vsel %vm146, %v91, 0
  %v184 = vsel %vm146, %v92, 0
  %v187 = vsel %vm146, %v93, 0
  %v190 = vsel %vm146, %v94, 0
  %v193 = vsel %vm146, %v95, 0
  %v196 = vsel %vm146, %v96, 0
  %v199 = vsel %vm146, %v97, 0
  %v202 = vsel %vm146, %v98, 0
  %v205 = vsel %vm146, %v99, 0
  %v208 = vsel %vm146, %v100, 0
  %v211 = vsel %vm146, %v101, 0
  %v214 = vsel %vm146, %v102, 0
  %v217 = vsel %vm146, %v103, 0
  %v220 = vsel %vm146, %v104, 0
  %v223 = vsel %vm146, %v105, 0
  %v226 = vsel %vm146, %v106, 0
  %v229 = vsel %vm146, %v107, 0
  %v232 = vsel %vm146, %v108, 0
  %v235 = vsel %vm146, %v109, 0
  %v238 = vsel %vm146, %v110, 0
  %v241 = vsel %vm146, %v111, 0
  %v244 = vsel %vm146, %v112, 0
  %v247 = vsel %vm146, %v113, 0
  %v250 = vsel %vm146, %v114, 0
  %v253 = vsel %vm146, %v115, 0
  %v256 = vsel %vm146, %v116, 0
  %v259 = vsel %vm146, %v117, 0
  %v262 = vsel %vm146, %v118, 0
  %v265 = vsel %vm146, %v119, 0
  %v268 = vsel %vm146, %v120, 0
  %v271 = vsel %vm146, %v121, 0
  %v274 = vsel %vm146, %v122, 0
  %v277 = vsel %vm146, %v123, 0
  %v280 = vsel %vm146, %v124, 0
  %v283 = vsel %vm146, %v125, 0
  %v286 = vsel %vm146, %v126, 0
  %v289 = vsel %vm146, %v127, 0
  %v292 = vsel %vm146, %v128, 0
  %v295 = vsel %vm146, %v129, 0
  %v298 = vsel %vm146, %v130, 0
  %v301 = vsel %vm146, %v131, 0
  %v304 = vsel %vm146, %v132, 0
  %v307 = vsel %vm146, %v133, 0
  %v310 = vsel %vm146, %v134, 0
  %v313 = vsel %vm146, %v135, 0
  %v316 = vsel %vm146, %v136, 0
  %v319 = vsel %vm146, %v137, 0
  %v322 = vsel %vm146, %v138, 0
  %v325 = vsel %vm146, %v139, 0
  %v328 = vsel %vm146, %v140, 0
  %v331 = vsel %vm146, %v141, 0
  %v334 = vsel %vm146, %v142, 0
  %v337 = vsel %vm146, %v143, 0
  %339 = vmatprep.subr.mxu0 0.0
  %340 = vmatpush1.msra.mxu0 0.0
  %341 = vmatprep.subr.mxu0 0.0
  %342 = vmatpush1.msra.mxu0 0.0
  %343 = vmatprep.subr.mxu0 0.0
  %344 = vmatpush1.msra.mxu0 0.0
  %345 = vmatprep.subr.mxu0 0.0
  %346 = vmatpush1.msra.mxu0 0.0
  %347 = vmatprep.subr.mxu0 0.0
  %348 = vmatpush1.msra.mxu0 0.0
  %349 = vmatprep.subr.mxu0 0.0
  %350 = vmatpush1.msra.mxu0 0.0
  %351 = vmatprep.subr.mxu0 0.0
  %352 = vmatpush1.msra.mxu0 0.0
  %353 = vmatprep.subr.mxu0 0.0
  %354 = vmatpush1.msra.mxu0 0.0
  %355 = vmatprep.subr.mxu0 0.0
  %356 = vmatpush1.msra.mxu0 0.0
  %357 = vmatprep.subr.mxu0 0.0
  %358 = vmatpush1.msra.mxu0 0.0
  %359 = vmatprep.subr.mxu0 0.0
  %360 = vmatpush1.msra.mxu0 0.0
  %361 = vmatprep.subr.mxu0 0.0
  %362 = vmatpush1.msra.mxu0 0.0
  %363 = vmatprep.subr.mxu0 0.0
  %364 = vmatpush1.msra.mxu0 0.0
  %365 = vmatprep.subr.mxu0 0.0
  %366 = vmatpush1.msra.mxu0 0.0
  %367 = vmatprep.subr.mxu0 0.0
  %368 = vmatpush1.msra.mxu0 %v145
  %369 = vmatprep.subr.mxu0 0.0
  %370 = vmatpush1.msra.mxu0 %v144
  %371 = vmatprep.subr.mxu0 0.0
  %372 = vmatpush2.msra.mxu0 0.0
  %373 = vmatprep.subr.mxu0 0.0
  %374 = vmatpush2.msra.mxu0 0.0
  %375 = vmatprep.subr.mxu0 0.0
  %376 = vmatpush2.msra.mxu0 0.0
  %377 = vmatprep.subr.mxu0 0.0
  %378 = vmatpush2.msra.mxu0 0.0
  %379 = vmatprep.subr.mxu0 0.0
  %380 = vmatpush2.msra.mxu0 0.0
  %381 = vmatprep.subr.mxu0 0.0
  %382 = vmatpush2.msra.mxu0 0.0
  %383 = vmatprep.subr.mxu0 0.0
  %384 = vmatpush2.msra.mxu0 0.0
  %385 = vmatprep.subr.mxu0 0.0
  %386 = vmatpush2.msra.mxu0 0.0
  %387 = vmatprep.subr.mxu0 0.0
  %388 = vmatpush2.msra.mxu0 0.0
  %389 = vmatprep.subr.mxu0 0.0
  %390 = vmatpush2.msra.mxu0 0.0
  %391 = vmatprep.subr.mxu0 0.0
  %392 = vmatpush2.msra.mxu0 0.0
  %393 = vmatprep.subr.mxu0 0.0
  %394 = vmatpush2.msra.mxu0 0.0
  %395 = vmatprep.subr.mxu0 0.0
  %396 = vmatpush2.msra.mxu0 0.0
  %397 = vmatprep.subr.mxu0 0.0
  %398 = vmatpush2.msra.mxu0 0.0
  %399 = vmatprep.subr.mxu0 0.0
  %400 = vmatpush2.msra.mxu0 0.0
  %401 = vmatprep.subr.mxu0 0.0
  %402 = vmatpush2.msra.mxu0 0.0
  %403 = vmatprep.mubr.f32.mxu0 0.0
  %404 = vmatmul.mubr.f32.gmra.mxu0 %v148
  %v405 = vpop.f32.mrf.mxu0
  %v406 = vadd.f32 0.0, %v405
  %v407 = vpop.f32.mrf.mxu0
  %408 = vmatprep.mubr.f32.mxu0 0.0
  %409 = vmatmul.mubr.f32.gmra.mxu0 %v151
  %v410 = vpop.f32.mrf.mxu0
  %v411 = vadd.f32 0.0, %v410
  %v412 = vpop.f32.mrf.mxu0
  %413 = vmatprep.mubr.f32.mxu0 0.0
  %414 = vmatmul.mubr.f32.gmra.mxu0 %v154
  %v415 = vpop.f32.mrf.mxu0
  %v416 = vadd.f32 0.0, %v415
  %v417 = vpop.f32.mrf.mxu0
  %418 = vmatprep.mubr.f32.mxu0 0.0
  %419 = vmatmul.mubr.f32.gmra.mxu0 %v157
  %v420 = vpop.f32.mrf.mxu0
  %v421 = vadd.f32 0.0, %v420
  %v422 = vpop.f32.mrf.mxu0
  %423 = vmatprep.mubr.f32.mxu0 0.0
  %424 = vmatmul.mubr.f32.gmra.mxu0 %v160
  %v425 = vpop.f32.mrf.mxu0
  %v426 = vadd.f32 0.0, %v425
  %v427 = vpop.f32.mrf.mxu0
  %428 = vmatprep.mubr.f32.mxu0 0.0
  %429 = vmatmul.mubr.f32.gmra.mxu0 %v163
  %v430 = vpop.f32.mrf.mxu0
  %v431 = vadd.f32 0.0, %v430
  %v432 = vpop.f32.mrf.mxu0
  %433 = vmatprep.mubr.f32.mxu0 0.0
  %434 = vmatmul.mubr.f32.gmra.mxu0 %v166
  %v435 = vpop.f32.mrf.mxu0
  %v436 = vadd.f32 0.0, %v435
  %v437 = vpop.f32.mrf.mxu0
  %438 = vmatprep.mubr.f32.mxu0 0.0
  %439 = vmatmul.mubr.f32.gmra.mxu0 %v169
  %v440 = vpop.f32.mrf.mxu0
  %v441 = vadd.f32 0.0, %v440
  %v442 = vpop.f32.mrf.mxu0
  %443 = vmatprep.mubr.f32.mxu0 0.0
  %444 = vmatmul.mubr.f32.gmra.mxu0 %v172
  %v445 = vpop.f32.mrf.mxu0
  %v446 = vadd.f32 0.0, %v445
  %v447 = vpop.f32.mrf.mxu0
  %448 = vmatprep.mubr.f32.mxu0 0.0
  %449 = vmatmul.mubr.f32.gmra.mxu0 %v175
  %v450 = vpop.f32.mrf.mxu0
  %v451 = vadd.f32 0.0, %v450
  %v452 = vpop.f32.mrf.mxu0
  %453 = vmatprep.mubr.f32.mxu0 0.0
  %454 = vmatmul.mubr.f32.gmra.mxu0 %v178
  %v455 = vpop.f32.mrf.mxu0
  %v456 = vadd.f32 0.0, %v455
  %v457 = vpop.f32.mrf.mxu0
  %458 = vmatprep.mubr.f32.mxu0 0.0
  %459 = vmatmul.mubr.f32.gmra.mxu0 %v181
  %v460 = vpop.f32.mrf.mxu0
  %v461 = vadd.f32 0.0, %v460
  %v462 = vpop.f32.mrf.mxu0
  %463 = vmatprep.mubr.f32.mxu0 0.0
  %464 = vmatmul.mubr.f32.gmra.mxu0 %v184
  %v465 = vpop.f32.mrf.mxu0
  %v466 = vadd.f32 0.0, %v465
  %v467 = vpop.f32.mrf.mxu0
  %468 = vmatprep.mubr.f32.mxu0 0.0
  %469 = vmatmul.mubr.f32.gmra.mxu0 %v187
  %v470 = vpop.f32.mrf.mxu0
  %v471 = vadd.f32 0.0, %v470
  %v472 = vpop.f32.mrf.mxu0
  %473 = vmatprep.mubr.f32.mxu0 0.0
  %474 = vmatmul.mubr.f32.gmra.mxu0 %v190
  %v475 = vpop.f32.mrf.mxu0
  %v476 = vadd.f32 0.0, %v475
  %v477 = vpop.f32.mrf.mxu0
  %478 = vmatprep.mubr.f32.mxu0 0.0
  %479 = vmatmul.mubr.f32.gmra.mxu0 %v193
  %v480 = vpop.f32.mrf.mxu0
  %v481 = vadd.f32 0.0, %v480
  %v482 = vpop.f32.mrf.mxu0
  %483 = vmatprep.mubr.f32.mxu0 0.0
  %484 = vmatmul.mubr.f32.gmra.mxu0 %v196
  %v485 = vpop.f32.mrf.mxu0
  %v486 = vadd.f32 0.0, %v485
  %v487 = vpop.f32.mrf.mxu0
  %488 = vmatprep.mubr.f32.mxu0 0.0
  %489 = vmatmul.mubr.f32.gmra.mxu0 %v199
  %v490 = vpop.f32.mrf.mxu0
  %v491 = vadd.f32 0.0, %v490
  %v492 = vpop.f32.mrf.mxu0
  %493 = vmatprep.mubr.f32.mxu0 0.0
  %494 = vmatmul.mubr.f32.gmra.mxu0 %v202
  %v495 = vpop.f32.mrf.mxu0
  %v496 = vadd.f32 0.0, %v495
  %v497 = vpop.f32.mrf.mxu0
  %498 = vmatprep.mubr.f32.mxu0 0.0
  %499 = vmatmul.mubr.f32.gmra.mxu0 %v205
  %v500 = vpop.f32.mrf.mxu0
  %v501 = vadd.f32 0.0, %v500
  %v502 = vpop.f32.mrf.mxu0
  %503 = vmatprep.mubr.f32.mxu0 0.0
  %504 = vmatmul.mubr.f32.gmra.mxu0 %v208
  %v505 = vpop.f32.mrf.mxu0
  %v506 = vadd.f32 0.0, %v505
  %v507 = vpop.f32.mrf.mxu0
  %508 = vmatprep.mubr.f32.mxu0 0.0
  %509 = vmatmul.mubr.f32.gmra.mxu0 %v211
  %v510 = vpop.f32.mrf.mxu0
  %v511 = vadd.f32 0.0, %v510
  %v512 = vpop.f32.mrf.mxu0
  %513 = vmatprep.mubr.f32.mxu0 0.0
  %514 = vmatmul.mubr.f32.gmra.mxu0 %v214
  %v515 = vpop.f32.mrf.mxu0
  %v516 = vadd.f32 0.0, %v515
  %v517 = vpop.f32.mrf.mxu0
  %518 = vmatprep.mubr.f32.mxu0 0.0
  %519 = vmatmul.mubr.f32.gmra.mxu0 %v217
  %v520 = vpop.f32.mrf.mxu0
  %v521 = vadd.f32 0.0, %v520
  %v522 = vpop.f32.mrf.mxu0
  %523 = vmatprep.mubr.f32.mxu0 0.0
  %524 = vmatmul.mubr.f32.gmra.mxu0 %v220
  %v525 = vpop.f32.mrf.mxu0
  %v526 = vadd.f32 0.0, %v525
  %v527 = vpop.f32.mrf.mxu0
  %528 = vmatprep.mubr.f32.mxu0 0.0
  %529 = vmatmul.mubr.f32.gmra.mxu0 %v223
  %v530 = vpop.f32.mrf.mxu0
  %v531 = vadd.f32 0.0, %v530
  %v532 = vpop.f32.mrf.mxu0
  %533 = vmatprep.mubr.f32.mxu0 0.0
  %534 = vmatmul.mubr.f32.gmra.mxu0 %v226
  %v535 = vpop.f32.mrf.mxu0
  %v536 = vadd.f32 0.0, %v535
  %v537 = vpop.f32.mrf.mxu0
  %538 = vmatprep.mubr.f32.mxu0 0.0
  %539 = vmatmul.mubr.f32.gmra.mxu0 %v229
  %v540 = vpop.f32.mrf.mxu0
  %v541 = vadd.f32 0.0, %v540
  %v542 = vpop.f32.mrf.mxu0
  %543 = vmatprep.mubr.f32.mxu0 0.0
  %544 = vmatmul.mubr.f32.gmra.mxu0 %v232
  %v545 = vpop.f32.mrf.mxu0
  %v546 = vadd.f32 0.0, %v545
  %v547 = vpop.f32.mrf.mxu0
  %548 = vmatprep.mubr.f32.mxu0 0.0
  %549 = vmatmul.mubr.f32.gmra.mxu0 %v235
  %v550 = vpop.f32.mrf.mxu0
  %v551 = vadd.f32 0.0, %v550
  %v552 = vpop.f32.mrf.mxu0
  %553 = vmatprep.mubr.f32.mxu0 0.0
  %554 = vmatmul.mubr.f32.gmra.mxu0 %v238
  %v555 = vpop.f32.mrf.mxu0
  %v556 = vadd.f32 0.0, %v555
  %v557 = vpop.f32.mrf.mxu0
  %558 = vmatprep.mubr.f32.mxu0 0.0
  %559 = vmatmul.mubr.f32.gmra.mxu0 %v241
  %v560 = vpop.f32.mrf.mxu0
  %v561 = vadd.f32 0.0, %v560
  %v562 = vpop.f32.mrf.mxu0
  %563 = vmatprep.mubr.f32.mxu0 0.0
  %564 = vmatmul.mubr.f32.gmra.mxu0 %v244
  %v565 = vpop.f32.mrf.mxu0
  %v566 = vadd.f32 0.0, %v565
  %v567 = vpop.f32.mrf.mxu0
  %568 = vmatprep.mubr.f32.mxu0 0.0
  %569 = vmatmul.mubr.f32.gmra.mxu0 %v247
  %v570 = vpop.f32.mrf.mxu0
  %v571 = vadd.f32 0.0, %v570
  %v572 = vpop.f32.mrf.mxu0
  %573 = vmatprep.mubr.f32.mxu0 0.0
  %574 = vmatmul.mubr.f32.gmra.mxu0 %v250
  %v575 = vpop.f32.mrf.mxu0
  %v576 = vadd.f32 0.0, %v575
  %v577 = vpop.f32.mrf.mxu0
  %578 = vmatprep.mubr.f32.mxu0 0.0
  %579 = vmatmul.mubr.f32.gmra.mxu0 %v253
  %v580 = vpop.f32.mrf.mxu0
  %v581 = vadd.f32 0.0, %v580
  %v582 = vpop.f32.mrf.mxu0
  %583 = vmatprep.mubr.f32.mxu0 0.0
  %584 = vmatmul.mubr.f32.gmra.mxu0 %v256
  %v585 = vpop.f32.mrf.mxu0
  %v586 = vadd.f32 0.0, %v585
  %v587 = vpop.f32.mrf.mxu0
  %588 = vmatprep.mubr.f32.mxu0 0.0
  %589 = vmatmul.mubr.f32.gmra.mxu0 %v259
  %v590 = vpop.f32.mrf.mxu0
  %v591 = vadd.f32 0.0, %v590
  %v592 = vpop.f32.mrf.mxu0
  %593 = vmatprep.mubr.f32.mxu0 0.0
  %594 = vmatmul.mubr.f32.gmra.mxu0 %v262
  %v595 = vpop.f32.mrf.mxu0
  %v596 = vadd.f32 0.0, %v595
  %v597 = vpop.f32.mrf.mxu0
  %598 = vmatprep.mubr.f32.mxu0 0.0
  %599 = vmatmul.mubr.f32.gmra.mxu0 %v265
  %v600 = vpop.f32.mrf.mxu0
  %v601 = vadd.f32 0.0, %v600
  %v602 = vpop.f32.mrf.mxu0
  %603 = vmatprep.mubr.f32.mxu0 0.0
  %604 = vmatmul.mubr.f32.gmra.mxu0 %v268
  %v605 = vpop.f32.mrf.mxu0
  %v606 = vadd.f32 0.0, %v605
  %v607 = vpop.f32.mrf.mxu0
  %608 = vmatprep.mubr.f32.mxu0 0.0
  %609 = vmatmul.mubr.f32.gmra.mxu0 %v271
  %v610 = vpop.f32.mrf.mxu0
  %v611 = vadd.f32 0.0, %v610
  %v612 = vpop.f32.mrf.mxu0
  %613 = vmatprep.mubr.f32.mxu0 0.0
  %614 = vmatmul.mubr.f32.gmra.mxu0 %v274
  %v615 = vpop.f32.mrf.mxu0
  %v616 = vadd.f32 0.0, %v615
  %v617 = vpop.f32.mrf.mxu0
  %618 = vmatprep.mubr.f32.mxu0 0.0
  %619 = vmatmul.mubr.f32.gmra.mxu0 %v277
  %v620 = vpop.f32.mrf.mxu0
  %v621 = vadd.f32 0.0, %v620
  %v622 = vpop.f32.mrf.mxu0
  %623 = vmatprep.mubr.f32.mxu0 0.0
  %624 = vmatmul.mubr.f32.gmra.mxu0 %v280
  %v625 = vpop.f32.mrf.mxu0
  %v626 = vadd.f32 0.0, %v625
  %v627 = vpop.f32.mrf.mxu0
  %628 = vmatprep.mubr.f32.mxu0 0.0
  %629 = vmatmul.mubr.f32.gmra.mxu0 %v283
  %v630 = vpop.f32.mrf.mxu0
  %v631 = vadd.f32 0.0, %v630
  %v632 = vpop.f32.mrf.mxu0
  %633 = vmatprep.mubr.f32.mxu0 0.0
  %634 = vmatmul.mubr.f32.gmra.mxu0 %v286
  %v635 = vpop.f32.mrf.mxu0
  %v636 = vadd.f32 0.0, %v635
  %v637 = vpop.f32.mrf.mxu0
  %638 = vmatprep.mubr.f32.mxu0 0.0
  %639 = vmatmul.mubr.f32.gmra.mxu0 %v289
  %v640 = vpop.f32.mrf.mxu0
  %v641 = vadd.f32 0.0, %v640
  %v642 = vpop.f32.mrf.mxu0
  %643 = vmatprep.mubr.f32.mxu0 0.0
  %644 = vmatmul.mubr.f32.gmra.mxu0 %v292
  %v645 = vpop.f32.mrf.mxu0
  %v646 = vadd.f32 0.0, %v645
  %v647 = vpop.f32.mrf.mxu0
  %648 = vmatprep.mubr.f32.mxu0 0.0
  %649 = vmatmul.mubr.f32.gmra.mxu0 %v295
  %v650 = vpop.f32.mrf.mxu0
  %v651 = vadd.f32 0.0, %v650
  %v652 = vpop.f32.mrf.mxu0
  %653 = vmatprep.mubr.f32.mxu0 0.0
  %654 = vmatmul.mubr.f32.gmra.mxu0 %v298
  %v655 = vpop.f32.mrf.mxu0
  %v656 = vadd.f32 0.0, %v655
  %v657 = vpop.f32.mrf.mxu0
  %658 = vmatprep.mubr.f32.mxu0 0.0
  %659 = vmatmul.mubr.f32.gmra.mxu0 %v301
  %v660 = vpop.f32.mrf.mxu0
  %v661 = vadd.f32 0.0, %v660
  %v662 = vpop.f32.mrf.mxu0
  %663 = vmatprep.mubr.f32.mxu0 0.0
  %664 = vmatmul.mubr.f32.gmra.mxu0 %v304
  %v665 = vpop.f32.mrf.mxu0
  %v666 = vadd.f32 0.0, %v665
  %v667 = vpop.f32.mrf.mxu0
  %668 = vmatprep.mubr.f32.mxu0 0.0
  %669 = vmatmul.mubr.f32.gmra.mxu0 %v307
  %v670 = vpop.f32.mrf.mxu0
  %v671 = vadd.f32 0.0, %v670
  %v672 = vpop.f32.mrf.mxu0
  %673 = vmatprep.mubr.f32.mxu0 0.0
  %674 = vmatmul.mubr.f32.gmra.mxu0 %v310
  %v675 = vpop.f32.mrf.mxu0
  %v676 = vadd.f32 0.0, %v675
  %v677 = vpop.f32.mrf.mxu0
  %678 = vmatprep.mubr.f32.mxu0 0.0
  %679 = vmatmul.mubr.f32.gmra.mxu0 %v313
  %v680 = vpop.f32.mrf.mxu0
  %v681 = vadd.f32 0.0, %v680
  %v682 = vpop.f32.mrf.mxu0
  %683 = vmatprep.mubr.f32.mxu0 0.0
  %684 = vmatmul.mubr.f32.gmra.mxu0 %v316
  %v685 = vpop.f32.mrf.mxu0
  %v686 = vadd.f32 0.0, %v685
  %v687 = vpop.f32.mrf.mxu0
  %688 = vmatprep.mubr.f32.mxu0 0.0
  %689 = vmatmul.mubr.f32.gmra.mxu0 %v319
  %v690 = vpop.f32.mrf.mxu0
  %v691 = vadd.f32 0.0, %v690
  %v692 = vpop.f32.mrf.mxu0
  %693 = vmatprep.mubr.f32.mxu0 0.0
  %694 = vmatmul.mubr.f32.gmra.mxu0 %v322
  %v695 = vpop.f32.mrf.mxu0
  %v696 = vadd.f32 0.0, %v695
  %v697 = vpop.f32.mrf.mxu0
  %698 = vmatprep.mubr.f32.mxu0 0.0
  %699 = vmatmul.mubr.f32.gmra.mxu0 %v325
  %v700 = vpop.f32.mrf.mxu0
  %v701 = vadd.f32 0.0, %v700
  %v702 = vpop.f32.mrf.mxu0
  %703 = vmatprep.mubr.f32.mxu0 0.0
  %704 = vmatmul.mubr.f32.gmra.mxu0 %v328
  %v705 = vpop.f32.mrf.mxu0
  %v706 = vadd.f32 0.0, %v705
  %v707 = vpop.f32.mrf.mxu0
  %708 = vmatprep.mubr.f32.mxu0 0.0
  %709 = vmatmul.mubr.f32.gmra.mxu0 %v331
  %v710 = vpop.f32.mrf.mxu0
  %v711 = vadd.f32 0.0, %v710
  %v712 = vpop.f32.mrf.mxu0
  %713 = vmatprep.mubr.f32.mxu0 0.0
  %714 = vmatmul.mubr.f32.gmra.mxu0 %v334
  %v715 = vpop.f32.mrf.mxu0
  %v716 = vadd.f32 0.0, %v715
  %v717 = vpop.f32.mrf.mxu0
  %718 = vmatprep.mubr.f32.mxu0 0.0
  %719 = vmatmul.mubr.f32.gmra.mxu0 %v337
  %v720 = vpop.f32.mrf.mxu0
  %v721 = vadd.f32 0.0, %v720
  %v722 = vpop.f32.mrf.mxu0
  %723 = vdwg.mxu0
  %v724 = vadd.f32 %v16, %v406
  %v725 = vadd.f32 %v17, %v411
  %v726 = vadd.f32 %v18, %v416
  %v727 = vadd.f32 %v19, %v421
  %v728 = vadd.f32 %v20, %v426
  %v729 = vadd.f32 %v21, %v431
  %v730 = vadd.f32 %v22, %v436
  %v731 = vadd.f32 %v23, %v441
  %v732 = vadd.f32 %v24, %v446
  %v733 = vadd.f32 %v25, %v451
  %v734 = vadd.f32 %v26, %v456
  %v735 = vadd.f32 %v27, %v461
  %v736 = vadd.f32 %v28, %v466
  %v737 = vadd.f32 %v29, %v471
  %v738 = vadd.f32 %v30, %v476
  %v739 = vadd.f32 %v31, %v481
  %v740 = vadd.f32 %v32, %v486
  %v741 = vadd.f32 %v33, %v491
  %v742 = vadd.f32 %v34, %v496
  %v743 = vadd.f32 %v35, %v501
  %v744 = vadd.f32 %v36, %v506
  %v745 = vadd.f32 %v37, %v511
  %v746 = vadd.f32 %v38, %v516
  %v747 = vadd.f32 %v39, %v521
  %v748 = vadd.f32 %v40, %v526
  %v749 = vadd.f32 %v41, %v531
  %v750 = vadd.f32 %v42, %v536
  %v751 = vadd.f32 %v43, %v541
  %v752 = vadd.f32 %v44, %v546
  %v753 = vadd.f32 %v45, %v551
  %v754 = vadd.f32 %v46, %v556
  %v755 = vadd.f32 %v47, %v561
  %v756 = vadd.f32 %v48, %v566
  %v757 = vadd.f32 %v49, %v571
  %v758 = vadd.f32 %v50, %v576
  %v759 = vadd.f32 %v51, %v581
  %v760 = vadd.f32 %v52, %v586
  %v761 = vadd.f32 %v53, %v591
  %v762 = vadd.f32 %v54, %v596
  %v763 = vadd.f32 %v55, %v601
  %v764 = vadd.f32 %v56, %v606
  %v765 = vadd.f32 %v57, %v611
  %v766 = vadd.f32 %v58, %v616
  %v767 = vadd.f32 %v59, %v621
  %v768 = vadd.f32 %v60, %v626
  %v769 = vadd.f32 %v61, %v631
  %v770 = vadd.f32 %v62, %v636
  %v771 = vadd.f32 %v63, %v641
  %v772 = vadd.f32 %v64, %v646
  %v773 = vadd.f32 %v65, %v651
  %v774 = vadd.f32 %v66, %v656
  %v775 = vadd.f32 %v67, %v661
  %v776 = vadd.f32 %v68, %v666
  %v777 = vadd.f32 %v69, %v671
  %v778 = vadd.f32 %v70, %v676
  %v779 = vadd.f32 %v71, %v681
  %v780 = vadd.f32 %v72, %v686
  %v781 = vadd.f32 %v73, %v691
  %v782 = vadd.f32 %v74, %v696
  %v783 = vadd.f32 %v75, %v701
  %v784 = vadd.f32 %v76, %v706
  %v785 = vadd.f32 %v77, %v711
  %v786 = vadd.f32 %v78, %v716
  %v787 = vadd.f32 %v79, %v721
  %788 = vst [vmem:[%s3] sm:$0xff] %v724
  %789 = vst [vmem:[%s3 + $0x8] sm:$0xff] %v725
  %790 = vst [vmem:[%s3 + $0x10] sm:$0xff] %v726
  %791 = vst [vmem:[%s3 + $0x18] sm:$0xff] %v727
  %792 = vst [vmem:[%s3 + $0x20] sm:$0xff] %v728
  %793 = vst [vmem:[%s3 + $0x28] sm:$0xff] %v729
  %794 = vst [vmem:[%s3 + $0x30] sm:$0xff] %v730
  %795 = vst [vmem:[%s3 + $0x38] sm:$0xff] %v731
  %796 = vst [vmem:[%s3 + $0x40] sm:$0xff] %v732
  %797 = vst [vmem:[%s3 + $0x48] sm:$0xff] %v733
  %798 = vst [vmem:[%s3 + $0x50] sm:$0xff] %v734
  %799 = vst [vmem:[%s3 + $0x58] sm:$0xff] %v735
  %800 = vst [vmem:[%s3 + $0x60] sm:$0xff] %v736
  %801 = vst [vmem:[%s3 + $0x68] sm:$0xff] %v737
  %802 = vst [vmem:[%s3 + $0x70] sm:$0xff] %v738
  %803 = vst [vmem:[%s3 + $0x78] sm:$0xff] %v739
  %804 = vst [vmem:[%s3 + $0x80] sm:$0xff] %v740
  %805 = vst [vmem:[%s3 + $0x88] sm:$0xff] %v741
  %806 = vst [vmem:[%s3 + $0x90] sm:$0xff] %v742
  %807 = vst [vmem:[%s3 + $0x98] sm:$0xff] %v743
  %808 = vst [vmem:[%s3 + $0xa0] sm:$0xff] %v744
  %809 = vst [vmem:[%s3 + $0xa8] sm:$0xff] %v745
  %810 = vst [vmem:[%s3 + $0xb0] sm:$0xff] %v746
  %811 = vst [vmem:[%s3 + $0xb8] sm:$0xff] %v747
  %812 = vst [vmem:[%s3 + $0xc0] sm:$0xff] %v748
  %813 = vst [vmem:[%s3 + $0xc8] sm:$0xff] %v749
  %814 = vst [vmem:[%s3 + $0xd0] sm:$0xff] %v750
  %815 = vst [vmem:[%s3 + $0xd8] sm:$0xff] %v751
  %816 = vst [vmem:[%s3 + $0xe0] sm:$0xff] %v752
  %817 = vst [vmem:[%s3 + $0xe8] sm:$0xff] %v753
  %818 = vst [vmem:[%s3 + $0xf0] sm:$0xff] %v754
  %819 = vst [vmem:[%s3 + $0xf8] sm:$0xff] %v755
  %820 = vst [vmem:[%s3 + $0x100] sm:$0xff] %v756
  %821 = vst [vmem:[%s3 + $0x108] sm:$0xff] %v757
  %822 = vst [vmem:[%s3 + $0x110] sm:$0xff] %v758
  %823 = vst [vmem:[%s3 + $0x118] sm:$0xff] %v759
  %824 = vst [vmem:[%s3 + $0x120] sm:$0xff] %v760
  %825 = vst [vmem:[%s3 + $0x128] sm:$0xff] %v761
  %826 = vst [vmem:[%s3 + $0x130] sm:$0xff] %v762
  %827 = vst [vmem:[%s3 + $0x138] sm:$0xff] %v763
  %828 = vst [vmem:[%s3 + $0x140] sm:$0xff] %v764
  %829 = vst [vmem:[%s3 + $0x148] sm:$0xff] %v765
  %830 = vst [vmem:[%s3 + $0x150] sm:$0xff] %v766
  %831 = vst [vmem:[%s3 + $0x158] sm:$0xff] %v767
  %832 = vst [vmem:[%s3 + $0x160] sm:$0xff] %v768
  %833 = vst [vmem:[%s3 + $0x168] sm:$0xff] %v769
  %834 = vst [vmem:[%s3 + $0x170] sm:$0xff] %v770
  %835 = vst [vmem:[%s3 + $0x178] sm:$0xff] %v771
  %836 = vst [vmem:[%s3 + $0x180] sm:$0xff] %v772
  %837 = vst [vmem:[%s3 + $0x188] sm:$0xff] %v773
  %838 = vst [vmem:[%s3 + $0x190] sm:$0xff] %v774
  %839 = vst [vmem:[%s3 + $0x198] sm:$0xff] %v775
  %840 = vst [vmem:[%s3 + $0x1a0] sm:$0xff] %v776
  %841 = vst [vmem:[%s3 + $0x1a8] sm:$0xff] %v777
  %842 = vst [vmem:[%s3 + $0x1b0] sm:$0xff] %v778
  %843 = vst [vmem:[%s3 + $0x1b8] sm:$0xff] %v779
  %844 = vst [vmem:[%s3 + $0x1c0] sm:$0xff] %v780
  %845 = vst [vmem:[%s3 + $0x1c8] sm:$0xff] %v781
  %846 = vst [vmem:[%s3 + $0x1d0] sm:$0xff] %v782
  %847 = vst [vmem:[%s3 + $0x1d8] sm:$0xff] %v783
  %848 = vst [vmem:[%s3 + $0x1e0] sm:$0xff] %v784
  %849 = vst [vmem:[%s3 + $0x1e8] sm:$0xff] %v785
  %850 = vst [vmem:[%s3 + $0x1f0] sm:$0xff] %v786
  %851 = vst [vmem:[%s3 + $0x1f8] sm:$0xff] %v787
  %v852 = vpack.c.bf16 %v725, %v724
  %v853 = vpack.c.bf16 %v727, %v726
  %v854 = vpack.c.bf16 %v729, %v728
  %v855 = vpack.c.bf16 %v731, %v730
  %v856 = vpack.c.bf16 %v733, %v732
  %v857 = vpack.c.bf16 %v735, %v734
  %v858 = vpack.c.bf16 %v737, %v736
  %v859 = vpack.c.bf16 %v739, %v738
  %v860 = vpack.c.bf16 %v741, %v740
  %v861 = vpack.c.bf16 %v743, %v742
  %v862 = vpack.c.bf16 %v745, %v744
  %v863 = vpack.c.bf16 %v747, %v746
  %v864 = vpack.c.bf16 %v749, %v748
  %v865 = vpack.c.bf16 %v751, %v750
  %v866 = vpack.c.bf16 %v753, %v752
  %v867 = vpack.c.bf16 %v755, %v754
  %v868 = vpack.c.bf16 %v757, %v756
  %v869 = vpack.c.bf16 %v759, %v758
  %v870 = vpack.c.bf16 %v761, %v760
  %v871 = vpack.c.bf16 %v763, %v762
  %v872 = vpack.c.bf16 %v765, %v764
  %v873 = vpack.c.bf16 %v767, %v766
  %v874 = vpack.c.bf16 %v769, %v768
  %v875 = vpack.c.bf16 %v771, %v770
  %v876 = vpack.c.bf16 %v773, %v772
  %v877 = vpack.c.bf16 %v775, %v774
  %v878 = vpack.c.bf16 %v777, %v776
  %v879 = vpack.c.bf16 %v779, %v778
  %v880 = vpack.c.bf16 %v781, %v780
  %v881 = vpack.c.bf16 %v783, %v782
  %v882 = vpack.c.bf16 %v785, %v784
  %v883 = vpack.c.bf16 %v787, %v786
  %v916 = vunpack.c.l.b16 %v852
  %v917 = vunpack.c.h.b16 %v852
  %v918 = vunpack.c.l.b16 %v853
  %v919 = vunpack.c.h.b16 %v853
  %v920 = vunpack.c.l.b16 %v854
  %v921 = vunpack.c.h.b16 %v854
  %v922 = vunpack.c.l.b16 %v855
  %v923 = vunpack.c.h.b16 %v855
  %v924 = vunpack.c.l.b16 %v856
  %v925 = vunpack.c.h.b16 %v856
  %v926 = vunpack.c.l.b16 %v857
  %v927 = vunpack.c.h.b16 %v857
  %v928 = vunpack.c.l.b16 %v858
  %v929 = vunpack.c.h.b16 %v858
  %v930 = vunpack.c.l.b16 %v859
  %v931 = vunpack.c.h.b16 %v859
  %v932 = vunpack.c.l.b16 %v860
  %v933 = vunpack.c.h.b16 %v860
  %v934 = vunpack.c.l.b16 %v861
  %v935 = vunpack.c.h.b16 %v861
  %v936 = vunpack.c.l.b16 %v862
  %v937 = vunpack.c.h.b16 %v862
  %v938 = vunpack.c.l.b16 %v863
  %v939 = vunpack.c.h.b16 %v863
  %v940 = vunpack.c.l.b16 %v864
  %v941 = vunpack.c.h.b16 %v864
  %v942 = vunpack.c.l.b16 %v865
  %v943 = vunpack.c.h.b16 %v865
  %v944 = vunpack.c.l.b16 %v866
  %v945 = vunpack.c.h.b16 %v866
  %v946 = vunpack.c.l.b16 %v867
  %v947 = vunpack.c.h.b16 %v867
  %v948 = vunpack.c.l.b16 %v868
  %v949 = vunpack.c.h.b16 %v868
  %v950 = vunpack.c.l.b16 %v869
  %v951 = vunpack.c.h.b16 %v869
  %v952 = vunpack.c.l.b16 %v870
  %v953 = vunpack.c.h.b16 %v870
  %v954 = vunpack.c.l.b16 %v871
  %v955 = vunpack.c.h.b16 %v871
  %v956 = vunpack.c.l.b16 %v872
  %v957 = vunpack.c.h.b16 %v872
  %v958 = vunpack.c.l.b16 %v873
  %v959 = vunpack.c.h.b16 %v873
  %v960 = vunpack.c.l.b16 %v874
  %v961 = vunpack.c.h.b16 %v874
  %v962 = vunpack.c.l.b16 %v875
  %v963 = vunpack.c.h.b16 %v875
  %v964 = vunpack.c.l.b16 %v876
  %v965 = vunpack.c.h.b16 %v876
  %v966 = vunpack.c.l.b16 %v877
  %v967 = vunpack.c.h.b16 %v877
  %v968 = vunpack.c.l.b16 %v878
  %v969 = vunpack.c.h.b16 %v878
  %v970 = vunpack.c.l.b16 %v879
  %v971 = vunpack.c.h.b16 %v879
  %v972 = vunpack.c.l.b16 %v880
  %v973 = vunpack.c.h.b16 %v880
  %v974 = vunpack.c.l.b16 %v881
  %v975 = vunpack.c.h.b16 %v881
  %v976 = vunpack.c.l.b16 %v882
  %v977 = vunpack.c.h.b16 %v882
  %v978 = vunpack.c.l.b16 %v883
  %v979 = vunpack.c.h.b16 %v883
  %v980 = vpack.c.b16 %v916, %v916
  %v981 = vpack.c.b16 %v917, %v917
  %v982 = vpack.c.b16 %v918, %v918
  %v983 = vpack.c.b16 %v919, %v919
  %v984 = vpack.c.b16 %v920, %v920
  %v985 = vpack.c.b16 %v921, %v921
  %v986 = vpack.c.b16 %v922, %v922
  %v987 = vpack.c.b16 %v923, %v923
  %v988 = vpack.c.b16 %v924, %v924
  %v989 = vpack.c.b16 %v925, %v925
  %v990 = vpack.c.b16 %v926, %v926
  %v991 = vpack.c.b16 %v927, %v927
  %v992 = vpack.c.b16 %v928, %v928
  %v993 = vpack.c.b16 %v929, %v929
  %v994 = vpack.c.b16 %v930, %v930
  %v995 = vpack.c.b16 %v931, %v931
  %v996 = vpack.c.b16 %v932, %v932
  %v997 = vpack.c.b16 %v933, %v933
  %v998 = vpack.c.b16 %v934, %v934
  %v999 = vpack.c.b16 %v935, %v935
  %v1000 = vpack.c.b16 %v936, %v936
  %v1001 = vpack.c.b16 %v937, %v937
  %v1002 = vpack.c.b16 %v938, %v938
  %v1003 = vpack.c.b16 %v939, %v939
  %v1004 = vpack.c.b16 %v940, %v940
  %v1005 = vpack.c.b16 %v941, %v941
  %v1006 = vpack.c.b16 %v942, %v942
  %v1007 = vpack.c.b16 %v943, %v943
  %v1008 = vpack.c.b16 %v944, %v944
  %v1009 = vpack.c.b16 %v945, %v945
  %v1010 = vpack.c.b16 %v946, %v946
  %v1011 = vpack.c.b16 %v947, %v947
  %v1012 = vpack.c.b16 %v948, %v948
  %v1013 = vpack.c.b16 %v949, %v949
  %v1014 = vpack.c.b16 %v950, %v950
  %v1015 = vpack.c.b16 %v951, %v951
  %v1016 = vpack.c.b16 %v952, %v952
  %v1017 = vpack.c.b16 %v953, %v953
  %v1018 = vpack.c.b16 %v954, %v954
  %v1019 = vpack.c.b16 %v955, %v955
  %v1020 = vpack.c.b16 %v956, %v956
  %v1021 = vpack.c.b16 %v957, %v957
  %v1022 = vpack.c.b16 %v958, %v958
  %v1023 = vpack.c.b16 %v959, %v959
  %v1024 = vpack.c.b16 %v960, %v960
  %v1025 = vpack.c.b16 %v961, %v961
  %v1026 = vpack.c.b16 %v962, %v962
  %v1027 = vpack.c.b16 %v963, %v963
  %v1028 = vpack.c.b16 %v964, %v964
  %v1029 = vpack.c.b16 %v965, %v965
  %v1030 = vpack.c.b16 %v966, %v966
  %v1031 = vpack.c.b16 %v967, %v967
  %v1032 = vpack.c.b16 %v968, %v968
  %v1033 = vpack.c.b16 %v969, %v969
  %v1034 = vpack.c.b16 %v970, %v970
  %v1035 = vpack.c.b16 %v971, %v971
  %v1036 = vpack.c.b16 %v972, %v972
  %v1037 = vpack.c.b16 %v973, %v973
  %v1038 = vpack.c.b16 %v974, %v974
  %v1039 = vpack.c.b16 %v975, %v975
  %v1040 = vpack.c.b16 %v976, %v976
  %v1041 = vpack.c.b16 %v977, %v977
  %v1042 = vpack.c.b16 %v978, %v978
  %v1043 = vpack.c.b16 %v979, %v979
  %1108 = vst [vmem:[%s4] sm:$0xf] %v980
  %1109 = vst [vmem:[%s4 + $0x4] sm:$0xf] %v981
  %1110 = vst [vmem:[%s4 + $0x8] sm:$0xf] %v982
  %1111 = vst [vmem:[%s4 + $0xc] sm:$0xf] %v983
  %1112 = vst [vmem:[%s4 + $0x10] sm:$0xf] %v984
  %1113 = vst [vmem:[%s4 + $0x14] sm:$0xf] %v985
  %1114 = vst [vmem:[%s4 + $0x18] sm:$0xf] %v986
  %1115 = vst [vmem:[%s4 + $0x1c] sm:$0xf] %v987
  %1116 = vst [vmem:[%s4 + $0x20] sm:$0xf] %v988
  %1117 = vst [vmem:[%s4 + $0x24] sm:$0xf] %v989
  %1118 = vst [vmem:[%s4 + $0x28] sm:$0xf] %v990
  %1119 = vst [vmem:[%s4 + $0x2c] sm:$0xf] %v991
  %1120 = vst [vmem:[%s4 + $0x30] sm:$0xf] %v992
  %1121 = vst [vmem:[%s4 + $0x34] sm:$0xf] %v993
  %1122 = vst [vmem:[%s4 + $0x38] sm:$0xf] %v994
  %1123 = vst [vmem:[%s4 + $0x3c] sm:$0xf] %v995
  %1124 = vst [vmem:[%s4 + $0x40] sm:$0xf] %v996
  %1125 = vst [vmem:[%s4 + $0x44] sm:$0xf] %v997
  %1126 = vst [vmem:[%s4 + $0x48] sm:$0xf] %v998
  %1127 = vst [vmem:[%s4 + $0x4c] sm:$0xf] %v999
  %1128 = vst [vmem:[%s4 + $0x50] sm:$0xf] %v1000
  %1129 = vst [vmem:[%s4 + $0x54] sm:$0xf] %v1001
  %1130 = vst [vmem:[%s4 + $0x58] sm:$0xf] %v1002
  %1131 = vst [vmem:[%s4 + $0x5c] sm:$0xf] %v1003
  %1132 = vst [vmem:[%s4 + $0x60] sm:$0xf] %v1004
  %1133 = vst [vmem:[%s4 + $0x64] sm:$0xf] %v1005
  %1134 = vst [vmem:[%s4 + $0x68] sm:$0xf] %v1006
  %1135 = vst [vmem:[%s4 + $0x6c] sm:$0xf] %v1007
  %1136 = vst [vmem:[%s4 + $0x70] sm:$0xf] %v1008
  %1137 = vst [vmem:[%s4 + $0x74] sm:$0xf] %v1009
  %1138 = vst [vmem:[%s4 + $0x78] sm:$0xf] %v1010
  %1139 = vst [vmem:[%s4 + $0x7c] sm:$0xf] %v1011
  %1140 = vst [vmem:[%s4 + $0x80] sm:$0xf] %v1012
  %1141 = vst [vmem:[%s4 + $0x84] sm:$0xf] %v1013
  %1142 = vst [vmem:[%s4 + $0x88] sm:$0xf] %v1014
  %1143 = vst [vmem:[%s4 + $0x8c] sm:$0xf] %v1015
  %1144 = vst [vmem:[%s4 + $0x90] sm:$0xf] %v1016
  %1145 = vst [vmem:[%s4 + $0x94] sm:$0xf] %v1017
  %1146 = vst [vmem:[%s4 + $0x98] sm:$0xf] %v1018
  %1147 = vst [vmem:[%s4 + $0x9c] sm:$0xf] %v1019
  %1148 = vst [vmem:[%s4 + $0xa0] sm:$0xf] %v1020
  %1149 = vst [vmem:[%s4 + $0xa4] sm:$0xf] %v1021
  %1150 = vst [vmem:[%s4 + $0xa8] sm:$0xf] %v1022
  %1151 = vst [vmem:[%s4 + $0xac] sm:$0xf] %v1023
  %1152 = vst [vmem:[%s4 + $0xb0] sm:$0xf] %v1024
  %1153 = vst [vmem:[%s4 + $0xb4] sm:$0xf] %v1025
  %1154 = vst [vmem:[%s4 + $0xb8] sm:$0xf] %v1026
  %1155 = vst [vmem:[%s4 + $0xbc] sm:$0xf] %v1027
  %1156 = vst [vmem:[%s4 + $0xc0] sm:$0xf] %v1028
  %1157 = vst [vmem:[%s4 + $0xc4] sm:$0xf] %v1029
  %1158 = vst [vmem:[%s4 + $0xc8] sm:$0xf] %v1030
  %1159 = vst [vmem:[%s4 + $0xcc] sm:$0xf] %v1031
  %1160 = vst [vmem:[%s4 + $0xd0] sm:$0xf] %v1032
  %1161 = vst [vmem:[%s4 + $0xd4] sm:$0xf] %v1033
  %1162 = vst [vmem:[%s4 + $0xd8] sm:$0xf] %v1034
  %1163 = vst [vmem:[%s4 + $0xdc] sm:$0xf] %v1035
  %1164 = vst [vmem:[%s4 + $0xe0] sm:$0xf] %v1036
  %1165 = vst [vmem:[%s4 + $0xe4] sm:$0xf] %v1037
  %1166 = vst [vmem:[%s4 + $0xe8] sm:$0xf] %v1038
  %1167 = vst [vmem:[%s4 + $0xec] sm:$0xf] %v1039
  %1168 = vst [vmem:[%s4 + $0xf0] sm:$0xf] %v1040
  %1169 = vst [vmem:[%s4 + $0xf4] sm:$0xf] %v1041
  %1170 = vst [vmem:[%s4 + $0xf8] sm:$0xf] %v1042
  %1171 = vst [vmem:[%s4 + $0xfc] sm:$0xf] %v1043
  // Predicated region
  $region14: #{rating_prediction_gnn_forward.3} parent=0 // pred_check
    _
  $region15: #{rating_prediction_gnn_forward.3} parent=0 // pred_check_branch
    %1173 = sbr.rel (0) target = $region17
  $region16: #{rating_prediction_gnn_forward.3} parent=0 // pred_region
    _
  $region17: #{rating_prediction_gnn_forward.3} parent=0 // pred_fallthru
    _
  // Predicated region
  $region18: #{rating_prediction_gnn_forward.3} parent=0 // pred_check
    _
  $region19: #{rating_prediction_gnn_forward.3} parent=0 // pred_check_branch
    %1175 = sbr.rel (0) target = $region21
  $region20: #{rating_prediction_gnn_forward.3} parent=0 // pred_region
    _
  $region21: #{rating_prediction_gnn_forward.3} parent=0 // pred_fallthru
    _
  // Predicated region
  $region22: #{rating_prediction_gnn_forward.3} parent=0 // pred_check
    _
  $region23: #{rating_prediction_gnn_forward.3} parent=0 // pred_check_branch
    %1177 = sbr.rel (0) target = $region25
  $region24: #{rating_prediction_gnn_forward.3} parent=0 // pred_region
    _
  $region25: #{rating_prediction_gnn_forward.3} parent=0 // pred_fallthru
    _
  // Predicated region
  $region26: #{rating_prediction_gnn_forward.3} parent=0 // pred_check
    _
  $region27: #{rating_prediction_gnn_forward.3} parent=0 // pred_check_branch
    %1179 = sbr.rel (0) target = $region29
  $region28: #{rating_prediction_gnn_forward.3} parent=0 // pred_region
    _
  $region29: #{rating_prediction_gnn_forward.3} parent=0 // pred_fallthru
    _

// kernel: rating_prediction_gnn_forward.5
$region0: #{rating_prediction_gnn_forward.5}
  #allocation0 [shape = 'u32[]', space=smem, size = 0x4, offset = 0x4, fixed_abs, tag = 'smem constant byte address 0x4 - core index']
  #allocation1 [shape = 'u32[144,128]{1,0:T(1,128)}', space=vmem, size = 0x12000, scoped, tag = 'internal scratch']
  #allocation2 [shape = 'f32[512,128]{1,0:T(8,128)}', space=vmem, size = 0x40000, scoped, tag = 'scratch operand']
  %s0 = inlined_call_operand.vmem [shape: bf16[512,512], index: 0, kind: input, shape index: {}]
  %s1 = inlined_call_operand.vmem [shape: bf16[512,128], index: 1, kind: input, shape index: {}]
  %s2 = inlined_call_operand.vmem [shape: f32[512,128], index: 2, kind: input, shape index: {}, may-alias: {2,3}]
  %s3 = inlined_call_operand.vmem [shape: f32[512,128], index: 3, kind: output, shape index: {}, may-alias: {2,3}]
  %s4 = sld [smem:[#allocation0]]
  $region30: #{rating_prediction_gnn_forward.5} parent=0
    _
  %s6 = ssub.s32 1, %s4
  %s7 = scalar_select 0, %s6, %s4
  // Predicated region
  $region2: #{rating_prediction_gnn_forward.5} parent=0 // pred_check
    _
  $region3: #{rating_prediction_gnn_forward.5} parent=0 // pred_check_branch
    %9 = sbr.rel (0) target = $region5
  $region4: #{rating_prediction_gnn_forward.5} parent=0 // pred_region
    _
  $region5: #{rating_prediction_gnn_forward.5} parent=0 // pred_fallthru
    _
  // Predicated region
  $region6: #{rating_prediction_gnn_forward.5} parent=0 // pred_check
    _
  $region7: #{rating_prediction_gnn_forward.5} parent=0 // pred_check_branch
    %11 = sbr.rel (0) target = $region9
  $region8: #{rating_prediction_gnn_forward.5} parent=0 // pred_region
    _
  $region9: #{rating_prediction_gnn_forward.5} parent=0 // pred_fallthru
    _
  // Predicated region
  $region10: #{rating_prediction_gnn_forward.5} parent=0 // pred_check
    _
  $region11: #{rating_prediction_gnn_forward.5} parent=0 // pred_check_branch
    %13 = sbr.rel (0) target = $region13
  $region12: #{rating_prediction_gnn_forward.5} parent=0 // pred_region
    _
  $region13: #{rating_prediction_gnn_forward.5} parent=0 // pred_fallthru
    _
  %p15 = scmp.eq.s32.totalorder 0, 0
  // Predicated region
  $region14: #{rating_prediction_gnn_forward.5} parent=0 // pred_check
    %p16 = pneg %p15
  $region15: #{rating_prediction_gnn_forward.5} parent=0 // pred_check_branch
    %18 = sbr.rel (%p16) target = $region17
  $region16: #{rating_prediction_gnn_forward.5} parent=0 // pred_region
    %19 = vst [vmem:[#allocation2] sm:$0xff] 0.0
    %20 = vst [vmem:[#allocation2 + $0x8] sm:$0xff] 0.0
    %21 = vst [vmem:[#allocation2 + $0x10] sm:$0xff] 0.0
    %22 = vst [vmem:[#allocation2 + $0x18] sm:$0xff] 0.0
    %23 = vst [vmem:[#allocation2 + $0x20] sm:$0xff] 0.0
    %24 = vst [vmem:[#allocation2 + $0x28] sm:$0xff] 0.0
    %25 = vst [vmem:[#allocation2 + $0x30] sm:$0xff] 0.0
    %26 = vst [vmem:[#allocation2 + $0x38] sm:$0xff] 0.0
    %27 = vst [vmem:[#allocation2 + $0x40] sm:$0xff] 0.0
    %28 = vst [vmem:[#allocation2 + $0x48] sm:$0xff] 0.0
    %29 = vst [vmem:[#allocation2 + $0x50] sm:$0xff] 0.0
    %30 = vst [vmem:[#allocation2 + $0x58] sm:$0xff] 0.0
    %31 = vst [vmem:[#allocation2 + $0x60] sm:$0xff] 0.0
    %32 = vst [vmem:[#allocation2 + $0x68] sm:$0xff] 0.0
    %33 = vst [vmem:[#allocation2 + $0x70] sm:$0xff] 0.0
    %34 = vst [vmem:[#allocation2 + $0x78] sm:$0xff] 0.0
    %35 = vst [vmem:[#allocation2 + $0x80] sm:$0xff] 0.0
    %36 = vst [vmem:[#allocation2 + $0x88] sm:$0xff] 0.0
    %37 = vst [vmem:[#allocation2 + $0x90] sm:$0xff] 0.0
    %38 = vst [vmem:[#allocation2 + $0x98] sm:$0xff] 0.0
    %39 = vst [vmem:[#allocation2 + $0xa0] sm:$0xff] 0.0
    %40 = vst [vmem:[#allocation2 + $0xa8] sm:$0xff] 0.0
    %41 = vst [vmem:[#allocation2 + $0xb0] sm:$0xff] 0.0
    %42 = vst [vmem:[#allocation2 + $0xb8] sm:$0xff] 0.0
    %43 = vst [vmem:[#allocation2 + $0xc0] sm:$0xff] 0.0
    %44 = vst [vmem:[#allocation2 + $0xc8] sm:$0xff] 0.0
    %45 = vst [vmem:[#allocation2 + $0xd0] sm:$0xff] 0.0
    %46 = vst [vmem:[#allocation2 + $0xd8] sm:$0xff] 0.0
    %47 = vst [vmem:[#allocation2 + $0xe0] sm:$0xff] 0.0
    %48 = vst [vmem:[#allocation2 + $0xe8] sm:$0xff] 0.0
    %49 = vst [vmem:[#allocation2 + $0xf0] sm:$0xff] 0.0
    %50 = vst [vmem:[#allocation2 + $0xf8] sm:$0xff] 0.0
    %51 = vst [vmem:[#allocation2 + $0x100] sm:$0xff] 0.0
    %52 = vst [vmem:[#allocation2 + $0x108] sm:$0xff] 0.0
    %53 = vst [vmem:[#allocation2 + $0x110] sm:$0xff] 0.0
    %54 = vst [vmem:[#allocation2 + $0x118] sm:$0xff] 0.0
    %55 = vst [vmem:[#allocation2 + $0x120] sm:$0xff] 0.0
    %56 = vst [vmem:[#allocation2 + $0x128] sm:$0xff] 0.0
    %57 = vst [vmem:[#allocation2 + $0x130] sm:$0xff] 0.0
    %58 = vst [vmem:[#allocation2 + $0x138] sm:$0xff] 0.0
    %59 = vst [vmem:[#allocation2 + $0x140] sm:$0xff] 0.0
    %60 = vst [vmem:[#allocation2 + $0x148] sm:$0xff] 0.0
    %61 = vst [vmem:[#allocation2 + $0x150] sm:$0xff] 0.0
    %62 = vst [vmem:[#allocation2 + $0x158] sm:$0xff] 0.0
    %63 = vst [vmem:[#allocation2 + $0x160] sm:$0xff] 0.0
    %64 = vst [vmem:[#allocation2 + $0x168] sm:$0xff] 0.0
    %65 = vst [vmem:[#allocation2 + $0x170] sm:$0xff] 0.0
    %66 = vst [vmem:[#allocation2 + $0x178] sm:$0xff] 0.0
    %67 = vst [vmem:[#allocation2 + $0x180] sm:$0xff] 0.0
    %68 = vst [vmem:[#allocation2 + $0x188] sm:$0xff] 0.0
    %69 = vst [vmem:[#allocation2 + $0x190] sm:$0xff] 0.0
    %70 = vst [vmem:[#allocation2 + $0x198] sm:$0xff] 0.0
    %71 = vst [vmem:[#allocation2 + $0x1a0] sm:$0xff] 0.0
    %72 = vst [vmem:[#allocation2 + $0x1a8] sm:$0xff] 0.0
    %73 = vst [vmem:[#allocation2 + $0x1b0] sm:$0xff] 0.0
    %74 = vst [vmem:[#allocation2 + $0x1b8] sm:$0xff] 0.0
    %75 = vst [vmem:[#allocation2 + $0x1c0] sm:$0xff] 0.0
    %76 = vst [vmem:[#allocation2 + $0x1c8] sm:$0xff] 0.0
    %77 = vst [vmem:[#allocation2 + $0x1d0] sm:$0xff] 0.0
    %78 = vst [vmem:[#allocation2 + $0x1d8] sm:$0xff] 0.0
    %79 = vst [vmem:[#allocation2 + $0x1e0] sm:$0xff] 0.0
    %80 = vst [vmem:[#allocation2 + $0x1e8] sm:$0xff] 0.0
    %81 = vst [vmem:[#allocation2 + $0x1f0] sm:$0xff] 0.0
    %82 = vst [vmem:[#allocation2 + $0x1f8] sm:$0xff] 0.0
  $region17: #{rating_prediction_gnn_forward.5} parent=0 // pred_fallthru
    _
  %s83 = smul.u32 0, 512
  %s84 = sshra.s32 %s83, 3
  %s85 = sand.u32 %s83, 7
  %s86 = smul.addr %s84, 4
  %s87 = scalar_lea.vmem %s1, %s86
  %v88 = vld [vmem:[%s87] sm:$0xf]
  %v89 = vld [vmem:[%s87 + $0x4] sm:$0xf]
  %v90 = vld [vmem:[%s87 + $0x8] sm:$0xf]
  %v91 = vld [vmem:[%s87 + $0xc] sm:$0xf]
  %v92 = vld [vmem:[%s87 + $0x10] sm:$0xf]
  %v93 = vld [vmem:[%s87 + $0x14] sm:$0xf]
  %v94 = vld [vmem:[%s87 + $0x18] sm:$0xf]
  %v95 = vld [vmem:[%s87 + $0x1c] sm:$0xf]
  %v96 = vld [vmem:[%s87 + $0x20] sm:$0xf]
  %v97 = vld [vmem:[%s87 + $0x24] sm:$0xf]
  %v98 = vld [vmem:[%s87 + $0x28] sm:$0xf]
  %v99 = vld [vmem:[%s87 + $0x2c] sm:$0xf]
  %v100 = vld [vmem:[%s87 + $0x30] sm:$0xf]
  %v101 = vld [vmem:[%s87 + $0x34] sm:$0xf]
  %v102 = vld [vmem:[%s87 + $0x38] sm:$0xf]
  %v103 = vld [vmem:[%s87 + $0x3c] sm:$0xf]
  %v104 = vld [vmem:[%s87 + $0x40] sm:$0xf]
  %v105 = vld [vmem:[%s87 + $0x44] sm:$0xf]
  %v106 = vld [vmem:[%s87 + $0x48] sm:$0xf]
  %v107 = vld [vmem:[%s87 + $0x4c] sm:$0xf]
  %v108 = vld [vmem:[%s87 + $0x50] sm:$0xf]
  %v109 = vld [vmem:[%s87 + $0x54] sm:$0xf]
  %v110 = vld [vmem:[%s87 + $0x58] sm:$0xf]
  %v111 = vld [vmem:[%s87 + $0x5c] sm:$0xf]
  %v112 = vld [vmem:[%s87 + $0x60] sm:$0xf]
  %v113 = vld [vmem:[%s87 + $0x64] sm:$0xf]
  %v114 = vld [vmem:[%s87 + $0x68] sm:$0xf]
  %v115 = vld [vmem:[%s87 + $0x6c] sm:$0xf]
  %v116 = vld [vmem:[%s87 + $0x70] sm:$0xf]
  %v117 = vld [vmem:[%s87 + $0x74] sm:$0xf]
  %v118 = vld [vmem:[%s87 + $0x78] sm:$0xf]
  %v119 = vld [vmem:[%s87 + $0x7c] sm:$0xf]
  %v120 = vld [vmem:[%s87 + $0x80] sm:$0xf]
  %v121 = vld [vmem:[%s87 + $0x84] sm:$0xf]
  %v122 = vld [vmem:[%s87 + $0x88] sm:$0xf]
  %v123 = vld [vmem:[%s87 + $0x8c] sm:$0xf]
  %v124 = vld [vmem:[%s87 + $0x90] sm:$0xf]
  %v125 = vld [vmem:[%s87 + $0x94] sm:$0xf]
  %v126 = vld [vmem:[%s87 + $0x98] sm:$0xf]
  %v127 = vld [vmem:[%s87 + $0x9c] sm:$0xf]
  %v128 = vld [vmem:[%s87 + $0xa0] sm:$0xf]
  %v129 = vld [vmem:[%s87 + $0xa4] sm:$0xf]
  %v130 = vld [vmem:[%s87 + $0xa8] sm:$0xf]
  %v131 = vld [vmem:[%s87 + $0xac] sm:$0xf]
  %v132 = vld [vmem:[%s87 + $0xb0] sm:$0xf]
  %v133 = vld [vmem:[%s87 + $0xb4] sm:$0xf]
  %v134 = vld [vmem:[%s87 + $0xb8] sm:$0xf]
  %v135 = vld [vmem:[%s87 + $0xbc] sm:$0xf]
  %v136 = vld [vmem:[%s87 + $0xc0] sm:$0xf]
  %v137 = vld [vmem:[%s87 + $0xc4] sm:$0xf]
  %v138 = vld [vmem:[%s87 + $0xc8] sm:$0xf]
  %v139 = vld [vmem:[%s87 + $0xcc] sm:$0xf]
  %v140 = vld [vmem:[%s87 + $0xd0] sm:$0xf]
  %v141 = vld [vmem:[%s87 + $0xd4] sm:$0xf]
  %v142 = vld [vmem:[%s87 + $0xd8] sm:$0xf]
  %v143 = vld [vmem:[%s87 + $0xdc] sm:$0xf]
  %v144 = vld [vmem:[%s87 + $0xe0] sm:$0xf]
  %v145 = vld [vmem:[%s87 + $0xe4] sm:$0xf]
  %v146 = vld [vmem:[%s87 + $0xe8] sm:$0xf]
  %v147 = vld [vmem:[%s87 + $0xec] sm:$0xf]
  %v148 = vld [vmem:[%s87 + $0xf0] sm:$0xf]
  %v149 = vld [vmem:[%s87 + $0xf4] sm:$0xf]
  %v150 = vld [vmem:[%s87 + $0xf8] sm:$0xf]
  %v151 = vld [vmem:[%s87 + $0xfc] sm:$0xf]
  %v152 = vld [vmem:[#allocation2] sm:$0xff]
  %v153 = vld [vmem:[#allocation2 + $0x8] sm:$0xff]
  %v154 = vld [vmem:[#allocation2 + $0x10] sm:$0xff]
  %v155 = vld [vmem:[#allocation2 + $0x18] sm:$0xff]
  %v156 = vld [vmem:[#allocation2 + $0x20] sm:$0xff]
  %v157 = vld [vmem:[#allocation2 + $0x28] sm:$0xff]
  %v158 = vld [vmem:[#allocation2 + $0x30] sm:$0xff]
  %v159 = vld [vmem:[#allocation2 + $0x38] sm:$0xff]
  %v160 = vld [vmem:[#allocation2 + $0x40] sm:$0xff]
  %v161 = vld [vmem:[#allocation2 + $0x48] sm:$0xff]
  %v162 = vld [vmem:[#allocation2 + $0x50] sm:$0xff]
  %v163 = vld [vmem:[#allocation2 + $0x58] sm:$0xff]
  %v164 = vld [vmem:[#allocation2 + $0x60] sm:$0xff]
  %v165 = vld [vmem:[#allocation2 + $0x68] sm:$0xff]
  %v166 = vld [vmem:[#allocation2 + $0x70] sm:$0xff]
  %v167 = vld [vmem:[#allocation2 + $0x78] sm:$0xff]
  %v168 = vld [vmem:[#allocation2 + $0x80] sm:$0xff]
  %v169 = vld [vmem:[#allocation2 + $0x88] sm:$0xff]
  %v170 = vld [vmem:[#allocation2 + $0x90] sm:$0xff]
  %v171 = vld [vmem:[#allocation2 + $0x98] sm:$0xff]
  %v172 = vld [vmem:[#allocation2 + $0xa0] sm:$0xff]
  %v173 = vld [vmem:[#allocation2 + $0xa8] sm:$0xff]
  %v174 = vld [vmem:[#allocation2 + $0xb0] sm:$0xff]
  %v175 = vld [vmem:[#allocation2 + $0xb8] sm:$0xff]
  %v176 = vld [vmem:[#allocation2 + $0xc0] sm:$0xff]
  %v177 = vld [vmem:[#allocation2 + $0xc8] sm:$0xff]
  %v178 = vld [vmem:[#allocation2 + $0xd0] sm:$0xff]
  %v179 = vld [vmem:[#allocation2 + $0xd8] sm:$0xff]
  %v180 = vld [vmem:[#allocation2 + $0xe0] sm:$0xff]
  %v181 = vld [vmem:[#allocation2 + $0xe8] sm:$0xff]
  %v182 = vld [vmem:[#allocation2 + $0xf0] sm:$0xff]
  %v183 = vld [vmem:[#allocation2 + $0xf8] sm:$0xff]
  %v184 = vld [vmem:[#allocation2 + $0x100] sm:$0xff]
  %v185 = vld [vmem:[#allocation2 + $0x108] sm:$0xff]
  %v186 = vld [vmem:[#allocation2 + $0x110] sm:$0xff]
  %v187 = vld [vmem:[#allocation2 + $0x118] sm:$0xff]
  %v188 = vld [vmem:[#allocation2 + $0x120] sm:$0xff]
  %v189 = vld [vmem:[#allocation2 + $0x128] sm:$0xff]
  %v190 = vld [vmem:[#allocation2 + $0x130] sm:$0xff]
  %v191 = vld [vmem:[#allocation2 + $0x138] sm:$0xff]
  %v192 = vld [vmem:[#allocation2 + $0x140] sm:$0xff]
  %v193 = vld [vmem:[#allocation2 + $0x148] sm:$0xff]
  %v194 = vld [vmem:[#allocation2 + $0x150] sm:$0xff]
  %v195 = vld [vmem:[#allocation2 + $0x158] sm:$0xff]
  %v196 = vld [vmem:[#allocation2 + $0x160] sm:$0xff]
  %v197 = vld [vmem:[#allocation2 + $0x168] sm:$0xff]
  %v198 = vld [vmem:[#allocation2 + $0x170] sm:$0xff]
  %v199 = vld [vmem:[#allocation2 + $0x178] sm:$0xff]
  %v200 = vld [vmem:[#allocation2 + $0x180] sm:$0xff]
  %v201 = vld [vmem:[#allocation2 + $0x188] sm:$0xff]
  %v202 = vld [vmem:[#allocation2 + $0x190] sm:$0xff]
  %v203 = vld [vmem:[#allocation2 + $0x198] sm:$0xff]
  %v204 = vld [vmem:[#allocation2 + $0x1a0] sm:$0xff]
  %v205 = vld [vmem:[#allocation2 + $0x1a8] sm:$0xff]
  %v206 = vld [vmem:[#allocation2 + $0x1b0] sm:$0xff]
  %v207 = vld [vmem:[#allocation2 + $0x1b8] sm:$0xff]
  %v208 = vld [vmem:[#allocation2 + $0x1c0] sm:$0xff]
  %v209 = vld [vmem:[#allocation2 + $0x1c8] sm:$0xff]
  %v210 = vld [vmem:[#allocation2 + $0x1d0] sm:$0xff]
  %v211 = vld [vmem:[#allocation2 + $0x1d8] sm:$0xff]
  %v212 = vld [vmem:[#allocation2 + $0x1e0] sm:$0xff]
  %v213 = vld [vmem:[#allocation2 + $0x1e8] sm:$0xff]
  %v214 = vld [vmem:[#allocation2 + $0x1f0] sm:$0xff]
  %v215 = vld [vmem:[#allocation2 + $0x1f8] sm:$0xff]
  %v216 = vld [vmem:[%s0] sm:$0xff]
  %v217 = vld [vmem:[%s0 + $0x8] sm:$0xff]
  %v218 = vld [vmem:[%s0 + $0x10] sm:$0xff]
  %v219 = vld [vmem:[%s0 + $0x18] sm:$0xff]
  %v220 = vld [vmem:[%s0 + $0x20] sm:$0xff]
  %v221 = vld [vmem:[%s0 + $0x28] sm:$0xff]
  %v222 = vld [vmem:[%s0 + $0x30] sm:$0xff]
  %v223 = vld [vmem:[%s0 + $0x38] sm:$0xff]
  %v224 = vld [vmem:[%s0 + $0x40] sm:$0xff]
  %v225 = vld [vmem:[%s0 + $0x48] sm:$0xff]
  %v226 = vld [vmem:[%s0 + $0x50] sm:$0xff]
  %v227 = vld [vmem:[%s0 + $0x58] sm:$0xff]
  %v228 = vld [vmem:[%s0 + $0x60] sm:$0xff]
  %v229 = vld [vmem:[%s0 + $0x68] sm:$0xff]
  %v230 = vld [vmem:[%s0 + $0x70] sm:$0xff]
  %v231 = vld [vmem:[%s0 + $0x78] sm:$0xff]
  %v232 = vld [vmem:[%s0 + $0x80] sm:$0xff]
  %v233 = vld [vmem:[%s0 + $0x88] sm:$0xff]
  %v234 = vld [vmem:[%s0 + $0x90] sm:$0xff]
  %v235 = vld [vmem:[%s0 + $0x98] sm:$0xff]
  %v236 = vld [vmem:[%s0 + $0xa0] sm:$0xff]
  %v237 = vld [vmem:[%s0 + $0xa8] sm:$0xff]
  %v238 = vld [vmem:[%s0 + $0xb0] sm:$0xff]
  %v239 = vld [vmem:[%s0 + $0xb8] sm:$0xff]
  %v240 = vld [vmem:[%s0 + $0xc0] sm:$0xff]
  %v241 = vld [vmem:[%s0 + $0xc8] sm:$0xff]
  %v242 = vld [vmem:[%s0 + $0xd0] sm:$0xff]
  %v243 = vld [vmem:[%s0 + $0xd8] sm:$0xff]
  %v244 = vld [vmem:[%s0 + $0xe0] sm:$0xff]
  %v245 = vld [vmem:[%s0 + $0xe8] sm:$0xff]
  %v246 = vld [vmem:[%s0 + $0xf0] sm:$0xff]
  %v247 = vld [vmem:[%s0 + $0xf8] sm:$0xff]
  %v248 = vld [vmem:[%s0 + $0x100] sm:$0xff]
  %v249 = vld [vmem:[%s0 + $0x108] sm:$0xff]
  %v250 = vld [vmem:[%s0 + $0x110] sm:$0xff]
  %v251 = vld [vmem:[%s0 + $0x118] sm:$0xff]
  %v252 = vld [vmem:[%s0 + $0x120] sm:$0xff]
  %v253 = vld [vmem:[%s0 + $0x128] sm:$0xff]
  %v254 = vld [vmem:[%s0 + $0x130] sm:$0xff]
  %v255 = vld [vmem:[%s0 + $0x138] sm:$0xff]
  %v256 = vld [vmem:[%s0 + $0x140] sm:$0xff]
  %v257 = vld [vmem:[%s0 + $0x148] sm:$0xff]
  %v258 = vld [vmem:[%s0 + $0x150] sm:$0xff]
  %v259 = vld [vmem:[%s0 + $0x158] sm:$0xff]
  %v260 = vld [vmem:[%s0 + $0x160] sm:$0xff]
  %v261 = vld [vmem:[%s0 + $0x168] sm:$0xff]
  %v262 = vld [vmem:[%s0 + $0x170] sm:$0xff]
  %v263 = vld [vmem:[%s0 + $0x178] sm:$0xff]
  %v264 = vld [vmem:[%s0 + $0x180] sm:$0xff]
  %v265 = vld [vmem:[%s0 + $0x188] sm:$0xff]
  %v266 = vld [vmem:[%s0 + $0x190] sm:$0xff]
  %v267 = vld [vmem:[%s0 + $0x198] sm:$0xff]
  %v268 = vld [vmem:[%s0 + $0x1a0] sm:$0xff]
  %v269 = vld [vmem:[%s0 + $0x1a8] sm:$0xff]
  %v270 = vld [vmem:[%s0 + $0x1b0] sm:$0xff]
  %v271 = vld [vmem:[%s0 + $0x1b8] sm:$0xff]
  %v272 = vld [vmem:[%s0 + $0x1c0] sm:$0xff]
  %v273 = vld [vmem:[%s0 + $0x1c8] sm:$0xff]
  %v274 = vld [vmem:[%s0 + $0x1d0] sm:$0xff]
  %v275 = vld [vmem:[%s0 + $0x1d8] sm:$0xff]
  %v276 = vld [vmem:[%s0 + $0x1e0] sm:$0xff]
  %v277 = vld [vmem:[%s0 + $0x1e8] sm:$0xff]
  %v278 = vld [vmem:[%s0 + $0x1f0] sm:$0xff]
  %v279 = vld [vmem:[%s0 + $0x1f8] sm:$0xff]
  %v280 = vld [vmem:[%s0 + $0x200] sm:$0xff]
  %v281 = vld [vmem:[%s0 + $0x208] sm:$0xff]
  %v282 = vld [vmem:[%s0 + $0x210] sm:$0xff]
  %v283 = vld [vmem:[%s0 + $0x218] sm:$0xff]
  %v284 = vld [vmem:[%s0 + $0x220] sm:$0xff]
  %v285 = vld [vmem:[%s0 + $0x228] sm:$0xff]
  %v286 = vld [vmem:[%s0 + $0x230] sm:$0xff]
  %v287 = vld [vmem:[%s0 + $0x238] sm:$0xff]
  %v288 = vld [vmem:[%s0 + $0x240] sm:$0xff]
  %v289 = vld [vmem:[%s0 + $0x248] sm:$0xff]
  %v290 = vld [vmem:[%s0 + $0x250] sm:$0xff]
  %v291 = vld [vmem:[%s0 + $0x258] sm:$0xff]
  %v292 = vld [vmem:[%s0 + $0x260] sm:$0xff]
  %v293 = vld [vmem:[%s0 + $0x268] sm:$0xff]
  %v294 = vld [vmem:[%s0 + $0x270] sm:$0xff]
  %v295 = vld [vmem:[%s0 + $0x278] sm:$0xff]
  %v296 = vld [vmem:[%s0 + $0x280] sm:$0xff]
  %v297 = vld [vmem:[%s0 + $0x288] sm:$0xff]
  %v298 = vld [vmem:[%s0 + $0x290] sm:$0xff]
  %v299 = vld [vmem:[%s0 + $0x298] sm:$0xff]
  %v300 = vld [vmem:[%s0 + $0x2a0] sm:$0xff]
  %v301 = vld [vmem:[%s0 + $0x2a8] sm:$0xff]
  %v302 = vld [vmem:[%s0 + $0x2b0] sm:$0xff]
  %v303 = vld [vmem:[%s0 + $0x2b8] sm:$0xff]
  %v304 = vld [vmem:[%s0 + $0x2c0] sm:$0xff]
  %v305 = vld [vmem:[%s0 + $0x2c8] sm:$0xff]
  %v306 = vld [vmem:[%s0 + $0x2d0] sm:$0xff]
  %v307 = vld [vmem:[%s0 + $0x2d8] sm:$0xff]
  %v308 = vld [vmem:[%s0 + $0x2e0] sm:$0xff]
  %v309 = vld [vmem:[%s0 + $0x2e8] sm:$0xff]
  %v310 = vld [vmem:[%s0 + $0x2f0] sm:$0xff]
  %v311 = vld [vmem:[%s0 + $0x2f8] sm:$0xff]
  %v312 = vld [vmem:[%s0 + $0x300] sm:$0xff]
  %v313 = vld [vmem:[%s0 + $0x308] sm:$0xff]
  %v314 = vld [vmem:[%s0 + $0x310] sm:$0xff]
  %v315 = vld [vmem:[%s0 + $0x318] sm:$0xff]
  %v316 = vld [vmem:[%s0 + $0x320] sm:$0xff]
  %v317 = vld [vmem:[%s0 + $0x328] sm:$0xff]
  %v318 = vld [vmem:[%s0 + $0x330] sm:$0xff]
  %v319 = vld [vmem:[%s0 + $0x338] sm:$0xff]
  %v320 = vld [vmem:[%s0 + $0x340] sm:$0xff]
  %v321 = vld [vmem:[%s0 + $0x348] sm:$0xff]
  %v322 = vld [vmem:[%s0 + $0x350] sm:$0xff]
  %v323 = vld [vmem:[%s0 + $0x358] sm:$0xff]
  %v324 = vld [vmem:[%s0 + $0x360] sm:$0xff]
  %v325 = vld [vmem:[%s0 + $0x368] sm:$0xff]
  %v326 = vld [vmem:[%s0 + $0x370] sm:$0xff]
  %v327 = vld [vmem:[%s0 + $0x378] sm:$0xff]
  %v328 = vld [vmem:[%s0 + $0x380] sm:$0xff]
  %v329 = vld [vmem:[%s0 + $0x388] sm:$0xff]
  %v330 = vld [vmem:[%s0 + $0x390] sm:$0xff]
  %v331 = vld [vmem:[%s0 + $0x398] sm:$0xff]
  %v332 = vld [vmem:[%s0 + $0x3a0] sm:$0xff]
  %v333 = vld [vmem:[%s0 + $0x3a8] sm:$0xff]
  %v334 = vld [vmem:[%s0 + $0x3b0] sm:$0xff]
  %v335 = vld [vmem:[%s0 + $0x3b8] sm:$0xff]
  %v336 = vld [vmem:[%s0 + $0x3c0] sm:$0xff]
  %v337 = vld [vmem:[%s0 + $0x3c8] sm:$0xff]
  %v338 = vld [vmem:[%s0 + $0x3d0] sm:$0xff]
  %v339 = vld [vmem:[%s0 + $0x3d8] sm:$0xff]
  %v340 = vld [vmem:[%s0 + $0x3e0] sm:$0xff]
  %v341 = vld [vmem:[%s0 + $0x3e8] sm:$0xff]
  %v342 = vld [vmem:[%s0 + $0x3f0] sm:$0xff]
  %v343 = vld [vmem:[%s0 + $0x3f8] sm:$0xff]
  %v472 = vunpack.c.l.b16 %v216
  %v473 = vunpack.c.h.b16 %v216
  %v474 = vunpack.c.l.b16 %v217
  %v475 = vunpack.c.h.b16 %v217
  %v476 = vunpack.c.l.b16 %v218
  %v477 = vunpack.c.h.b16 %v218
  %v478 = vunpack.c.l.b16 %v219
  %v479 = vunpack.c.h.b16 %v219
  %v480 = vunpack.c.l.b16 %v220
  %v481 = vunpack.c.h.b16 %v220
  %v482 = vunpack.c.l.b16 %v221
  %v483 = vunpack.c.h.b16 %v221
  %v484 = vunpack.c.l.b16 %v222
  %v485 = vunpack.c.h.b16 %v222
  %v486 = vunpack.c.l.b16 %v223
  %v487 = vunpack.c.h.b16 %v223
  %v488 = vunpack.c.l.b16 %v224
  %v489 = vunpack.c.h.b16 %v224
  %v490 = vunpack.c.l.b16 %v225
  %v491 = vunpack.c.h.b16 %v225
  %v492 = vunpack.c.l.b16 %v226
  %v493 = vunpack.c.h.b16 %v226
  %v494 = vunpack.c.l.b16 %v227
  %v495 = vunpack.c.h.b16 %v227
  %v496 = vunpack.c.l.b16 %v228
  %v497 = vunpack.c.h.b16 %v228
  %v498 = vunpack.c.l.b16 %v229
  %v499 = vunpack.c.h.b16 %v229
  %v500 = vunpack.c.l.b16 %v230
  %v501 = vunpack.c.h.b16 %v230
  %v502 = vunpack.c.l.b16 %v231
  %v503 = vunpack.c.h.b16 %v231
  %v504 = vunpack.c.l.b16 %v232
  %v505 = vunpack.c.h.b16 %v232
  %v506 = vunpack.c.l.b16 %v233
  %v507 = vunpack.c.h.b16 %v233
  %v508 = vunpack.c.l.b16 %v234
  %v509 = vunpack.c.h.b16 %v234
  %v510 = vunpack.c.l.b16 %v235
  %v511 = vunpack.c.h.b16 %v235
  %v512 = vunpack.c.l.b16 %v236
  %v513 = vunpack.c.h.b16 %v236
  %v514 = vunpack.c.l.b16 %v237
  %v515 = vunpack.c.h.b16 %v237
  %v516 = vunpack.c.l.b16 %v238
  %v517 = vunpack.c.h.b16 %v238
  %v518 = vunpack.c.l.b16 %v239
  %v519 = vunpack.c.h.b16 %v239
  %v520 = vunpack.c.l.b16 %v240
  %v521 = vunpack.c.h.b16 %v240
  %v522 = vunpack.c.l.b16 %v241
  %v523 = vunpack.c.h.b16 %v241
  %v524 = vunpack.c.l.b16 %v242
  %v525 = vunpack.c.h.b16 %v242
  %v526 = vunpack.c.l.b16 %v243
  %v527 = vunpack.c.h.b16 %v243
  %v528 = vunpack.c.l.b16 %v244
  %v529 = vunpack.c.h.b16 %v244
  %v530 = vunpack.c.l.b16 %v245
  %v531 = vunpack.c.h.b16 %v245
  %v532 = vunpack.c.l.b16 %v246
  %v533 = vunpack.c.h.b16 %v246
  %v534 = vunpack.c.l.b16 %v247
  %v535 = vunpack.c.h.b16 %v247
  %v536 = vunpack.c.l.b16 %v248
  %v537 = vunpack.c.h.b16 %v248
  %v538 = vunpack.c.l.b16 %v249
  %v539 = vunpack.c.h.b16 %v249
  %v540 = vunpack.c.l.b16 %v250
  %v541 = vunpack.c.h.b16 %v250
  %v542 = vunpack.c.l.b16 %v251
  %v543 = vunpack.c.h.b16 %v251
  %v544 = vunpack.c.l.b16 %v252
  %v545 = vunpack.c.h.b16 %v252
  %v546 = vunpack.c.l.b16 %v253
  %v547 = vunpack.c.h.b16 %v253
  %v548 = vunpack.c.l.b16 %v254
  %v549 = vunpack.c.h.b16 %v254
  %v550 = vunpack.c.l.b16 %v255
  %v551 = vunpack.c.h.b16 %v255
  %v552 = vunpack.c.l.b16 %v256
  %v553 = vunpack.c.h.b16 %v256
  %v554 = vunpack.c.l.b16 %v257
  %v555 = vunpack.c.h.b16 %v257
  %v556 = vunpack.c.l.b16 %v258
  %v557 = vunpack.c.h.b16 %v258
  %v558 = vunpack.c.l.b16 %v259
  %v559 = vunpack.c.h.b16 %v259
  %v560 = vunpack.c.l.b16 %v260
  %v561 = vunpack.c.h.b16 %v260
  %v562 = vunpack.c.l.b16 %v261
  %v563 = vunpack.c.h.b16 %v261
  %v564 = vunpack.c.l.b16 %v262
  %v565 = vunpack.c.h.b16 %v262
  %v566 = vunpack.c.l.b16 %v263
  %v567 = vunpack.c.h.b16 %v263
  %v568 = vunpack.c.l.b16 %v264
  %v569 = vunpack.c.h.b16 %v264
  %v570 = vunpack.c.l.b16 %v265
  %v571 = vunpack.c.h.b16 %v265
  %v572 = vunpack.c.l.b16 %v266
  %v573 = vunpack.c.h.b16 %v266
  %v574 = vunpack.c.l.b16 %v267
  %v575 = vunpack.c.h.b16 %v267
  %v576 = vunpack.c.l.b16 %v268
  %v577 = vunpack.c.h.b16 %v268
  %v578 = vunpack.c.l.b16 %v269
  %v579 = vunpack.c.h.b16 %v269
  %v580 = vunpack.c.l.b16 %v270
  %v581 = vunpack.c.h.b16 %v270
  %v582 = vunpack.c.l.b16 %v271
  %v583 = vunpack.c.h.b16 %v271
  %v584 = vunpack.c.l.b16 %v272
  %v585 = vunpack.c.h.b16 %v272
  %v586 = vunpack.c.l.b16 %v273
  %v587 = vunpack.c.h.b16 %v273
  %v588 = vunpack.c.l.b16 %v274
  %v589 = vunpack.c.h.b16 %v274
  %v590 = vunpack.c.l.b16 %v275
  %v591 = vunpack.c.h.b16 %v275
  %v592 = vunpack.c.l.b16 %v276
  %v593 = vunpack.c.h.b16 %v276
  %v594 = vunpack.c.l.b16 %v277
  %v595 = vunpack.c.h.b16 %v277
  %v596 = vunpack.c.l.b16 %v278
  %v597 = vunpack.c.h.b16 %v278
  %v598 = vunpack.c.l.b16 %v279
  %v599 = vunpack.c.h.b16 %v279
  %v600 = vunpack.c.l.b16 %v280
  %v601 = vunpack.c.h.b16 %v280
  %v602 = vunpack.c.l.b16 %v281
  %v603 = vunpack.c.h.b16 %v281
  %v604 = vunpack.c.l.b16 %v282
  %v605 = vunpack.c.h.b16 %v282
  %v606 = vunpack.c.l.b16 %v283
  %v607 = vunpack.c.h.b16 %v283
  %v608 = vunpack.c.l.b16 %v284
  %v609 = vunpack.c.h.b16 %v284
  %v610 = vunpack.c.l.b16 %v285
  %v611 = vunpack.c.h.b16 %v285
  %v612 = vunpack.c.l.b16 %v286
  %v613 = vunpack.c.h.b16 %v286
  %v614 = vunpack.c.l.b16 %v287
  %v615 = vunpack.c.h.b16 %v287
  %v616 = vunpack.c.l.b16 %v288
  %v617 = vunpack.c.h.b16 %v288
  %v618 = vunpack.c.l.b16 %v289
  %v619 = vunpack.c.h.b16 %v289
  %v620 = vunpack.c.l.b16 %v290
  %v621 = vunpack.c.h.b16 %v290
  %v622 = vunpack.c.l.b16 %v291
  %v623 = vunpack.c.h.b16 %v291
  %v624 = vunpack.c.l.b16 %v292
  %v625 = vunpack.c.h.b16 %v292
  %v626 = vunpack.c.l.b16 %v293
  %v627 = vunpack.c.h.b16 %v293
  %v628 = vunpack.c.l.b16 %v294
  %v629 = vunpack.c.h.b16 %v294
  %v630 = vunpack.c.l.b16 %v295
  %v631 = vunpack.c.h.b16 %v295
  %v632 = vunpack.c.l.b16 %v296
  %v633 = vunpack.c.h.b16 %v296
  %v634 = vunpack.c.l.b16 %v297
  %v635 = vunpack.c.h.b16 %v297
  %v636 = vunpack.c.l.b16 %v298
  %v637 = vunpack.c.h.b16 %v298
  %v638 = vunpack.c.l.b16 %v299
  %v639 = vunpack.c.h.b16 %v299
  %v640 = vunpack.c.l.b16 %v300
  %v641 = vunpack.c.h.b16 %v300
  %v642 = vunpack.c.l.b16 %v301
  %v643 = vunpack.c.h.b16 %v301
  %v644 = vunpack.c.l.b16 %v302
  %v645 = vunpack.c.h.b16 %v302
  %v646 = vunpack.c.l.b16 %v303
  %v647 = vunpack.c.h.b16 %v303
  %v648 = vunpack.c.l.b16 %v304
  %v649 = vunpack.c.h.b16 %v304
  %v650 = vunpack.c.l.b16 %v305
  %v651 = vunpack.c.h.b16 %v305
  %v652 = vunpack.c.l.b16 %v306
  %v653 = vunpack.c.h.b16 %v306
  %v654 = vunpack.c.l.b16 %v307
  %v655 = vunpack.c.h.b16 %v307
  %v656 = vunpack.c.l.b16 %v308
  %v657 = vunpack.c.h.b16 %v308
  %v658 = vunpack.c.l.b16 %v309
  %v659 = vunpack.c.h.b16 %v309
  %v660 = vunpack.c.l.b16 %v310
  %v661 = vunpack.c.h.b16 %v310
  %v662 = vunpack.c.l.b16 %v311
  %v663 = vunpack.c.h.b16 %v311
  %v664 = vunpack.c.l.b16 %v312
  %v665 = vunpack.c.h.b16 %v312
  %v666 = vunpack.c.l.b16 %v313
  %v667 = vunpack.c.h.b16 %v313
  %v668 = vunpack.c.l.b16 %v314
  %v669 = vunpack.c.h.b16 %v314
  %v670 = vunpack.c.l.b16 %v315
  %v671 = vunpack.c.h.b16 %v315
  %v672 = vunpack.c.l.b16 %v316
  %v673 = vunpack.c.h.b16 %v316
  %v674 = vunpack.c.l.b16 %v317
  %v675 = vunpack.c.h.b16 %v317
  %v676 = vunpack.c.l.b16 %v318
  %v677 = vunpack.c.h.b16 %v318
  %v678 = vunpack.c.l.b16 %v319
  %v679 = vunpack.c.h.b16 %v319
  %v680 = vunpack.c.l.b16 %v320
  %v681 = vunpack.c.h.b16 %v320
  %v682 = vunpack.c.l.b16 %v321
  %v683 = vunpack.c.h.b16 %v321
  %v684 = vunpack.c.l.b16 %v322
  %v685 = vunpack.c.h.b16 %v322
  %v686 = vunpack.c.l.b16 %v323
  %v687 = vunpack.c.h.b16 %v323
  %v688 = vunpack.c.l.b16 %v324
  %v689 = vunpack.c.h.b16 %v324
  %v690 = vunpack.c.l.b16 %v325
  %v691 = vunpack.c.h.b16 %v325
  %v692 = vunpack.c.l.b16 %v326
  %v693 = vunpack.c.h.b16 %v326
  %v694 = vunpack.c.l.b16 %v327
  %v695 = vunpack.c.h.b16 %v327
  %v696 = vunpack.c.l.b16 %v328
  %v697 = vunpack.c.h.b16 %v328
  %v698 = vunpack.c.l.b16 %v329
  %v699 = vunpack.c.h.b16 %v329
  %v700 = vunpack.c.l.b16 %v330
  %v701 = vunpack.c.h.b16 %v330
  %v702 = vunpack.c.l.b16 %v331
  %v703 = vunpack.c.h.b16 %v331
  %v704 = vunpack.c.l.b16 %v332
  %v705 = vunpack.c.h.b16 %v332
  %v706 = vunpack.c.l.b16 %v333
  %v707 = vunpack.c.h.b16 %v333
  %v708 = vunpack.c.l.b16 %v334
  %v709 = vunpack.c.h.b16 %v334
  %v710 = vunpack.c.l.b16 %v335
  %v711 = vunpack.c.h.b16 %v335
  %v712 = vunpack.c.l.b16 %v336
  %v713 = vunpack.c.h.b16 %v336
  %v714 = vunpack.c.l.b16 %v337
  %v715 = vunpack.c.h.b16 %v337
  %v716 = vunpack.c.l.b16 %v338
  %v717 = vunpack.c.h.b16 %v338
  %v718 = vunpack.c.l.b16 %v339
  %v719 = vunpack.c.h.b16 %v339
  %v720 = vunpack.c.l.b16 %v340
  %v721 = vunpack.c.h.b16 %v340
  %v722 = vunpack.c.l.b16 %v341
  %v723 = vunpack.c.h.b16 %v341
  %v724 = vunpack.c.l.b16 %v342
  %v725 = vunpack.c.h.b16 %v342
  %v726 = vunpack.c.l.b16 %v343
  %v727 = vunpack.c.h.b16 %v343
  %v728 = vpack.c.b16 %v476, %v472
  %v729 = vpack.c.b16 %v477, %v473
  %v730 = vpack.c.b16 %v478, %v474
  %v731 = vpack.c.b16 %v479, %v475
  %v732 = vpack.c.b16 %v484, %v480
  %v733 = vpack.c.b16 %v485, %v481
  %v734 = vpack.c.b16 %v486, %v482
  %v735 = vpack.c.b16 %v487, %v483
  %v736 = vpack.c.b16 %v492, %v488
  %v737 = vpack.c.b16 %v493, %v489
  %v738 = vpack.c.b16 %v494, %v490
  %v739 = vpack.c.b16 %v495, %v491
  %v740 = vpack.c.b16 %v500, %v496
  %v741 = vpack.c.b16 %v501, %v497
  %v742 = vpack.c.b16 %v502, %v498
  %v743 = vpack.c.b16 %v503, %v499
  %v744 = vpack.c.b16 %v508, %v504
  %v745 = vpack.c.b16 %v509, %v505
  %v746 = vpack.c.b16 %v510, %v506
  %v747 = vpack.c.b16 %v511, %v507
  %v748 = vpack.c.b16 %v516, %v512
  %v749 = vpack.c.b16 %v517, %v513
  %v750 = vpack.c.b16 %v518, %v514
  %v751 = vpack.c.b16 %v519, %v515
  %v752 = vpack.c.b16 %v524, %v520
  %v753 = vpack.c.b16 %v525, %v521
  %v754 = vpack.c.b16 %v526, %v522
  %v755 = vpack.c.b16 %v527, %v523
  %v756 = vpack.c.b16 %v532, %v528
  %v757 = vpack.c.b16 %v533, %v529
  %v758 = vpack.c.b16 %v534, %v530
  %v759 = vpack.c.b16 %v535, %v531
  %v760 = vpack.c.b16 %v540, %v536
  %v761 = vpack.c.b16 %v541, %v537
  %v762 = vpack.c.b16 %v542, %v538
  %v763 = vpack.c.b16 %v543, %v539
  %v764 = vpack.c.b16 %v548, %v544
  %v765 = vpack.c.b16 %v549, %v545
  %v766 = vpack.c.b16 %v550, %v546
  %v767 = vpack.c.b16 %v551, %v547
  %v768 = vpack.c.b16 %v556, %v552
  %v769 = vpack.c.b16 %v557, %v553
  %v770 = vpack.c.b16 %v558, %v554
  %v771 = vpack.c.b16 %v559, %v555
  %v772 = vpack.c.b16 %v564, %v560
  %v773 = vpack.c.b16 %v565, %v561
  %v774 = vpack.c.b16 %v566, %v562
  %v775 = vpack.c.b16 %v567, %v563
  %v776 = vpack.c.b16 %v572, %v568
  %v777 = vpack.c.b16 %v573, %v569
  %v778 = vpack.c.b16 %v574, %v570
  %v779 = vpack.c.b16 %v575, %v571
  %v780 = vpack.c.b16 %v580, %v576
  %v781 = vpack.c.b16 %v581, %v577
  %v782 = vpack.c.b16 %v582, %v578
  %v783 = vpack.c.b16 %v583, %v579
  %v784 = vpack.c.b16 %v588, %v584
  %v785 = vpack.c.b16 %v589, %v585
  %v786 = vpack.c.b16 %v590, %v586
  %v787 = vpack.c.b16 %v591, %v587
  %v788 = vpack.c.b16 %v596, %v592
  %v789 = vpack.c.b16 %v597, %v593
  %v790 = vpack.c.b16 %v598, %v594
  %v791 = vpack.c.b16 %v599, %v595
  %v792 = vpack.c.b16 %v604, %v600
  %v793 = vpack.c.b16 %v605, %v601
  %v794 = vpack.c.b16 %v606, %v602
  %v795 = vpack.c.b16 %v607, %v603
  %v796 = vpack.c.b16 %v612, %v608
  %v797 = vpack.c.b16 %v613, %v609
  %v798 = vpack.c.b16 %v614, %v610
  %v799 = vpack.c.b16 %v615, %v611
  %v800 = vpack.c.b16 %v620, %v616
  %v801 = vpack.c.b16 %v621, %v617
  %v802 = vpack.c.b16 %v622, %v618
  %v803 = vpack.c.b16 %v623, %v619
  %v804 = vpack.c.b16 %v628, %v624
  %v805 = vpack.c.b16 %v629, %v625
  %v806 = vpack.c.b16 %v630, %v626
  %v807 = vpack.c.b16 %v631, %v627
  %v808 = vpack.c.b16 %v636, %v632
  %v809 = vpack.c.b16 %v637, %v633
  %v810 = vpack.c.b16 %v638, %v634
  %v811 = vpack.c.b16 %v639, %v635
  %v812 = vpack.c.b16 %v644, %v640
  %v813 = vpack.c.b16 %v645, %v641
  %v814 = vpack.c.b16 %v646, %v642
  %v815 = vpack.c.b16 %v647, %v643
  %v816 = vpack.c.b16 %v652, %v648
  %v817 = vpack.c.b16 %v653, %v649
  %v818 = vpack.c.b16 %v654, %v650
  %v819 = vpack.c.b16 %v655, %v651
  %v820 = vpack.c.b16 %v660, %v656
  %v821 = vpack.c.b16 %v661, %v657
  %v822 = vpack.c.b16 %v662, %v658
  %v823 = vpack.c.b16 %v663, %v659
  %v824 = vpack.c.b16 %v668, %v664
  %v825 = vpack.c.b16 %v669, %v665
  %v826 = vpack.c.b16 %v670, %v666
  %v827 = vpack.c.b16 %v671, %v667
  %v828 = vpack.c.b16 %v676, %v672
  %v829 = vpack.c.b16 %v677, %v673
  %v830 = vpack.c.b16 %v678, %v674
  %v831 = vpack.c.b16 %v679, %v675
  %v832 = vpack.c.b16 %v684, %v680
  %v833 = vpack.c.b16 %v685, %v681
  %v834 = vpack.c.b16 %v686, %v682
  %v835 = vpack.c.b16 %v687, %v683
  %v836 = vpack.c.b16 %v692, %v688
  %v837 = vpack.c.b16 %v693, %v689
  %v838 = vpack.c.b16 %v694, %v690
  %v839 = vpack.c.b16 %v695, %v691
  %v840 = vpack.c.b16 %v700, %v696
  %v841 = vpack.c.b16 %v701, %v697
  %v842 = vpack.c.b16 %v702, %v698
  %v843 = vpack.c.b16 %v703, %v699
  %v844 = vpack.c.b16 %v708, %v704
  %v845 = vpack.c.b16 %v709, %v705
  %v846 = vpack.c.b16 %v710, %v706
  %v847 = vpack.c.b16 %v711, %v707
  %v848 = vpack.c.b16 %v716, %v712
  %v849 = vpack.c.b16 %v717, %v713
  %v850 = vpack.c.b16 %v718, %v714
  %v851 = vpack.c.b16 %v719, %v715
  %v852 = vpack.c.b16 %v724, %v720
  %v853 = vpack.c.b16 %v725, %v721
  %v854 = vpack.c.b16 %v726, %v722
  %v855 = vpack.c.b16 %v727, %v723
  %v1048 = vunpack.c.l.b16 %v88
  %v1049 = vunpack.c.l.b16 %v89
  %v1050 = vunpack.c.l.b16 %v90
  %v1051 = vunpack.c.l.b16 %v91
  %v1052 = vunpack.c.l.b16 %v92
  %v1053 = vunpack.c.l.b16 %v93
  %v1054 = vunpack.c.l.b16 %v94
  %v1055 = vunpack.c.l.b16 %v95
  %v1056 = vunpack.c.l.b16 %v96
  %v1057 = vunpack.c.l.b16 %v97
  %v1058 = vunpack.c.l.b16 %v98
  %v1059 = vunpack.c.l.b16 %v99
  %v1060 = vunpack.c.l.b16 %v100
  %v1061 = vunpack.c.l.b16 %v101
  %v1062 = vunpack.c.l.b16 %v102
  %v1063 = vunpack.c.l.b16 %v103
  %v1064 = vunpack.c.l.b16 %v104
  %v1065 = vunpack.c.l.b16 %v105
  %v1066 = vunpack.c.l.b16 %v106
  %v1067 = vunpack.c.l.b16 %v107
  %v1068 = vunpack.c.l.b16 %v108
  %v1069 = vunpack.c.l.b16 %v109
  %v1070 = vunpack.c.l.b16 %v110
  %v1071 = vunpack.c.l.b16 %v111
  %v1072 = vunpack.c.l.b16 %v112
  %v1073 = vunpack.c.l.b16 %v113
  %v1074 = vunpack.c.l.b16 %v114
  %v1075 = vunpack.c.l.b16 %v115
  %v1076 = vunpack.c.l.b16 %v116
  %v1077 = vunpack.c.l.b16 %v117
  %v1078 = vunpack.c.l.b16 %v118
  %v1079 = vunpack.c.l.b16 %v119
  %v1080 = vunpack.c.l.b16 %v120
  %v1081 = vunpack.c.l.b16 %v121
  %v1082 = vunpack.c.l.b16 %v122
  %v1083 = vunpack.c.l.b16 %v123
  %v1084 = vunpack.c.l.b16 %v124
  %v1085 = vunpack.c.l.b16 %v125
  %v1086 = vunpack.c.l.b16 %v126
  %v1087 = vunpack.c.l.b16 %v127
  %v1088 = vunpack.c.l.b16 %v128
  %v1089 = vunpack.c.l.b16 %v129
  %v1090 = vunpack.c.l.b16 %v130
  %v1091 = vunpack.c.l.b16 %v131
  %v1092 = vunpack.c.l.b16 %v132
  %v1093 = vunpack.c.l.b16 %v133
  %v1094 = vunpack.c.l.b16 %v134
  %v1095 = vunpack.c.l.b16 %v135
  %v1096 = vunpack.c.l.b16 %v136
  %v1097 = vunpack.c.l.b16 %v137
  %v1098 = vunpack.c.l.b16 %v138
  %v1099 = vunpack.c.l.b16 %v139
  %v1100 = vunpack.c.l.b16 %v140
  %v1101 = vunpack.c.l.b16 %v141
  %v1102 = vunpack.c.l.b16 %v142
  %v1103 = vunpack.c.l.b16 %v143
  %v1104 = vunpack.c.l.b16 %v144
  %v1105 = vunpack.c.l.b16 %v145
  %v1106 = vunpack.c.l.b16 %v146
  %v1107 = vunpack.c.l.b16 %v147
  %v1108 = vunpack.c.l.b16 %v148
  %v1109 = vunpack.c.l.b16 %v149
  %v1110 = vunpack.c.l.b16 %v150
  %v1111 = vunpack.c.l.b16 %v151
  %v1112 = vpack.c.b16 %v1049, %v1048
  %v1113 = vpack.c.b16 %v1051, %v1050
  %v1114 = vpack.c.b16 %v1053, %v1052
  %v1115 = vpack.c.b16 %v1055, %v1054
  %v1116 = vpack.c.b16 %v1057, %v1056
  %v1117 = vpack.c.b16 %v1059, %v1058
  %v1118 = vpack.c.b16 %v1061, %v1060
  %v1119 = vpack.c.b16 %v1063, %v1062
  %v1120 = vpack.c.b16 %v1065, %v1064
  %v1121 = vpack.c.b16 %v1067, %v1066
  %v1122 = vpack.c.b16 %v1069, %v1068
  %v1123 = vpack.c.b16 %v1071, %v1070
  %v1124 = vpack.c.b16 %v1073, %v1072
  %v1125 = vpack.c.b16 %v1075, %v1074
  %v1126 = vpack.c.b16 %v1077, %v1076
  %v1127 = vpack.c.b16 %v1079, %v1078
  %v1128 = vpack.c.b16 %v1081, %v1080
  %v1129 = vpack.c.b16 %v1083, %v1082
  %v1130 = vpack.c.b16 %v1085, %v1084
  %v1131 = vpack.c.b16 %v1087, %v1086
  %v1132 = vpack.c.b16 %v1089, %v1088
  %v1133 = vpack.c.b16 %v1091, %v1090
  %v1134 = vpack.c.b16 %v1093, %v1092
  %v1135 = vpack.c.b16 %v1095, %v1094
  %v1136 = vpack.c.b16 %v1097, %v1096
  %v1137 = vpack.c.b16 %v1099, %v1098
  %v1138 = vpack.c.b16 %v1101, %v1100
  %v1139 = vpack.c.b16 %v1103, %v1102
  %v1140 = vpack.c.b16 %v1105, %v1104
  %v1141 = vpack.c.b16 %v1107, %v1106
  %v1142 = vpack.c.b16 %v1109, %v1108
  %v1143 = vpack.c.b16 %v1111, %v1110
  %1176 = vmatprep.subr.bf16.mxu0 0
  %1177 = vmatpush1.bf16.msra.mxu0 %v1119
  %1178 = vmatprep.subr.bf16.mxu0 0
  %1179 = vmatpush1.bf16.msra.mxu0 %v1118
  %1180 = vmatprep.subr.bf16.mxu0 0
  %1181 = vmatpush1.bf16.msra.mxu0 %v1117
  %1182 = vmatprep.subr.bf16.mxu0 0
  %1183 = vmatpush1.bf16.msra.mxu0 %v1116
  %1184 = vmatprep.subr.bf16.mxu0 0
  %1185 = vmatpush1.bf16.msra.mxu0 %v1115
  %1186 = vmatprep.subr.bf16.mxu0 0
  %1187 = vmatpush1.bf16.msra.mxu0 %v1114
  %1188 = vmatprep.subr.bf16.mxu0 0
  %1189 = vmatpush1.bf16.msra.mxu0 %v1113
  %1190 = vmatprep.subr.bf16.mxu0 0
  %1191 = vmatpush1.bf16.msra.mxu0 %v1112
  %1192 = vmatprep.subr.bf16.mxu0 0
  %1193 = vmatpush2.bf16.msra.mxu0 %v1127
  %1194 = vmatprep.subr.bf16.mxu0 0
  %1195 = vmatpush2.bf16.msra.mxu0 %v1126
  %1196 = vmatprep.subr.bf16.mxu0 0
  %1197 = vmatpush2.bf16.msra.mxu0 %v1125
  %1198 = vmatprep.subr.bf16.mxu0 0
  %1199 = vmatpush2.bf16.msra.mxu0 %v1124
  %1200 = vmatprep.subr.bf16.mxu0 0
  %1201 = vmatpush2.bf16.msra.mxu0 %v1123
  %1202 = vmatprep.subr.bf16.mxu0 0
  %1203 = vmatpush2.bf16.msra.mxu0 %v1122
  %1204 = vmatprep.subr.bf16.mxu0 0
  %1205 = vmatpush2.bf16.msra.mxu0 %v1121
  %1206 = vmatprep.subr.bf16.mxu0 0
  %1207 = vmatpush2.bf16.msra.mxu0 %v1120
  %1208 = vmatprep.mubr.bf16.mxu0 %v729
  %1209 = vmatmul.mubr.bf16.gmra.mxu0 %v728
  %v1210 = vpop.f32.mrf.mxu0
  %v1211 = vadd.f32 0.0, %v1210
  %v1212 = vpop.f32.mrf.mxu0
  %v1213 = vpop.f32.mrf.mxu0
  %v1214 = vadd.f32 0.0, %v1213
  %v1215 = vpop.f32.mrf.mxu0
  %1216 = vmatprep.mubr.bf16.mxu0 %v733
  %1217 = vmatmul.mubr.bf16.gmra.mxu0 %v732
  %v1218 = vpop.f32.mrf.mxu0
  %v1219 = vadd.f32 0.0, %v1218
  %v1220 = vpop.f32.mrf.mxu0
  %v1221 = vpop.f32.mrf.mxu0
  %v1222 = vadd.f32 0.0, %v1221
  %v1223 = vpop.f32.mrf.mxu0
  %1224 = vmatprep.mubr.bf16.mxu0 %v737
  %1225 = vmatmul.mubr.bf16.gmra.mxu0 %v736
  %v1226 = vpop.f32.mrf.mxu0
  %v1227 = vadd.f32 0.0, %v1226
  %v1228 = vpop.f32.mrf.mxu0
  %v1229 = vpop.f32.mrf.mxu0
  %v1230 = vadd.f32 0.0, %v1229
  %v1231 = vpop.f32.mrf.mxu0
  %1232 = vmatprep.mubr.bf16.mxu0 %v741
  %1233 = vmatmul.mubr.bf16.gmra.mxu0 %v740
  %v1234 = vpop.f32.mrf.mxu0
  %v1235 = vadd.f32 0.0, %v1234
  %v1236 = vpop.f32.mrf.mxu0
  %v1237 = vpop.f32.mrf.mxu0
  %v1238 = vadd.f32 0.0, %v1237
  %v1239 = vpop.f32.mrf.mxu0
  %1240 = vmatprep.mubr.bf16.mxu0 %v745
  %1241 = vmatmul.mubr.bf16.gmra.mxu0 %v744
  %v1242 = vpop.f32.mrf.mxu0
  %v1243 = vadd.f32 0.0, %v1242
  %v1244 = vpop.f32.mrf.mxu0
  %v1245 = vpop.f32.mrf.mxu0
  %v1246 = vadd.f32 0.0, %v1245
  %v1247 = vpop.f32.mrf.mxu0
  %1248 = vmatprep.mubr.bf16.mxu0 %v749
  %1249 = vmatmul.mubr.bf16.gmra.mxu0 %v748
  %v1250 = vpop.f32.mrf.mxu0
  %v1251 = vadd.f32 0.0, %v1250
  %v1252 = vpop.f32.mrf.mxu0
  %v1253 = vpop.f32.mrf.mxu0
  %v1254 = vadd.f32 0.0, %v1253
  %v1255 = vpop.f32.mrf.mxu0
  %1256 = vmatprep.mubr.bf16.mxu0 %v753
  %1257 = vmatmul.mubr.bf16.gmra.mxu0 %v752
  %v1258 = vpop.f32.mrf.mxu0
  %v1259 = vadd.f32 0.0, %v1258
  %v1260 = vpop.f32.mrf.mxu0
  %v1261 = vpop.f32.mrf.mxu0
  %v1262 = vadd.f32 0.0, %v1261
  %v1263 = vpop.f32.mrf.mxu0
  %1264 = vmatprep.mubr.bf16.mxu0 %v757
  %1265 = vmatmul.mubr.bf16.gmra.mxu0 %v756
  %v1266 = vpop.f32.mrf.mxu0
  %v1267 = vadd.f32 0.0, %v1266
  %v1268 = vpop.f32.mrf.mxu0
  %v1269 = vpop.f32.mrf.mxu0
  %v1270 = vadd.f32 0.0, %v1269
  %v1271 = vpop.f32.mrf.mxu0
  %1272 = vmatprep.mubr.bf16.mxu0 %v761
  %1273 = vmatmul.mubr.bf16.gmra.mxu0 %v760
  %v1274 = vpop.f32.mrf.mxu0
  %v1275 = vadd.f32 0.0, %v1274
  %v1276 = vpop.f32.mrf.mxu0
  %v1277 = vpop.f32.mrf.mxu0
  %v1278 = vadd.f32 0.0, %v1277
  %v1279 = vpop.f32.mrf.mxu0
  %1280 = vmatprep.mubr.bf16.mxu0 %v765
  %1281 = vmatmul.mubr.bf16.gmra.mxu0 %v764
  %v1282 = vpop.f32.mrf.mxu0
  %v1283 = vadd.f32 0.0, %v1282
  %v1284 = vpop.f32.mrf.mxu0
  %v1285 = vpop.f32.mrf.mxu0
  %v1286 = vadd.f32 0.0, %v1285
  %v1287 = vpop.f32.mrf.mxu0
  %1288 = vmatprep.mubr.bf16.mxu0 %v769
  %1289 = vmatmul.mubr.bf16.gmra.mxu0 %v768
  %v1290 = vpop.f32.mrf.mxu0
  %v1291 = vadd.f32 0.0, %v1290
  %v1292 = vpop.f32.mrf.mxu0
  %v1293 = vpop.f32.mrf.mxu0
  %v1294 = vadd.f32 0.0, %v1293
  %v1295 = vpop.f32.mrf.mxu0
  %1296 = vmatprep.mubr.bf16.mxu0 %v773
  %1297 = vmatmul.mubr.bf16.gmra.mxu0 %v772
  %v1298 = vpop.f32.mrf.mxu0
  %v1299 = vadd.f32 0.0, %v1298
  %v1300 = vpop.f32.mrf.mxu0
  %v1301 = vpop.f32.mrf.mxu0
  %v1302 = vadd.f32 0.0, %v1301
  %v1303 = vpop.f32.mrf.mxu0
  %1304 = vmatprep.mubr.bf16.mxu0 %v777
  %1305 = vmatmul.mubr.bf16.gmra.mxu0 %v776
  %v1306 = vpop.f32.mrf.mxu0
  %v1307 = vadd.f32 0.0, %v1306
  %v1308 = vpop.f32.mrf.mxu0
  %v1309 = vpop.f32.mrf.mxu0
  %v1310 = vadd.f32 0.0, %v1309
  %v1311 = vpop.f32.mrf.mxu0
  %1312 = vmatprep.mubr.bf16.mxu0 %v781
  %1313 = vmatmul.mubr.bf16.gmra.mxu0 %v780
  %v1314 = vpop.f32.mrf.mxu0
  %v1315 = vadd.f32 0.0, %v1314
  %v1316 = vpop.f32.mrf.mxu0
  %v1317 = vpop.f32.mrf.mxu0
  %v1318 = vadd.f32 0.0, %v1317
  %v1319 = vpop.f32.mrf.mxu0
  %1320 = vmatprep.mubr.bf16.mxu0 %v785
  %1321 = vmatmul.mubr.bf16.gmra.mxu0 %v784
  %v1322 = vpop.f32.mrf.mxu0
  %v1323 = vadd.f32 0.0, %v1322
  %v1324 = vpop.f32.mrf.mxu0
  %v1325 = vpop.f32.mrf.mxu0
  %v1326 = vadd.f32 0.0, %v1325
  %v1327 = vpop.f32.mrf.mxu0
  %1328 = vmatprep.mubr.bf16.mxu0 %v789
  %1329 = vmatmul.mubr.bf16.gmra.mxu0 %v788
  %v1330 = vpop.f32.mrf.mxu0
  %v1331 = vadd.f32 0.0, %v1330
  %v1332 = vpop.f32.mrf.mxu0
  %v1333 = vpop.f32.mrf.mxu0
  %v1334 = vadd.f32 0.0, %v1333
  %v1335 = vpop.f32.mrf.mxu0
  %1336 = vmatprep.mubr.bf16.mxu0 %v793
  %1337 = vmatmul.mubr.bf16.gmra.mxu0 %v792
  %v1338 = vpop.f32.mrf.mxu0
  %v1339 = vadd.f32 0.0, %v1338
  %v1340 = vpop.f32.mrf.mxu0
  %v1341 = vpop.f32.mrf.mxu0
  %v1342 = vadd.f32 0.0, %v1341
  %v1343 = vpop.f32.mrf.mxu0
  %1344 = vmatprep.mubr.bf16.mxu0 %v797
  %1345 = vmatmul.mubr.bf16.gmra.mxu0 %v796
  %v1346 = vpop.f32.mrf.mxu0
  %v1347 = vadd.f32 0.0, %v1346
  %v1348 = vpop.f32.mrf.mxu0
  %v1349 = vpop.f32.mrf.mxu0
  %v1350 = vadd.f32 0.0, %v1349
  %v1351 = vpop.f32.mrf.mxu0
  %1352 = vmatprep.mubr.bf16.mxu0 %v801
  %1353 = vmatmul.mubr.bf16.gmra.mxu0 %v800
  %v1354 = vpop.f32.mrf.mxu0
  %v1355 = vadd.f32 0.0, %v1354
  %v1356 = vpop.f32.mrf.mxu0
  %v1357 = vpop.f32.mrf.mxu0
  %v1358 = vadd.f32 0.0, %v1357
  %v1359 = vpop.f32.mrf.mxu0
  %1360 = vmatprep.mubr.bf16.mxu0 %v805
  %1361 = vmatmul.mubr.bf16.gmra.mxu0 %v804
  %v1362 = vpop.f32.mrf.mxu0
  %v1363 = vadd.f32 0.0, %v1362
  %v1364 = vpop.f32.mrf.mxu0
  %v1365 = vpop.f32.mrf.mxu0
  %v1366 = vadd.f32 0.0, %v1365
  %v1367 = vpop.f32.mrf.mxu0
  %1368 = vmatprep.mubr.bf16.mxu0 %v809
  %1369 = vmatmul.mubr.bf16.gmra.mxu0 %v808
  %v1370 = vpop.f32.mrf.mxu0
  %v1371 = vadd.f32 0.0, %v1370
  %v1372 = vpop.f32.mrf.mxu0
  %v1373 = vpop.f32.mrf.mxu0
  %v1374 = vadd.f32 0.0, %v1373
  %v1375 = vpop.f32.mrf.mxu0
  %1376 = vmatprep.mubr.bf16.mxu0 %v813
  %1377 = vmatmul.mubr.bf16.gmra.mxu0 %v812
  %v1378 = vpop.f32.mrf.mxu0
  %v1379 = vadd.f32 0.0, %v1378
  %v1380 = vpop.f32.mrf.mxu0
  %v1381 = vpop.f32.mrf.mxu0
  %v1382 = vadd.f32 0.0, %v1381
  %v1383 = vpop.f32.mrf.mxu0
  %1384 = vmatprep.mubr.bf16.mxu0 %v817
  %1385 = vmatmul.mubr.bf16.gmra.mxu0 %v816
  %v1386 = vpop.f32.mrf.mxu0
  %v1387 = vadd.f32 0.0, %v1386
  %v1388 = vpop.f32.mrf.mxu0
  %v1389 = vpop.f32.mrf.mxu0
  %v1390 = vadd.f32 0.0, %v1389
  %v1391 = vpop.f32.mrf.mxu0
  %1392 = vmatprep.mubr.bf16.mxu0 %v821
  %1393 = vmatmul.mubr.bf16.gmra.mxu0 %v820
  %v1394 = vpop.f32.mrf.mxu0
  %v1395 = vadd.f32 0.0, %v1394
  %v1396 = vpop.f32.mrf.mxu0
  %v1397 = vpop.f32.mrf.mxu0
  %v1398 = vadd.f32 0.0, %v1397
  %v1399 = vpop.f32.mrf.mxu0
  %1400 = vmatprep.mubr.bf16.mxu0 %v825
  %1401 = vmatmul.mubr.bf16.gmra.mxu0 %v824
  %v1402 = vpop.f32.mrf.mxu0
  %v1403 = vadd.f32 0.0, %v1402
  %v1404 = vpop.f32.mrf.mxu0
  %v1405 = vpop.f32.mrf.mxu0
  %v1406 = vadd.f32 0.0, %v1405
  %v1407 = vpop.f32.mrf.mxu0
  %1408 = vmatprep.mubr.bf16.mxu0 %v829
  %1409 = vmatmul.mubr.bf16.gmra.mxu0 %v828
  %v1410 = vpop.f32.mrf.mxu0
  %v1411 = vadd.f32 0.0, %v1410
  %v1412 = vpop.f32.mrf.mxu0
  %v1413 = vpop.f32.mrf.mxu0
  %v1414 = vadd.f32 0.0, %v1413
  %v1415 = vpop.f32.mrf.mxu0
  %1416 = vmatprep.mubr.bf16.mxu0 %v833
  %1417 = vmatmul.mubr.bf16.gmra.mxu0 %v832
  %v1418 = vpop.f32.mrf.mxu0
  %v1419 = vadd.f32 0.0, %v1418
  %v1420 = vpop.f32.mrf.mxu0
  %v1421 = vpop.f32.mrf.mxu0
  %v1422 = vadd.f32 0.0, %v1421
  %v1423 = vpop.f32.mrf.mxu0
  %1424 = vmatprep.mubr.bf16.mxu0 %v837
  %1425 = vmatmul.mubr.bf16.gmra.mxu0 %v836
  %v1426 = vpop.f32.mrf.mxu0
  %v1427 = vadd.f32 0.0, %v1426
  %v1428 = vpop.f32.mrf.mxu0
  %v1429 = vpop.f32.mrf.mxu0
  %v1430 = vadd.f32 0.0, %v1429
  %v1431 = vpop.f32.mrf.mxu0
  %1432 = vmatprep.mubr.bf16.mxu0 %v841
  %1433 = vmatmul.mubr.bf16.gmra.mxu0 %v840
  %v1434 = vpop.f32.mrf.mxu0
  %v1435 = vadd.f32 0.0, %v1434
  %v1436 = vpop.f32.mrf.mxu0
  %v1437 = vpop.f32.mrf.mxu0
  %v1438 = vadd.f32 0.0, %v1437
  %v1439 = vpop.f32.mrf.mxu0
  %1440 = vmatprep.mubr.bf16.mxu0 %v845
  %1441 = vmatmul.mubr.bf16.gmra.mxu0 %v844
  %v1442 = vpop.f32.mrf.mxu0
  %v1443 = vadd.f32 0.0, %v1442
  %v1444 = vpop.f32.mrf.mxu0
  %v1445 = vpop.f32.mrf.mxu0
  %v1446 = vadd.f32 0.0, %v1445
  %v1447 = vpop.f32.mrf.mxu0
  %1448 = vmatprep.mubr.bf16.mxu0 %v849
  %1449 = vmatmul.mubr.bf16.gmra.mxu0 %v848
  %v1450 = vpop.f32.mrf.mxu0
  %v1451 = vadd.f32 0.0, %v1450
  %v1452 = vpop.f32.mrf.mxu0
  %v1453 = vpop.f32.mrf.mxu0
  %v1454 = vadd.f32 0.0, %v1453
  %v1455 = vpop.f32.mrf.mxu0
  %1456 = vmatprep.mubr.bf16.mxu0 %v853
  %1457 = vmatmul.mubr.bf16.gmra.mxu0 %v852
  %v1458 = vpop.f32.mrf.mxu0
  %v1459 = vadd.f32 0.0, %v1458
  %v1460 = vpop.f32.mrf.mxu0
  %v1461 = vpop.f32.mrf.mxu0
  %v1462 = vadd.f32 0.0, %v1461
  %v1463 = vpop.f32.mrf.mxu0
  %1464 = vdwg.mxu0
  %1465 = vmatprep.subr.bf16.mxu0 0
  %1466 = vmatpush1.bf16.msra.mxu0 %v1135
  %1467 = vmatprep.subr.bf16.mxu0 0
  %1468 = vmatpush1.bf16.msra.mxu0 %v1134
  %1469 = vmatprep.subr.bf16.mxu0 0
  %1470 = vmatpush1.bf16.msra.mxu0 %v1133
  %1471 = vmatprep.subr.bf16.mxu0 0
  %1472 = vmatpush1.bf16.msra.mxu0 %v1132
  %1473 = vmatprep.subr.bf16.mxu0 0
  %1474 = vmatpush1.bf16.msra.mxu0 %v1131
  %1475 = vmatprep.subr.bf16.mxu0 0
  %1476 = vmatpush1.bf16.msra.mxu0 %v1130
  %1477 = vmatprep.subr.bf16.mxu0 0
  %1478 = vmatpush1.bf16.msra.mxu0 %v1129
  %1479 = vmatprep.subr.bf16.mxu0 0
  %1480 = vmatpush1.bf16.msra.mxu0 %v1128
  %1481 = vmatprep.subr.bf16.mxu0 0
  %1482 = vmatpush2.bf16.msra.mxu0 %v1143
  %1483 = vmatprep.subr.bf16.mxu0 0
  %1484 = vmatpush2.bf16.msra.mxu0 %v1142
  %1485 = vmatprep.subr.bf16.mxu0 0
  %1486 = vmatpush2.bf16.msra.mxu0 %v1141
  %1487 = vmatprep.subr.bf16.mxu0 0
  %1488 = vmatpush2.bf16.msra.mxu0 %v1140
  %1489 = vmatprep.subr.bf16.mxu0 0
  %1490 = vmatpush2.bf16.msra.mxu0 %v1139
  %1491 = vmatprep.subr.bf16.mxu0 0
  %1492 = vmatpush2.bf16.msra.mxu0 %v1138
  %1493 = vmatprep.subr.bf16.mxu0 0
  %1494 = vmatpush2.bf16.msra.mxu0 %v1137
  %1495 = vmatprep.subr.bf16.mxu0 0
  %1496 = vmatpush2.bf16.msra.mxu0 %v1136
  %1497 = vmatprep.mubr.bf16.mxu0 %v731
  %1498 = vmatmul.mubr.bf16.gmra.mxu0 %v730
  %v1499 = vpop.f32.mrf.mxu0
  %v1500 = vadd.f32 %v1211, %v1499
  %v1501 = vpop.f32.mrf.mxu0
  %v1502 = vpop.f32.mrf.mxu0
  %v1503 = vadd.f32 %v1214, %v1502
  %v1504 = vpop.f32.mrf.mxu0
  %1505 = vmatprep.mubr.bf16.mxu0 %v735
  %1506 = vmatmul.mubr.bf16.gmra.mxu0 %v734
  %v1507 = vpop.f32.mrf.mxu0
  %v1508 = vadd.f32 %v1219, %v1507
  %v1509 = vpop.f32.mrf.mxu0
  %v1510 = vpop.f32.mrf.mxu0
  %v1511 = vadd.f32 %v1222, %v1510
  %v1512 = vpop.f32.mrf.mxu0
  %1513 = vmatprep.mubr.bf16.mxu0 %v739
  %1514 = vmatmul.mubr.bf16.gmra.mxu0 %v738
  %v1515 = vpop.f32.mrf.mxu0
  %v1516 = vadd.f32 %v1227, %v1515
  %v1517 = vpop.f32.mrf.mxu0
  %v1518 = vpop.f32.mrf.mxu0
  %v1519 = vadd.f32 %v1230, %v1518
  %v1520 = vpop.f32.mrf.mxu0
  %1521 = vmatprep.mubr.bf16.mxu0 %v743
  %1522 = vmatmul.mubr.bf16.gmra.mxu0 %v742
  %v1523 = vpop.f32.mrf.mxu0
  %v1524 = vadd.f32 %v1235, %v1523
  %v1525 = vpop.f32.mrf.mxu0
  %v1526 = vpop.f32.mrf.mxu0
  %v1527 = vadd.f32 %v1238, %v1526
  %v1528 = vpop.f32.mrf.mxu0
  %1529 = vmatprep.mubr.bf16.mxu0 %v747
  %1530 = vmatmul.mubr.bf16.gmra.mxu0 %v746
  %v1531 = vpop.f32.mrf.mxu0
  %v1532 = vadd.f32 %v1243, %v1531
  %v1533 = vpop.f32.mrf.mxu0
  %v1534 = vpop.f32.mrf.mxu0
  %v1535 = vadd.f32 %v1246, %v1534
  %v1536 = vpop.f32.mrf.mxu0
  %1537 = vmatprep.mubr.bf16.mxu0 %v751
  %1538 = vmatmul.mubr.bf16.gmra.mxu0 %v750
  %v1539 = vpop.f32.mrf.mxu0
  %v1540 = vadd.f32 %v1251, %v1539
  %v1541 = vpop.f32.mrf.mxu0
  %v1542 = vpop.f32.mrf.mxu0
  %v1543 = vadd.f32 %v1254, %v1542
  %v1544 = vpop.f32.mrf.mxu0
  %1545 = vmatprep.mubr.bf16.mxu0 %v755
  %1546 = vmatmul.mubr.bf16.gmra.mxu0 %v754
  %v1547 = vpop.f32.mrf.mxu0
  %v1548 = vadd.f32 %v1259, %v1547
  %v1549 = vpop.f32.mrf.mxu0
  %v1550 = vpop.f32.mrf.mxu0
  %v1551 = vadd.f32 %v1262, %v1550
  %v1552 = vpop.f32.mrf.mxu0
  %1553 = vmatprep.mubr.bf16.mxu0 %v759
  %1554 = vmatmul.mubr.bf16.gmra.mxu0 %v758
  %v1555 = vpop.f32.mrf.mxu0
  %v1556 = vadd.f32 %v1267, %v1555
  %v1557 = vpop.f32.mrf.mxu0
  %v1558 = vpop.f32.mrf.mxu0
  %v1559 = vadd.f32 %v1270, %v1558
  %v1560 = vpop.f32.mrf.mxu0
  %1561 = vmatprep.mubr.bf16.mxu0 %v763
  %1562 = vmatmul.mubr.bf16.gmra.mxu0 %v762
  %v1563 = vpop.f32.mrf.mxu0
  %v1564 = vadd.f32 %v1275, %v1563
  %v1565 = vpop.f32.mrf.mxu0
  %v1566 = vpop.f32.mrf.mxu0
  %v1567 = vadd.f32 %v1278, %v1566
  %v1568 = vpop.f32.mrf.mxu0
  %1569 = vmatprep.mubr.bf16.mxu0 %v767
  %1570 = vmatmul.mubr.bf16.gmra.mxu0 %v766
  %v1571 = vpop.f32.mrf.mxu0
  %v1572 = vadd.f32 %v1283, %v1571
  %v1573 = vpop.f32.mrf.mxu0
  %v1574 = vpop.f32.mrf.mxu0
  %v1575 = vadd.f32 %v1286, %v1574
  %v1576 = vpop.f32.mrf.mxu0
  %1577 = vmatprep.mubr.bf16.mxu0 %v771
  %1578 = vmatmul.mubr.bf16.gmra.mxu0 %v770
  %v1579 = vpop.f32.mrf.mxu0
  %v1580 = vadd.f32 %v1291, %v1579
  %v1581 = vpop.f32.mrf.mxu0
  %v1582 = vpop.f32.mrf.mxu0
  %v1583 = vadd.f32 %v1294, %v1582
  %v1584 = vpop.f32.mrf.mxu0
  %1585 = vmatprep.mubr.bf16.mxu0 %v775
  %1586 = vmatmul.mubr.bf16.gmra.mxu0 %v774
  %v1587 = vpop.f32.mrf.mxu0
  %v1588 = vadd.f32 %v1299, %v1587
  %v1589 = vpop.f32.mrf.mxu0
  %v1590 = vpop.f32.mrf.mxu0
  %v1591 = vadd.f32 %v1302, %v1590
  %v1592 = vpop.f32.mrf.mxu0
  %1593 = vmatprep.mubr.bf16.mxu0 %v779
  %1594 = vmatmul.mubr.bf16.gmra.mxu0 %v778
  %v1595 = vpop.f32.mrf.mxu0
  %v1596 = vadd.f32 %v1307, %v1595
  %v1597 = vpop.f32.mrf.mxu0
  %v1598 = vpop.f32.mrf.mxu0
  %v1599 = vadd.f32 %v1310, %v1598
  %v1600 = vpop.f32.mrf.mxu0
  %1601 = vmatprep.mubr.bf16.mxu0 %v783
  %1602 = vmatmul.mubr.bf16.gmra.mxu0 %v782
  %v1603 = vpop.f32.mrf.mxu0
  %v1604 = vadd.f32 %v1315, %v1603
  %v1605 = vpop.f32.mrf.mxu0
  %v1606 = vpop.f32.mrf.mxu0
  %v1607 = vadd.f32 %v1318, %v1606
  %v1608 = vpop.f32.mrf.mxu0
  %1609 = vmatprep.mubr.bf16.mxu0 %v787
  %1610 = vmatmul.mubr.bf16.gmra.mxu0 %v786
  %v1611 = vpop.f32.mrf.mxu0
  %v1612 = vadd.f32 %v1323, %v1611
  %v1613 = vpop.f32.mrf.mxu0
  %v1614 = vpop.f32.mrf.mxu0
  %v1615 = vadd.f32 %v1326, %v1614
  %v1616 = vpop.f32.mrf.mxu0
  %1617 = vmatprep.mubr.bf16.mxu0 %v791
  %1618 = vmatmul.mubr.bf16.gmra.mxu0 %v790
  %v1619 = vpop.f32.mrf.mxu0
  %v1620 = vadd.f32 %v1331, %v1619
  %v1621 = vpop.f32.mrf.mxu0
  %v1622 = vpop.f32.mrf.mxu0
  %v1623 = vadd.f32 %v1334, %v1622
  %v1624 = vpop.f32.mrf.mxu0
  %1625 = vmatprep.mubr.bf16.mxu0 %v795
  %1626 = vmatmul.mubr.bf16.gmra.mxu0 %v794
  %v1627 = vpop.f32.mrf.mxu0
  %v1628 = vadd.f32 %v1339, %v1627
  %v1629 = vpop.f32.mrf.mxu0
  %v1630 = vpop.f32.mrf.mxu0
  %v1631 = vadd.f32 %v1342, %v1630
  %v1632 = vpop.f32.mrf.mxu0
  %1633 = vmatprep.mubr.bf16.mxu0 %v799
  %1634 = vmatmul.mubr.bf16.gmra.mxu0 %v798
  %v1635 = vpop.f32.mrf.mxu0
  %v1636 = vadd.f32 %v1347, %v1635
  %v1637 = vpop.f32.mrf.mxu0
  %v1638 = vpop.f32.mrf.mxu0
  %v1639 = vadd.f32 %v1350, %v1638
  %v1640 = vpop.f32.mrf.mxu0
  %1641 = vmatprep.mubr.bf16.mxu0 %v803
  %1642 = vmatmul.mubr.bf16.gmra.mxu0 %v802
  %v1643 = vpop.f32.mrf.mxu0
  %v1644 = vadd.f32 %v1355, %v1643
  %v1645 = vpop.f32.mrf.mxu0
  %v1646 = vpop.f32.mrf.mxu0
  %v1647 = vadd.f32 %v1358, %v1646
  %v1648 = vpop.f32.mrf.mxu0
  %1649 = vmatprep.mubr.bf16.mxu0 %v807
  %1650 = vmatmul.mubr.bf16.gmra.mxu0 %v806
  %v1651 = vpop.f32.mrf.mxu0
  %v1652 = vadd.f32 %v1363, %v1651
  %v1653 = vpop.f32.mrf.mxu0
  %v1654 = vpop.f32.mrf.mxu0
  %v1655 = vadd.f32 %v1366, %v1654
  %v1656 = vpop.f32.mrf.mxu0
  %1657 = vmatprep.mubr.bf16.mxu0 %v811
  %1658 = vmatmul.mubr.bf16.gmra.mxu0 %v810
  %v1659 = vpop.f32.mrf.mxu0
  %v1660 = vadd.f32 %v1371, %v1659
  %v1661 = vpop.f32.mrf.mxu0
  %v1662 = vpop.f32.mrf.mxu0
  %v1663 = vadd.f32 %v1374, %v1662
  %v1664 = vpop.f32.mrf.mxu0
  %1665 = vmatprep.mubr.bf16.mxu0 %v815
  %1666 = vmatmul.mubr.bf16.gmra.mxu0 %v814
  %v1667 = vpop.f32.mrf.mxu0
  %v1668 = vadd.f32 %v1379, %v1667
  %v1669 = vpop.f32.mrf.mxu0
  %v1670 = vpop.f32.mrf.mxu0
  %v1671 = vadd.f32 %v1382, %v1670
  %v1672 = vpop.f32.mrf.mxu0
  %1673 = vmatprep.mubr.bf16.mxu0 %v819
  %1674 = vmatmul.mubr.bf16.gmra.mxu0 %v818
  %v1675 = vpop.f32.mrf.mxu0
  %v1676 = vadd.f32 %v1387, %v1675
  %v1677 = vpop.f32.mrf.mxu0
  %v1678 = vpop.f32.mrf.mxu0
  %v1679 = vadd.f32 %v1390, %v1678
  %v1680 = vpop.f32.mrf.mxu0
  %1681 = vmatprep.mubr.bf16.mxu0 %v823
  %1682 = vmatmul.mubr.bf16.gmra.mxu0 %v822
  %v1683 = vpop.f32.mrf.mxu0
  %v1684 = vadd.f32 %v1395, %v1683
  %v1685 = vpop.f32.mrf.mxu0
  %v1686 = vpop.f32.mrf.mxu0
  %v1687 = vadd.f32 %v1398, %v1686
  %v1688 = vpop.f32.mrf.mxu0
  %1689 = vmatprep.mubr.bf16.mxu0 %v827
  %1690 = vmatmul.mubr.bf16.gmra.mxu0 %v826
  %v1691 = vpop.f32.mrf.mxu0
  %v1692 = vadd.f32 %v1403, %v1691
  %v1693 = vpop.f32.mrf.mxu0
  %v1694 = vpop.f32.mrf.mxu0
  %v1695 = vadd.f32 %v1406, %v1694
  %v1696 = vpop.f32.mrf.mxu0
  %1697 = vmatprep.mubr.bf16.mxu0 %v831
  %1698 = vmatmul.mubr.bf16.gmra.mxu0 %v830
  %v1699 = vpop.f32.mrf.mxu0
  %v1700 = vadd.f32 %v1411, %v1699
  %v1701 = vpop.f32.mrf.mxu0
  %v1702 = vpop.f32.mrf.mxu0
  %v1703 = vadd.f32 %v1414, %v1702
  %v1704 = vpop.f32.mrf.mxu0
  %1705 = vmatprep.mubr.bf16.mxu0 %v835
  %1706 = vmatmul.mubr.bf16.gmra.mxu0 %v834
  %v1707 = vpop.f32.mrf.mxu0
  %v1708 = vadd.f32 %v1419, %v1707
  %v1709 = vpop.f32.mrf.mxu0
  %v1710 = vpop.f32.mrf.mxu0
  %v1711 = vadd.f32 %v1422, %v1710
  %v1712 = vpop.f32.mrf.mxu0
  %1713 = vmatprep.mubr.bf16.mxu0 %v839
  %1714 = vmatmul.mubr.bf16.gmra.mxu0 %v838
  %v1715 = vpop.f32.mrf.mxu0
  %v1716 = vadd.f32 %v1427, %v1715
  %v1717 = vpop.f32.mrf.mxu0
  %v1718 = vpop.f32.mrf.mxu0
  %v1719 = vadd.f32 %v1430, %v1718
  %v1720 = vpop.f32.mrf.mxu0
  %1721 = vmatprep.mubr.bf16.mxu0 %v843
  %1722 = vmatmul.mubr.bf16.gmra.mxu0 %v842
  %v1723 = vpop.f32.mrf.mxu0
  %v1724 = vadd.f32 %v1435, %v1723
  %v1725 = vpop.f32.mrf.mxu0
  %v1726 = vpop.f32.mrf.mxu0
  %v1727 = vadd.f32 %v1438, %v1726
  %v1728 = vpop.f32.mrf.mxu0
  %1729 = vmatprep.mubr.bf16.mxu0 %v847
  %1730 = vmatmul.mubr.bf16.gmra.mxu0 %v846
  %v1731 = vpop.f32.mrf.mxu0
  %v1732 = vadd.f32 %v1443, %v1731
  %v1733 = vpop.f32.mrf.mxu0
  %v1734 = vpop.f32.mrf.mxu0
  %v1735 = vadd.f32 %v1446, %v1734
  %v1736 = vpop.f32.mrf.mxu0
  %1737 = vmatprep.mubr.bf16.mxu0 %v851
  %1738 = vmatmul.mubr.bf16.gmra.mxu0 %v850
  %v1739 = vpop.f32.mrf.mxu0
  %v1740 = vadd.f32 %v1451, %v1739
  %v1741 = vpop.f32.mrf.mxu0
  %v1742 = vpop.f32.mrf.mxu0
  %v1743 = vadd.f32 %v1454, %v1742
  %v1744 = vpop.f32.mrf.mxu0
  %1745 = vmatprep.mubr.bf16.mxu0 %v855
  %1746 = vmatmul.mubr.bf16.gmra.mxu0 %v854
  %v1747 = vpop.f32.mrf.mxu0
  %v1748 = vadd.f32 %v1459, %v1747
  %v1749 = vpop.f32.mrf.mxu0
  %v1750 = vpop.f32.mrf.mxu0
  %v1751 = vadd.f32 %v1462, %v1750
  %v1752 = vpop.f32.mrf.mxu0
  %1753 = vdwg.mxu0
  %v1754 = vadd.f32 %v152, %v1500
  %v1755 = vadd.f32 %v153, %v1503
  %v1756 = vadd.f32 %v154, %v1508
  %v1757 = vadd.f32 %v155, %v1511
  %v1758 = vadd.f32 %v156, %v1516
  %v1759 = vadd.f32 %v157, %v1519
  %v1760 = vadd.f32 %v158, %v1524
  %v1761 = vadd.f32 %v159, %v1527
  %v1762 = vadd.f32 %v160, %v1532
  %v1763 = vadd.f32 %v161, %v1535
  %v1764 = vadd.f32 %v162, %v1540
  %v1765 = vadd.f32 %v163, %v1543
  %v1766 = vadd.f32 %v164, %v1548
  %v1767 = vadd.f32 %v165, %v1551
  %v1768 = vadd.f32 %v166, %v1556
  %v1769 = vadd.f32 %v167, %v1559
  %v1770 = vadd.f32 %v168, %v1564
  %v1771 = vadd.f32 %v169, %v1567
  %v1772 = vadd.f32 %v170, %v1572
  %v1773 = vadd.f32 %v171, %v1575
  %v1774 = vadd.f32 %v172, %v1580
  %v1775 = vadd.f32 %v173, %v1583
  %v1776 = vadd.f32 %v174, %v1588
  %v1777 = vadd.f32 %v175, %v1591
  %v1778 = vadd.f32 %v176, %v1596
  %v1779 = vadd.f32 %v177, %v1599
  %v1780 = vadd.f32 %v178, %v1604
  %v1781 = vadd.f32 %v179, %v1607
  %v1782 = vadd.f32 %v180, %v1612
  %v1783 = vadd.f32 %v181, %v1615
  %v1784 = vadd.f32 %v182, %v1620
  %v1785 = vadd.f32 %v183, %v1623
  %v1786 = vadd.f32 %v184, %v1628
  %v1787 = vadd.f32 %v185, %v1631
  %v1788 = vadd.f32 %v186, %v1636
  %v1789 = vadd.f32 %v187, %v1639
  %v1790 = vadd.f32 %v188, %v1644
  %v1791 = vadd.f32 %v189, %v1647
  %v1792 = vadd.f32 %v190, %v1652
  %v1793 = vadd.f32 %v191, %v1655
  %v1794 = vadd.f32 %v192, %v1660
  %v1795 = vadd.f32 %v193, %v1663
  %v1796 = vadd.f32 %v194, %v1668
  %v1797 = vadd.f32 %v195, %v1671
  %v1798 = vadd.f32 %v196, %v1676
  %v1799 = vadd.f32 %v197, %v1679
  %v1800 = vadd.f32 %v198, %v1684
  %v1801 = vadd.f32 %v199, %v1687
  %v1802 = vadd.f32 %v200, %v1692
  %v1803 = vadd.f32 %v201, %v1695
  %v1804 = vadd.f32 %v202, %v1700
  %v1805 = vadd.f32 %v203, %v1703
  %v1806 = vadd.f32 %v204, %v1708
  %v1807 = vadd.f32 %v205, %v1711
  %v1808 = vadd.f32 %v206, %v1716
  %v1809 = vadd.f32 %v207, %v1719
  %v1810 = vadd.f32 %v208, %v1724
  %v1811 = vadd.f32 %v209, %v1727
  %v1812 = vadd.f32 %v210, %v1732
  %v1813 = vadd.f32 %v211, %v1735
  %v1814 = vadd.f32 %v212, %v1740
  %v1815 = vadd.f32 %v213, %v1743
  %v1816 = vadd.f32 %v214, %v1748
  %v1817 = vadd.f32 %v215, %v1751
  %1818 = vst [vmem:[#allocation2] sm:$0xff] %v1754
  %1819 = vst [vmem:[#allocation2 + $0x8] sm:$0xff] %v1755
  %1820 = vst [vmem:[#allocation2 + $0x10] sm:$0xff] %v1756
  %1821 = vst [vmem:[#allocation2 + $0x18] sm:$0xff] %v1757
  %1822 = vst [vmem:[#allocation2 + $0x20] sm:$0xff] %v1758
  %1823 = vst [vmem:[#allocation2 + $0x28] sm:$0xff] %v1759
  %1824 = vst [vmem:[#allocation2 + $0x30] sm:$0xff] %v1760
  %1825 = vst [vmem:[#allocation2 + $0x38] sm:$0xff] %v1761
  %1826 = vst [vmem:[#allocation2 + $0x40] sm:$0xff] %v1762
  %1827 = vst [vmem:[#allocation2 + $0x48] sm:$0xff] %v1763
  %1828 = vst [vmem:[#allocation2 + $0x50] sm:$0xff] %v1764
  %1829 = vst [vmem:[#allocation2 + $0x58] sm:$0xff] %v1765
  %1830 = vst [vmem:[#allocation2 + $0x60] sm:$0xff] %v1766
  %1831 = vst [vmem:[#allocation2 + $0x68] sm:$0xff] %v1767
  %1832 = vst [vmem:[#allocation2 + $0x70] sm:$0xff] %v1768
  %1833 = vst [vmem:[#allocation2 + $0x78] sm:$0xff] %v1769
  %1834 = vst [vmem:[#allocation2 + $0x80] sm:$0xff] %v1770
  %1835 = vst [vmem:[#allocation2 + $0x88] sm:$0xff] %v1771
  %1836 = vst [vmem:[#allocation2 + $0x90] sm:$0xff] %v1772
  %1837 = vst [vmem:[#allocation2 + $0x98] sm:$0xff] %v1773
  %1838 = vst [vmem:[#allocation2 + $0xa0] sm:$0xff] %v1774
  %1839 = vst [vmem:[#allocation2 + $0xa8] sm:$0xff] %v1775
  %1840 = vst [vmem:[#allocation2 + $0xb0] sm:$0xff] %v1776
  %1841 = vst [vmem:[#allocation2 + $0xb8] sm:$0xff] %v1777
  %1842 = vst [vmem:[#allocation2 + $0xc0] sm:$0xff] %v1778
  %1843 = vst [vmem:[#allocation2 + $0xc8] sm:$0xff] %v1779
  %1844 = vst [vmem:[#allocation2 + $0xd0] sm:$0xff] %v1780
  %1845 = vst [vmem:[#allocation2 + $0xd8] sm:$0xff] %v1781
  %1846 = vst [vmem:[#allocation2 + $0xe0] sm:$0xff] %v1782
  %1847 = vst [vmem:[#allocation2 + $0xe8] sm:$0xff] %v1783
  %1848 = vst [vmem:[#allocation2 + $0xf0] sm:$0xff] %v1784
  %1849 = vst [vmem:[#allocation2 + $0xf8] sm:$0xff] %v1785
  %1850 = vst [vmem:[#allocation2 + $0x100] sm:$0xff] %v1786
  %1851 = vst [vmem:[#allocation2 + $0x108] sm:$0xff] %v1787
  %1852 = vst [vmem:[#allocation2 + $0x110] sm:$0xff] %v1788
  %1853 = vst [vmem:[#allocation2 + $0x118] sm:$0xff] %v1789
  %1854 = vst [vmem:[#allocation2 + $0x120] sm:$0xff] %v1790
  %1855 = vst [vmem:[#allocation2 + $0x128] sm:$0xff] %v1791
  %1856 = vst [vmem:[#allocation2 + $0x130] sm:$0xff] %v1792
  %1857 = vst [vmem:[#allocation2 + $0x138] sm:$0xff] %v1793
  %1858 = vst [vmem:[#allocation2 + $0x140] sm:$0xff] %v1794
  %1859 = vst [vmem:[#allocation2 + $0x148] sm:$0xff] %v1795
  %1860 = vst [vmem:[#allocation2 + $0x150] sm:$0xff] %v1796
  %1861 = vst [vmem:[#allocation2 + $0x158] sm:$0xff] %v1797
  %1862 = vst [vmem:[#allocation2 + $0x160] sm:$0xff] %v1798
  %1863 = vst [vmem:[#allocation2 + $0x168] sm:$0xff] %v1799
  %1864 = vst [vmem:[#allocation2 + $0x170] sm:$0xff] %v1800
  %1865 = vst [vmem:[#allocation2 + $0x178] sm:$0xff] %v1801
  %1866 = vst [vmem:[#allocation2 + $0x180] sm:$0xff] %v1802
  %1867 = vst [vmem:[#allocation2 + $0x188] sm:$0xff] %v1803
  %1868 = vst [vmem:[#allocation2 + $0x190] sm:$0xff] %v1804
  %1869 = vst [vmem:[#allocation2 + $0x198] sm:$0xff] %v1805
  %1870 = vst [vmem:[#allocation2 + $0x1a0] sm:$0xff] %v1806
  %1871 = vst [vmem:[#allocation2 + $0x1a8] sm:$0xff] %v1807
  %1872 = vst [vmem:[#allocation2 + $0x1b0] sm:$0xff] %v1808
  %1873 = vst [vmem:[#allocation2 + $0x1b8] sm:$0xff] %v1809
  %1874 = vst [vmem:[#allocation2 + $0x1c0] sm:$0xff] %v1810
  %1875 = vst [vmem:[#allocation2 + $0x1c8] sm:$0xff] %v1811
  %1876 = vst [vmem:[#allocation2 + $0x1d0] sm:$0xff] %v1812
  %1877 = vst [vmem:[#allocation2 + $0x1d8] sm:$0xff] %v1813
  %1878 = vst [vmem:[#allocation2 + $0x1e0] sm:$0xff] %v1814
  %1879 = vst [vmem:[#allocation2 + $0x1e8] sm:$0xff] %v1815
  %1880 = vst [vmem:[#allocation2 + $0x1f0] sm:$0xff] %v1816
  %1881 = vst [vmem:[#allocation2 + $0x1f8] sm:$0xff] %v1817
  // Predicated region
  $region18: #{rating_prediction_gnn_forward.5} parent=0 // pred_check
    %p1882 = pneg %p15
  $region19: #{rating_prediction_gnn_forward.5} parent=0 // pred_check_branch
    %1884 = sbr.rel (%p1882) target = $region21
  $region20: #{rating_prediction_gnn_forward.5} parent=0 // pred_region
    %v1885 = vld [vmem:[%s2] sm:$0xff]
    %v1886 = vld [vmem:[%s2 + $0x8] sm:$0xff]
    %v1887 = vld [vmem:[%s2 + $0x10] sm:$0xff]
    %v1888 = vld [vmem:[%s2 + $0x18] sm:$0xff]
    %v1889 = vld [vmem:[%s2 + $0x20] sm:$0xff]
    %v1890 = vld [vmem:[%s2 + $0x28] sm:$0xff]
    %v1891 = vld [vmem:[%s2 + $0x30] sm:$0xff]
    %v1892 = vld [vmem:[%s2 + $0x38] sm:$0xff]
    %v1893 = vld [vmem:[%s2 + $0x40] sm:$0xff]
    %v1894 = vld [vmem:[%s2 + $0x48] sm:$0xff]
    %v1895 = vld [vmem:[%s2 + $0x50] sm:$0xff]
    %v1896 = vld [vmem:[%s2 + $0x58] sm:$0xff]
    %v1897 = vld [vmem:[%s2 + $0x60] sm:$0xff]
    %v1898 = vld [vmem:[%s2 + $0x68] sm:$0xff]
    %v1899 = vld [vmem:[%s2 + $0x70] sm:$0xff]
    %v1900 = vld [vmem:[%s2 + $0x78] sm:$0xff]
    %v1901 = vld [vmem:[%s2 + $0x80] sm:$0xff]
    %v1902 = vld [vmem:[%s2 + $0x88] sm:$0xff]
    %v1903 = vld [vmem:[%s2 + $0x90] sm:$0xff]
    %v1904 = vld [vmem:[%s2 + $0x98] sm:$0xff]
    %v1905 = vld [vmem:[%s2 + $0xa0] sm:$0xff]
    %v1906 = vld [vmem:[%s2 + $0xa8] sm:$0xff]
    %v1907 = vld [vmem:[%s2 + $0xb0] sm:$0xff]
    %v1908 = vld [vmem:[%s2 + $0xb8] sm:$0xff]
    %v1909 = vld [vmem:[%s2 + $0xc0] sm:$0xff]
    %v1910 = vld [vmem:[%s2 + $0xc8] sm:$0xff]
    %v1911 = vld [vmem:[%s2 + $0xd0] sm:$0xff]
    %v1912 = vld [vmem:[%s2 + $0xd8] sm:$0xff]
    %v1913 = vld [vmem:[%s2 + $0xe0] sm:$0xff]
    %v1914 = vld [vmem:[%s2 + $0xe8] sm:$0xff]
    %v1915 = vld [vmem:[%s2 + $0xf0] sm:$0xff]
    %v1916 = vld [vmem:[%s2 + $0xf8] sm:$0xff]
    %v1917 = vld [vmem:[%s2 + $0x100] sm:$0xff]
    %v1918 = vld [vmem:[%s2 + $0x108] sm:$0xff]
    %v1919 = vld [vmem:[%s2 + $0x110] sm:$0xff]
    %v1920 = vld [vmem:[%s2 + $0x118] sm:$0xff]
    %v1921 = vld [vmem:[%s2 + $0x120] sm:$0xff]
    %v1922 = vld [vmem:[%s2 + $0x128] sm:$0xff]
    %v1923 = vld [vmem:[%s2 + $0x130] sm:$0xff]
    %v1924 = vld [vmem:[%s2 + $0x138] sm:$0xff]
    %v1925 = vld [vmem:[%s2 + $0x140] sm:$0xff]
    %v1926 = vld [vmem:[%s2 + $0x148] sm:$0xff]
    %v1927 = vld [vmem:[%s2 + $0x150] sm:$0xff]
    %v1928 = vld [vmem:[%s2 + $0x158] sm:$0xff]
    %v1929 = vld [vmem:[%s2 + $0x160] sm:$0xff]
    %v1930 = vld [vmem:[%s2 + $0x168] sm:$0xff]
    %v1931 = vld [vmem:[%s2 + $0x170] sm:$0xff]
    %v1932 = vld [vmem:[%s2 + $0x178] sm:$0xff]
    %v1933 = vld [vmem:[%s2 + $0x180] sm:$0xff]
    %v1934 = vld [vmem:[%s2 + $0x188] sm:$0xff]
    %v1935 = vld [vmem:[%s2 + $0x190] sm:$0xff]
    %v1936 = vld [vmem:[%s2 + $0x198] sm:$0xff]
    %v1937 = vld [vmem:[%s2 + $0x1a0] sm:$0xff]
    %v1938 = vld [vmem:[%s2 + $0x1a8] sm:$0xff]
    %v1939 = vld [vmem:[%s2 + $0x1b0] sm:$0xff]
    %v1940 = vld [vmem:[%s2 + $0x1b8] sm:$0xff]
    %v1941 = vld [vmem:[%s2 + $0x1c0] sm:$0xff]
    %v1942 = vld [vmem:[%s2 + $0x1c8] sm:$0xff]
    %v1943 = vld [vmem:[%s2 + $0x1d0] sm:$0xff]
    %v1944 = vld [vmem:[%s2 + $0x1d8] sm:$0xff]
    %v1945 = vld [vmem:[%s2 + $0x1e0] sm:$0xff]
    %v1946 = vld [vmem:[%s2 + $0x1e8] sm:$0xff]
    %v1947 = vld [vmem:[%s2 + $0x1f0] sm:$0xff]
    %v1948 = vld [vmem:[%s2 + $0x1f8] sm:$0xff]
    %v1949 = vld [vmem:[#allocation2] sm:$0xff]
    %v1950 = vld [vmem:[#allocation2 + $0x8] sm:$0xff]
    %v1951 = vld [vmem:[#allocation2 + $0x10] sm:$0xff]
    %v1952 = vld [vmem:[#allocation2 + $0x18] sm:$0xff]
    %v1953 = vld [vmem:[#allocation2 + $0x20] sm:$0xff]
    %v1954 = vld [vmem:[#allocation2 + $0x28] sm:$0xff]
    %v1955 = vld [vmem:[#allocation2 + $0x30] sm:$0xff]
    %v1956 = vld [vmem:[#allocation2 + $0x38] sm:$0xff]
    %v1957 = vld [vmem:[#allocation2 + $0x40] sm:$0xff]
    %v1958 = vld [vmem:[#allocation2 + $0x48] sm:$0xff]
    %v1959 = vld [vmem:[#allocation2 + $0x50] sm:$0xff]
    %v1960 = vld [vmem:[#allocation2 + $0x58] sm:$0xff]
    %v1961 = vld [vmem:[#allocation2 + $0x60] sm:$0xff]
    %v1962 = vld [vmem:[#allocation2 + $0x68] sm:$0xff]
    %v1963 = vld [vmem:[#allocation2 + $0x70] sm:$0xff]
    %v1964 = vld [vmem:[#allocation2 + $0x78] sm:$0xff]
    %v1965 = vld [vmem:[#allocation2 + $0x80] sm:$0xff]
    %v1966 = vld [vmem:[#allocation2 + $0x88] sm:$0xff]
    %v1967 = vld [vmem:[#allocation2 + $0x90] sm:$0xff]
    %v1968 = vld [vmem:[#allocation2 + $0x98] sm:$0xff]
    %v1969 = vld [vmem:[#allocation2 + $0xa0] sm:$0xff]
    %v1970 = vld [vmem:[#allocation2 + $0xa8] sm:$0xff]
    %v1971 = vld [vmem:[#allocation2 + $0xb0] sm:$0xff]
    %v1972 = vld [vmem:[#allocation2 + $0xb8] sm:$0xff]
    %v1973 = vld [vmem:[#allocation2 + $0xc0] sm:$0xff]
    %v1974 = vld [vmem:[#allocation2 + $0xc8] sm:$0xff]
    %v1975 = vld [vmem:[#allocation2 + $0xd0] sm:$0xff]
    %v1976 = vld [vmem:[#allocation2 + $0xd8] sm:$0xff]
    %v1977 = vld [vmem:[#allocation2 + $0xe0] sm:$0xff]
    %v1978 = vld [vmem:[#allocation2 + $0xe8] sm:$0xff]
    %v1979 = vld [vmem:[#allocation2 + $0xf0] sm:$0xff]
    %v1980 = vld [vmem:[#allocation2 + $0xf8] sm:$0xff]
    %v1981 = vld [vmem:[#allocation2 + $0x100] sm:$0xff]
    %v1982 = vld [vmem:[#allocation2 + $0x108] sm:$0xff]
    %v1983 = vld [vmem:[#allocation2 + $0x110] sm:$0xff]
    %v1984 = vld [vmem:[#allocation2 + $0x118] sm:$0xff]
    %v1985 = vld [vmem:[#allocation2 + $0x120] sm:$0xff]
    %v1986 = vld [vmem:[#allocation2 + $0x128] sm:$0xff]
    %v1987 = vld [vmem:[#allocation2 + $0x130] sm:$0xff]
    %v1988 = vld [vmem:[#allocation2 + $0x138] sm:$0xff]
    %v1989 = vld [vmem:[#allocation2 + $0x140] sm:$0xff]
    %v1990 = vld [vmem:[#allocation2 + $0x148] sm:$0xff]
    %v1991 = vld [vmem:[#allocation2 + $0x150] sm:$0xff]
    %v1992 = vld [vmem:[#allocation2 + $0x158] sm:$0xff]
    %v1993 = vld [vmem:[#allocation2 + $0x160] sm:$0xff]
    %v1994 = vld [vmem:[#allocation2 + $0x168] sm:$0xff]
    %v1995 = vld [vmem:[#allocation2 + $0x170] sm:$0xff]
    %v1996 = vld [vmem:[#allocation2 + $0x178] sm:$0xff]
    %v1997 = vld [vmem:[#allocation2 + $0x180] sm:$0xff]
    %v1998 = vld [vmem:[#allocation2 + $0x188] sm:$0xff]
    %v1999 = vld [vmem:[#allocation2 + $0x190] sm:$0xff]
    %v2000 = vld [vmem:[#allocation2 + $0x198] sm:$0xff]
    %v2001 = vld [vmem:[#allocation2 + $0x1a0] sm:$0xff]
    %v2002 = vld [vmem:[#allocation2 + $0x1a8] sm:$0xff]
    %v2003 = vld [vmem:[#allocation2 + $0x1b0] sm:$0xff]
    %v2004 = vld [vmem:[#allocation2 + $0x1b8] sm:$0xff]
    %v2005 = vld [vmem:[#allocation2 + $0x1c0] sm:$0xff]
    %v2006 = vld [vmem:[#allocation2 + $0x1c8] sm:$0xff]
    %v2007 = vld [vmem:[#allocation2 + $0x1d0] sm:$0xff]
    %v2008 = vld [vmem:[#allocation2 + $0x1d8] sm:$0xff]
    %v2009 = vld [vmem:[#allocation2 + $0x1e0] sm:$0xff]
    %v2010 = vld [vmem:[#allocation2 + $0x1e8] sm:$0xff]
    %v2011 = vld [vmem:[#allocation2 + $0x1f0] sm:$0xff]
    %v2012 = vld [vmem:[#allocation2 + $0x1f8] sm:$0xff]
    %v2013 = vadd.f32 %v1885, %v1949
    %v2014 = vadd.f32 %v1886, %v1950
    %v2015 = vadd.f32 %v1887, %v1951
    %v2016 = vadd.f32 %v1888, %v1952
    %v2017 = vadd.f32 %v1889, %v1953
    %v2018 = vadd.f32 %v1890, %v1954
    %v2019 = vadd.f32 %v1891, %v1955
    %v2020 = vadd.f32 %v1892, %v1956
    %v2021 = vadd.f32 %v1893, %v1957
    %v2022 = vadd.f32 %v1894, %v1958
    %v2023 = vadd.f32 %v1895, %v1959
    %v2024 = vadd.f32 %v1896, %v1960
    %v2025 = vadd.f32 %v1897, %v1961
    %v2026 = vadd.f32 %v1898, %v1962
    %v2027 = vadd.f32 %v1899, %v1963
    %v2028 = vadd.f32 %v1900, %v1964
    %v2029 = vadd.f32 %v1901, %v1965
    %v2030 = vadd.f32 %v1902, %v1966
    %v2031 = vadd.f32 %v1903, %v1967
    %v2032 = vadd.f32 %v1904, %v1968
    %v2033 = vadd.f32 %v1905, %v1969
    %v2034 = vadd.f32 %v1906, %v1970
    %v2035 = vadd.f32 %v1907, %v1971
    %v2036 = vadd.f32 %v1908, %v1972
    %v2037 = vadd.f32 %v1909, %v1973
    %v2038 = vadd.f32 %v1910, %v1974
    %v2039 = vadd.f32 %v1911, %v1975
    %v2040 = vadd.f32 %v1912, %v1976
    %v2041 = vadd.f32 %v1913, %v1977
    %v2042 = vadd.f32 %v1914, %v1978
    %v2043 = vadd.f32 %v1915, %v1979
    %v2044 = vadd.f32 %v1916, %v1980
    %v2045 = vadd.f32 %v1917, %v1981
    %v2046 = vadd.f32 %v1918, %v1982
    %v2047 = vadd.f32 %v1919, %v1983
    %v2048 = vadd.f32 %v1920, %v1984
    %v2049 = vadd.f32 %v1921, %v1985
    %v2050 = vadd.f32 %v1922, %v1986
    %v2051 = vadd.f32 %v1923, %v1987
    %v2052 = vadd.f32 %v1924, %v1988
    %v2053 = vadd.f32 %v1925, %v1989
    %v2054 = vadd.f32 %v1926, %v1990
    %v2055 = vadd.f32 %v1927, %v1991
    %v2056 = vadd.f32 %v1928, %v1992
    %v2057 = vadd.f32 %v1929, %v1993
    %v2058 = vadd.f32 %v1930, %v1994
    %v2059 = vadd.f32 %v1931, %v1995
    %v2060 = vadd.f32 %v1932, %v1996
    %v2061 = vadd.f32 %v1933, %v1997
    %v2062 = vadd.f32 %v1934, %v1998
    %v2063 = vadd.f32 %v1935, %v1999
    %v2064 = vadd.f32 %v1936, %v2000
    %v2065 = vadd.f32 %v1937, %v2001
    %v2066 = vadd.f32 %v1938, %v2002
    %v2067 = vadd.f32 %v1939, %v2003
    %v2068 = vadd.f32 %v1940, %v2004
    %v2069 = vadd.f32 %v1941, %v2005
    %v2070 = vadd.f32 %v1942, %v2006
    %v2071 = vadd.f32 %v1943, %v2007
    %v2072 = vadd.f32 %v1944, %v2008
    %v2073 = vadd.f32 %v1945, %v2009
    %v2074 = vadd.f32 %v1946, %v2010
    %v2075 = vadd.f32 %v1947, %v2011
    %v2076 = vadd.f32 %v1948, %v2012
    %v2077 = vmul.f32 %v2013, 0.33333334
    %v2078 = vmul.f32 %v2014, 0.33333334
    %v2079 = vmul.f32 %v2015, 0.33333334
    %v2080 = vmul.f32 %v2016, 0.33333334
    %v2081 = vmul.f32 %v2017, 0.33333334
    %v2082 = vmul.f32 %v2018, 0.33333334
    %v2083 = vmul.f32 %v2019, 0.33333334
    %v2084 = vmul.f32 %v2020, 0.33333334
    %v2085 = vmul.f32 %v2021, 0.33333334
    %v2086 = vmul.f32 %v2022, 0.33333334
    %v2087 = vmul.f32 %v2023, 0.33333334
    %v2088 = vmul.f32 %v2024, 0.33333334
    %v2089 = vmul.f32 %v2025, 0.33333334
    %v2090 = vmul.f32 %v2026, 0.33333334
    %v2091 = vmul.f32 %v2027, 0.33333334
    %v2092 = vmul.f32 %v2028, 0.33333334
    %v2093 = vmul.f32 %v2029, 0.33333334
    %v2094 = vmul.f32 %v2030, 0.33333334
    %v2095 = vmul.f32 %v2031, 0.33333334
    %v2096 = vmul.f32 %v2032, 0.33333334
    %v2097 = vmul.f32 %v2033, 0.33333334
    %v2098 = vmul.f32 %v2034, 0.33333334
    %v2099 = vmul.f32 %v2035, 0.33333334
    %v2100 = vmul.f32 %v2036, 0.33333334
    %v2101 = vmul.f32 %v2037, 0.33333334
    %v2102 = vmul.f32 %v2038, 0.33333334
    %v2103 = vmul.f32 %v2039, 0.33333334
    %v2104 = vmul.f32 %v2040, 0.33333334
    %v2105 = vmul.f32 %v2041, 0.33333334
    %v2106 = vmul.f32 %v2042, 0.33333334
    %v2107 = vmul.f32 %v2043, 0.33333334
    %v2108 = vmul.f32 %v2044, 0.33333334
    %v2109 = vmul.f32 %v2045, 0.33333334
    %v2110 = vmul.f32 %v2046, 0.33333334
    %v2111 = vmul.f32 %v2047, 0.33333334
    %v2112 = vmul.f32 %v2048, 0.33333334
    %v2113 = vmul.f32 %v2049, 0.33333334
    %v2114 = vmul.f32 %v2050, 0.33333334
    %v2115 = vmul.f32 %v2051, 0.33333334
    %v2116 = vmul.f32 %v2052, 0.33333334
    %v2117 = vmul.f32 %v2053, 0.33333334
    %v2118 = vmul.f32 %v2054, 0.33333334
    %v2119 = vmul.f32 %v2055, 0.33333334
    %v2120 = vmul.f32 %v2056, 0.33333334
    %v2121 = vmul.f32 %v2057, 0.33333334
    %v2122 = vmul.f32 %v2058, 0.33333334
    %v2123 = vmul.f32 %v2059, 0.33333334
    %v2124 = vmul.f32 %v2060, 0.33333334
    %v2125 = vmul.f32 %v2061, 0.33333334
    %v2126 = vmul.f32 %v2062, 0.33333334
    %v2127 = vmul.f32 %v2063, 0.33333334
    %v2128 = vmul.f32 %v2064, 0.33333334
    %v2129 = vmul.f32 %v2065, 0.33333334
    %v2130 = vmul.f32 %v2066, 0.33333334
    %v2131 = vmul.f32 %v2067, 0.33333334
    %v2132 = vmul.f32 %v2068, 0.33333334
    %v2133 = vmul.f32 %v2069, 0.33333334
    %v2134 = vmul.f32 %v2070, 0.33333334
    %v2135 = vmul.f32 %v2071, 0.33333334
    %v2136 = vmul.f32 %v2072, 0.33333334
    %v2137 = vmul.f32 %v2073, 0.33333334
    %v2138 = vmul.f32 %v2074, 0.33333334
    %v2139 = vmul.f32 %v2075, 0.33333334
    %v2140 = vmul.f32 %v2076, 0.33333334
    %2141 = vst [vmem:[%s3] sm:$0xff] %v2077
    %2142 = vst [vmem:[%s3 + $0x8] sm:$0xff] %v2078
    %2143 = vst [vmem:[%s3 + $0x10] sm:$0xff] %v2079
    %2144 = vst [vmem:[%s3 + $0x18] sm:$0xff] %v2080
    %2145 = vst [vmem:[%s3 + $0x20] sm:$0xff] %v2081
    %2146 = vst [vmem:[%s3 + $0x28] sm:$0xff] %v2082
    %2147 = vst [vmem:[%s3 + $0x30] sm:$0xff] %v2083
    %2148 = vst [vmem:[%s3 + $0x38] sm:$0xff] %v2084
    %2149 = vst [vmem:[%s3 + $0x40] sm:$0xff] %v2085
    %2150 = vst [vmem:[%s3 + $0x48] sm:$0xff] %v2086
    %2151 = vst [vmem:[%s3 + $0x50] sm:$0xff] %v2087
    %2152 = vst [vmem:[%s3 + $0x58] sm:$0xff] %v2088
    %2153 = vst [vmem:[%s3 + $0x60] sm:$0xff] %v2089
    %2154 = vst [vmem:[%s3 + $0x68] sm:$0xff] %v2090
    %2155 = vst [vmem:[%s3 + $0x70] sm:$0xff] %v2091
    %2156 = vst [vmem:[%s3 + $0x78] sm:$0xff] %v2092
    %2157 = vst [vmem:[%s3 + $0x80] sm:$0xff] %v2093
    %2158 = vst [vmem:[%s3 + $0x88] sm:$0xff] %v2094
    %2159 = vst [vmem:[%s3 + $0x90] sm:$0xff] %v2095
    %2160 = vst [vmem:[%s3 + $0x98] sm:$0xff] %v2096
    %2161 = vst [vmem:[%s3 + $0xa0] sm:$0xff] %v2097
    %2162 = vst [vmem:[%s3 + $0xa8] sm:$0xff] %v2098
    %2163 = vst [vmem:[%s3 + $0xb0] sm:$0xff] %v2099
    %2164 = vst [vmem:[%s3 + $0xb8] sm:$0xff] %v2100
    %2165 = vst [vmem:[%s3 + $0xc0] sm:$0xff] %v2101
    %2166 = vst [vmem:[%s3 + $0xc8] sm:$0xff] %v2102
    %2167 = vst [vmem:[%s3 + $0xd0] sm:$0xff] %v2103
    %2168 = vst [vmem:[%s3 + $0xd8] sm:$0xff] %v2104
    %2169 = vst [vmem:[%s3 + $0xe0] sm:$0xff] %v2105
    %2170 = vst [vmem:[%s3 + $0xe8] sm:$0xff] %v2106
    %2171 = vst [vmem:[%s3 + $0xf0] sm:$0xff] %v2107
    %2172 = vst [vmem:[%s3 + $0xf8] sm:$0xff] %v2108
    %2173 = vst [vmem:[%s3 + $0x100] sm:$0xff] %v2109
    %2174 = vst [vmem:[%s3 + $0x108] sm:$0xff] %v2110
    %2175 = vst [vmem:[%s3 + $0x110] sm:$0xff] %v2111
    %2176 = vst [vmem:[%s3 + $0x118] sm:$0xff] %v2112
    %2177 = vst [vmem:[%s3 + $0x120] sm:$0xff] %v2113
    %2178 = vst [vmem:[%s3 + $0x128] sm:$0xff] %v2114
    %2179 = vst [vmem:[%s3 + $0x130] sm:$0xff] %v2115
    %2180 = vst [vmem:[%s3 + $0x138] sm:$0xff] %v2116
    %2181 = vst [vmem:[%s3 + $0x140] sm:$0xff] %v2117
    %2182 = vst [vmem:[%s3 + $0x148] sm:$0xff] %v2118
    %2183 = vst [vmem:[%s3 + $0x150] sm:$0xff] %v2119
    %2184 = vst [vmem:[%s3 + $0x158] sm:$0xff] %v2120
    %2185 = vst [vmem:[%s3 + $0x160] sm:$0xff] %v2121
    %2186 = vst [vmem:[%s3 + $0x168] sm:$0xff] %v2122
    %2187 = vst [vmem:[%s3 + $0x170] sm:$0xff] %v2123
    %2188 = vst [vmem:[%s3 + $0x178] sm:$0xff] %v2124
    %2189 = vst [vmem:[%s3 + $0x180] sm:$0xff] %v2125
    %2190 = vst [vmem:[%s3 + $0x188] sm:$0xff] %v2126
    %2191 = vst [vmem:[%s3 + $0x190] sm:$0xff] %v2127
    %2192 = vst [vmem:[%s3 + $0x198] sm:$0xff] %v2128
    %2193 = vst [vmem:[%s3 + $0x1a0] sm:$0xff] %v2129
    %2194 = vst [vmem:[%s3 + $0x1a8] sm:$0xff] %v2130
    %2195 = vst [vmem:[%s3 + $0x1b0] sm:$0xff] %v2131
    %2196 = vst [vmem:[%s3 + $0x1b8] sm:$0xff] %v2132
    %2197 = vst [vmem:[%s3 + $0x1c0] sm:$0xff] %v2133
    %2198 = vst [vmem:[%s3 + $0x1c8] sm:$0xff] %v2134
    %2199 = vst [vmem:[%s3 + $0x1d0] sm:$0xff] %v2135
    %2200 = vst [vmem:[%s3 + $0x1d8] sm:$0xff] %v2136
    %2201 = vst [vmem:[%s3 + $0x1e0] sm:$0xff] %v2137
    %2202 = vst [vmem:[%s3 + $0x1e8] sm:$0xff] %v2138
    %2203 = vst [vmem:[%s3 + $0x1f0] sm:$0xff] %v2139
    %2204 = vst [vmem:[%s3 + $0x1f8] sm:$0xff] %v2140
  $region21: #{rating_prediction_gnn_forward.5} parent=0 // pred_fallthru
    _
  // Predicated region
  $region22: #{rating_prediction_gnn_forward.5} parent=0 // pred_check
    _
  $region23: #{rating_prediction_gnn_forward.5} parent=0 // pred_check_branch
    %2206 = sbr.rel (0) target = $region25
  $region24: #{rating_prediction_gnn_forward.5} parent=0 // pred_region
    _
  $region25: #{rating_prediction_gnn_forward.5} parent=0 // pred_fallthru
    _
  // Predicated region
  $region26: #{rating_prediction_gnn_forward.5} parent=0 // pred_check
    _
  $region27: #{rating_prediction_gnn_forward.5} parent=0 // pred_check_branch
    %2208 = sbr.rel (0) target = $region29
  $region28: #{rating_prediction_gnn_forward.5} parent=0 // pred_region
    _
  $region29: #{rating_prediction_gnn_forward.5} parent=0 // pred_fallthru
    _

// kernel: rating_prediction_gnn_forward.4
$region0: #{rating_prediction_gnn_forward.4}
  #allocation0 [shape = 'u32[]', space=smem, size = 0x4, offset = 0x4, fixed_abs, tag = 'smem constant byte address 0x4 - core index']
  #allocation1 [shape = 'u32[144,128]{1,0:T(1,128)}', space=vmem, size = 0x12000, scoped, tag = 'internal scratch']
  #allocation2 [shape = 'f32[512,128]{1,0:T(8,128)}', space=vmem, size = 0x40000, scoped, tag = 'scratch operand']
  %s0 = inlined_call_operand.vmem [shape: bf16[512,512], index: 0, kind: input, shape index: {}]
  %s1 = inlined_call_operand.vmem [shape: bf16[512,128], index: 1, kind: input, shape index: {}]
  %s2 = inlined_call_operand.vmem [shape: f32[512,128], index: 2, kind: input, shape index: {}]
  %s3 = inlined_call_operand.vmem [shape: bf16[512,128], index: 3, kind: output, shape index: {0}]
  %s4 = inlined_call_operand.vmem [shape: f32[512,128], index: 4, kind: output, shape index: {1}]
  %5 = xla_tuple %s3, %s4
  %s6 = sld [smem:[#allocation0]]
  $region38: #{rating_prediction_gnn_forward.4} parent=0
    _
  %s8 = ssub.s32 1, %s6
  %s9 = scalar_select 0, %s8, %s6
  // Predicated region
  $region2: #{rating_prediction_gnn_forward.4} parent=0 // pred_check
    _
  $region3: #{rating_prediction_gnn_forward.4} parent=0 // pred_check_branch
    %11 = sbr.rel (0) target = $region5
  $region4: #{rating_prediction_gnn_forward.4} parent=0 // pred_region
    _
  $region5: #{rating_prediction_gnn_forward.4} parent=0 // pred_fallthru
    _
  // Predicated region
  $region6: #{rating_prediction_gnn_forward.4} parent=0 // pred_check
    _
  $region7: #{rating_prediction_gnn_forward.4} parent=0 // pred_check_branch
    %13 = sbr.rel (0) target = $region9
  $region8: #{rating_prediction_gnn_forward.4} parent=0 // pred_region
    _
  $region9: #{rating_prediction_gnn_forward.4} parent=0 // pred_fallthru
    _
  // Predicated region
  $region10: #{rating_prediction_gnn_forward.4} parent=0 // pred_check
    _
  $region11: #{rating_prediction_gnn_forward.4} parent=0 // pred_check_branch
    %15 = sbr.rel (0) target = $region13
  $region12: #{rating_prediction_gnn_forward.4} parent=0 // pred_region
    _
  $region13: #{rating_prediction_gnn_forward.4} parent=0 // pred_fallthru
    _
  %p17 = scmp.eq.s32.totalorder 0, 0
  // Predicated region
  $region14: #{rating_prediction_gnn_forward.4} parent=0 // pred_check
    %p18 = pneg %p17
  $region15: #{rating_prediction_gnn_forward.4} parent=0 // pred_check_branch
    %20 = sbr.rel (%p18) target = $region17
  $region16: #{rating_prediction_gnn_forward.4} parent=0 // pred_region
    %21 = vst [vmem:[#allocation2] sm:$0xff] 0.0
    %22 = vst [vmem:[#allocation2 + $0x8] sm:$0xff] 0.0
    %23 = vst [vmem:[#allocation2 + $0x10] sm:$0xff] 0.0
    %24 = vst [vmem:[#allocation2 + $0x18] sm:$0xff] 0.0
    %25 = vst [vmem:[#allocation2 + $0x20] sm:$0xff] 0.0
    %26 = vst [vmem:[#allocation2 + $0x28] sm:$0xff] 0.0
    %27 = vst [vmem:[#allocation2 + $0x30] sm:$0xff] 0.0
    %28 = vst [vmem:[#allocation2 + $0x38] sm:$0xff] 0.0
    %29 = vst [vmem:[#allocation2 + $0x40] sm:$0xff] 0.0
    %30 = vst [vmem:[#allocation2 + $0x48] sm:$0xff] 0.0
    %31 = vst [vmem:[#allocation2 + $0x50] sm:$0xff] 0.0
    %32 = vst [vmem:[#allocation2 + $0x58] sm:$0xff] 0.0
    %33 = vst [vmem:[#allocation2 + $0x60] sm:$0xff] 0.0
    %34 = vst [vmem:[#allocation2 + $0x68] sm:$0xff] 0.0
    %35 = vst [vmem:[#allocation2 + $0x70] sm:$0xff] 0.0
    %36 = vst [vmem:[#allocation2 + $0x78] sm:$0xff] 0.0
    %37 = vst [vmem:[#allocation2 + $0x80] sm:$0xff] 0.0
    %38 = vst [vmem:[#allocation2 + $0x88] sm:$0xff] 0.0
    %39 = vst [vmem:[#allocation2 + $0x90] sm:$0xff] 0.0
    %40 = vst [vmem:[#allocation2 + $0x98] sm:$0xff] 0.0
    %41 = vst [vmem:[#allocation2 + $0xa0] sm:$0xff] 0.0
    %42 = vst [vmem:[#allocation2 + $0xa8] sm:$0xff] 0.0
    %43 = vst [vmem:[#allocation2 + $0xb0] sm:$0xff] 0.0
    %44 = vst [vmem:[#allocation2 + $0xb8] sm:$0xff] 0.0
    %45 = vst [vmem:[#allocation2 + $0xc0] sm:$0xff] 0.0
    %46 = vst [vmem:[#allocation2 + $0xc8] sm:$0xff] 0.0
    %47 = vst [vmem:[#allocation2 + $0xd0] sm:$0xff] 0.0
    %48 = vst [vmem:[#allocation2 + $0xd8] sm:$0xff] 0.0
    %49 = vst [vmem:[#allocation2 + $0xe0] sm:$0xff] 0.0
    %50 = vst [vmem:[#allocation2 + $0xe8] sm:$0xff] 0.0
    %51 = vst [vmem:[#allocation2 + $0xf0] sm:$0xff] 0.0
    %52 = vst [vmem:[#allocation2 + $0xf8] sm:$0xff] 0.0
    %53 = vst [vmem:[#allocation2 + $0x100] sm:$0xff] 0.0
    %54 = vst [vmem:[#allocation2 + $0x108] sm:$0xff] 0.0
    %55 = vst [vmem:[#allocation2 + $0x110] sm:$0xff] 0.0
    %56 = vst [vmem:[#allocation2 + $0x118] sm:$0xff] 0.0
    %57 = vst [vmem:[#allocation2 + $0x120] sm:$0xff] 0.0
    %58 = vst [vmem:[#allocation2 + $0x128] sm:$0xff] 0.0
    %59 = vst [vmem:[#allocation2 + $0x130] sm:$0xff] 0.0
    %60 = vst [vmem:[#allocation2 + $0x138] sm:$0xff] 0.0
    %61 = vst [vmem:[#allocation2 + $0x140] sm:$0xff] 0.0
    %62 = vst [vmem:[#allocation2 + $0x148] sm:$0xff] 0.0
    %63 = vst [vmem:[#allocation2 + $0x150] sm:$0xff] 0.0
    %64 = vst [vmem:[#allocation2 + $0x158] sm:$0xff] 0.0
    %65 = vst [vmem:[#allocation2 + $0x160] sm:$0xff] 0.0
    %66 = vst [vmem:[#allocation2 + $0x168] sm:$0xff] 0.0
    %67 = vst [vmem:[#allocation2 + $0x170] sm:$0xff] 0.0
    %68 = vst [vmem:[#allocation2 + $0x178] sm:$0xff] 0.0
    %69 = vst [vmem:[#allocation2 + $0x180] sm:$0xff] 0.0
    %70 = vst [vmem:[#allocation2 + $0x188] sm:$0xff] 0.0
    %71 = vst [vmem:[#allocation2 + $0x190] sm:$0xff] 0.0
    %72 = vst [vmem:[#allocation2 + $0x198] sm:$0xff] 0.0
    %73 = vst [vmem:[#allocation2 + $0x1a0] sm:$0xff] 0.0
    %74 = vst [vmem:[#allocation2 + $0x1a8] sm:$0xff] 0.0
    %75 = vst [vmem:[#allocation2 + $0x1b0] sm:$0xff] 0.0
    %76 = vst [vmem:[#allocation2 + $0x1b8] sm:$0xff] 0.0
    %77 = vst [vmem:[#allocation2 + $0x1c0] sm:$0xff] 0.0
    %78 = vst [vmem:[#allocation2 + $0x1c8] sm:$0xff] 0.0
    %79 = vst [vmem:[#allocation2 + $0x1d0] sm:$0xff] 0.0
    %80 = vst [vmem:[#allocation2 + $0x1d8] sm:$0xff] 0.0
    %81 = vst [vmem:[#allocation2 + $0x1e0] sm:$0xff] 0.0
    %82 = vst [vmem:[#allocation2 + $0x1e8] sm:$0xff] 0.0
    %83 = vst [vmem:[#allocation2 + $0x1f0] sm:$0xff] 0.0
    %84 = vst [vmem:[#allocation2 + $0x1f8] sm:$0xff] 0.0
  $region17: #{rating_prediction_gnn_forward.4} parent=0 // pred_fallthru
    _
  %s85 = smul.u32 0, 512
  %s86 = sshra.s32 %s85, 3
  %s87 = sand.u32 %s85, 7
  %s88 = smul.addr %s86, 4
  %s89 = scalar_lea.vmem %s1, %s88
  %v90 = vld [vmem:[%s89] sm:$0xf]
  %v91 = vld [vmem:[%s89 + $0x4] sm:$0xf]
  %v92 = vld [vmem:[%s89 + $0x8] sm:$0xf]
  %v93 = vld [vmem:[%s89 + $0xc] sm:$0xf]
  %v94 = vld [vmem:[%s89 + $0x10] sm:$0xf]
  %v95 = vld [vmem:[%s89 + $0x14] sm:$0xf]
  %v96 = vld [vmem:[%s89 + $0x18] sm:$0xf]
  %v97 = vld [vmem:[%s89 + $0x1c] sm:$0xf]
  %v98 = vld [vmem:[%s89 + $0x20] sm:$0xf]
  %v99 = vld [vmem:[%s89 + $0x24] sm:$0xf]
  %v100 = vld [vmem:[%s89 + $0x28] sm:$0xf]
  %v101 = vld [vmem:[%s89 + $0x2c] sm:$0xf]
  %v102 = vld [vmem:[%s89 + $0x30] sm:$0xf]
  %v103 = vld [vmem:[%s89 + $0x34] sm:$0xf]
  %v104 = vld [vmem:[%s89 + $0x38] sm:$0xf]
  %v105 = vld [vmem:[%s89 + $0x3c] sm:$0xf]
  %v106 = vld [vmem:[%s89 + $0x40] sm:$0xf]
  %v107 = vld [vmem:[%s89 + $0x44] sm:$0xf]
  %v108 = vld [vmem:[%s89 + $0x48] sm:$0xf]
  %v109 = vld [vmem:[%s89 + $0x4c] sm:$0xf]
  %v110 = vld [vmem:[%s89 + $0x50] sm:$0xf]
  %v111 = vld [vmem:[%s89 + $0x54] sm:$0xf]
  %v112 = vld [vmem:[%s89 + $0x58] sm:$0xf]
  %v113 = vld [vmem:[%s89 + $0x5c] sm:$0xf]
  %v114 = vld [vmem:[%s89 + $0x60] sm:$0xf]
  %v115 = vld [vmem:[%s89 + $0x64] sm:$0xf]
  %v116 = vld [vmem:[%s89 + $0x68] sm:$0xf]
  %v117 = vld [vmem:[%s89 + $0x6c] sm:$0xf]
  %v118 = vld [vmem:[%s89 + $0x70] sm:$0xf]
  %v119 = vld [vmem:[%s89 + $0x74] sm:$0xf]
  %v120 = vld [vmem:[%s89 + $0x78] sm:$0xf]
  %v121 = vld [vmem:[%s89 + $0x7c] sm:$0xf]
  %v122 = vld [vmem:[%s89 + $0x80] sm:$0xf]
  %v123 = vld [vmem:[%s89 + $0x84] sm:$0xf]
  %v124 = vld [vmem:[%s89 + $0x88] sm:$0xf]
  %v125 = vld [vmem:[%s89 + $0x8c] sm:$0xf]
  %v126 = vld [vmem:[%s89 + $0x90] sm:$0xf]
  %v127 = vld [vmem:[%s89 + $0x94] sm:$0xf]
  %v128 = vld [vmem:[%s89 + $0x98] sm:$0xf]
  %v129 = vld [vmem:[%s89 + $0x9c] sm:$0xf]
  %v130 = vld [vmem:[%s89 + $0xa0] sm:$0xf]
  %v131 = vld [vmem:[%s89 + $0xa4] sm:$0xf]
  %v132 = vld [vmem:[%s89 + $0xa8] sm:$0xf]
  %v133 = vld [vmem:[%s89 + $0xac] sm:$0xf]
  %v134 = vld [vmem:[%s89 + $0xb0] sm:$0xf]
  %v135 = vld [vmem:[%s89 + $0xb4] sm:$0xf]
  %v136 = vld [vmem:[%s89 + $0xb8] sm:$0xf]
  %v137 = vld [vmem:[%s89 + $0xbc] sm:$0xf]
  %v138 = vld [vmem:[%s89 + $0xc0] sm:$0xf]
  %v139 = vld [vmem:[%s89 + $0xc4] sm:$0xf]
  %v140 = vld [vmem:[%s89 + $0xc8] sm:$0xf]
  %v141 = vld [vmem:[%s89 + $0xcc] sm:$0xf]
  %v142 = vld [vmem:[%s89 + $0xd0] sm:$0xf]
  %v143 = vld [vmem:[%s89 + $0xd4] sm:$0xf]
  %v144 = vld [vmem:[%s89 + $0xd8] sm:$0xf]
  %v145 = vld [vmem:[%s89 + $0xdc] sm:$0xf]
  %v146 = vld [vmem:[%s89 + $0xe0] sm:$0xf]
  %v147 = vld [vmem:[%s89 + $0xe4] sm:$0xf]
  %v148 = vld [vmem:[%s89 + $0xe8] sm:$0xf]
  %v149 = vld [vmem:[%s89 + $0xec] sm:$0xf]
  %v150 = vld [vmem:[%s89 + $0xf0] sm:$0xf]
  %v151 = vld [vmem:[%s89 + $0xf4] sm:$0xf]
  %v152 = vld [vmem:[%s89 + $0xf8] sm:$0xf]
  %v153 = vld [vmem:[%s89 + $0xfc] sm:$0xf]
  %v154 = vld [vmem:[#allocation2] sm:$0xff]
  %v155 = vld [vmem:[#allocation2 + $0x8] sm:$0xff]
  %v156 = vld [vmem:[#allocation2 + $0x10] sm:$0xff]
  %v157 = vld [vmem:[#allocation2 + $0x18] sm:$0xff]
  %v158 = vld [vmem:[#allocation2 + $0x20] sm:$0xff]
  %v159 = vld [vmem:[#allocation2 + $0x28] sm:$0xff]
  %v160 = vld [vmem:[#allocation2 + $0x30] sm:$0xff]
  %v161 = vld [vmem:[#allocation2 + $0x38] sm:$0xff]
  %v162 = vld [vmem:[#allocation2 + $0x40] sm:$0xff]
  %v163 = vld [vmem:[#allocation2 + $0x48] sm:$0xff]
  %v164 = vld [vmem:[#allocation2 + $0x50] sm:$0xff]
  %v165 = vld [vmem:[#allocation2 + $0x58] sm:$0xff]
  %v166 = vld [vmem:[#allocation2 + $0x60] sm:$0xff]
  %v167 = vld [vmem:[#allocation2 + $0x68] sm:$0xff]
  %v168 = vld [vmem:[#allocation2 + $0x70] sm:$0xff]
  %v169 = vld [vmem:[#allocation2 + $0x78] sm:$0xff]
  %v170 = vld [vmem:[#allocation2 + $0x80] sm:$0xff]
  %v171 = vld [vmem:[#allocation2 + $0x88] sm:$0xff]
  %v172 = vld [vmem:[#allocation2 + $0x90] sm:$0xff]
  %v173 = vld [vmem:[#allocation2 + $0x98] sm:$0xff]
  %v174 = vld [vmem:[#allocation2 + $0xa0] sm:$0xff]
  %v175 = vld [vmem:[#allocation2 + $0xa8] sm:$0xff]
  %v176 = vld [vmem:[#allocation2 + $0xb0] sm:$0xff]
  %v177 = vld [vmem:[#allocation2 + $0xb8] sm:$0xff]
  %v178 = vld [vmem:[#allocation2 + $0xc0] sm:$0xff]
  %v179 = vld [vmem:[#allocation2 + $0xc8] sm:$0xff]
  %v180 = vld [vmem:[#allocation2 + $0xd0] sm:$0xff]
  %v181 = vld [vmem:[#allocation2 + $0xd8] sm:$0xff]
  %v182 = vld [vmem:[#allocation2 + $0xe0] sm:$0xff]
  %v183 = vld [vmem:[#allocation2 + $0xe8] sm:$0xff]
  %v184 = vld [vmem:[#allocation2 + $0xf0] sm:$0xff]
  %v185 = vld [vmem:[#allocation2 + $0xf8] sm:$0xff]
  %v186 = vld [vmem:[#allocation2 + $0x100] sm:$0xff]
  %v187 = vld [vmem:[#allocation2 + $0x108] sm:$0xff]
  %v188 = vld [vmem:[#allocation2 + $0x110] sm:$0xff]
  %v189 = vld [vmem:[#allocation2 + $0x118] sm:$0xff]
  %v190 = vld [vmem:[#allocation2 + $0x120] sm:$0xff]
  %v191 = vld [vmem:[#allocation2 + $0x128] sm:$0xff]
  %v192 = vld [vmem:[#allocation2 + $0x130] sm:$0xff]
  %v193 = vld [vmem:[#allocation2 + $0x138] sm:$0xff]
  %v194 = vld [vmem:[#allocation2 + $0x140] sm:$0xff]
  %v195 = vld [vmem:[#allocation2 + $0x148] sm:$0xff]
  %v196 = vld [vmem:[#allocation2 + $0x150] sm:$0xff]
  %v197 = vld [vmem:[#allocation2 + $0x158] sm:$0xff]
  %v198 = vld [vmem:[#allocation2 + $0x160] sm:$0xff]
  %v199 = vld [vmem:[#allocation2 + $0x168] sm:$0xff]
  %v200 = vld [vmem:[#allocation2 + $0x170] sm:$0xff]
  %v201 = vld [vmem:[#allocation2 + $0x178] sm:$0xff]
  %v202 = vld [vmem:[#allocation2 + $0x180] sm:$0xff]
  %v203 = vld [vmem:[#allocation2 + $0x188] sm:$0xff]
  %v204 = vld [vmem:[#allocation2 + $0x190] sm:$0xff]
  %v205 = vld [vmem:[#allocation2 + $0x198] sm:$0xff]
  %v206 = vld [vmem:[#allocation2 + $0x1a0] sm:$0xff]
  %v207 = vld [vmem:[#allocation2 + $0x1a8] sm:$0xff]
  %v208 = vld [vmem:[#allocation2 + $0x1b0] sm:$0xff]
  %v209 = vld [vmem:[#allocation2 + $0x1b8] sm:$0xff]
  %v210 = vld [vmem:[#allocation2 + $0x1c0] sm:$0xff]
  %v211 = vld [vmem:[#allocation2 + $0x1c8] sm:$0xff]
  %v212 = vld [vmem:[#allocation2 + $0x1d0] sm:$0xff]
  %v213 = vld [vmem:[#allocation2 + $0x1d8] sm:$0xff]
  %v214 = vld [vmem:[#allocation2 + $0x1e0] sm:$0xff]
  %v215 = vld [vmem:[#allocation2 + $0x1e8] sm:$0xff]
  %v216 = vld [vmem:[#allocation2 + $0x1f0] sm:$0xff]
  %v217 = vld [vmem:[#allocation2 + $0x1f8] sm:$0xff]
  %v218 = vld [vmem:[%s0] sm:$0xff]
  %v219 = vld [vmem:[%s0 + $0x8] sm:$0xff]
  %v220 = vld [vmem:[%s0 + $0x10] sm:$0xff]
  %v221 = vld [vmem:[%s0 + $0x18] sm:$0xff]
  %v222 = vld [vmem:[%s0 + $0x20] sm:$0xff]
  %v223 = vld [vmem:[%s0 + $0x28] sm:$0xff]
  %v224 = vld [vmem:[%s0 + $0x30] sm:$0xff]
  %v225 = vld [vmem:[%s0 + $0x38] sm:$0xff]
  %v226 = vld [vmem:[%s0 + $0x40] sm:$0xff]
  %v227 = vld [vmem:[%s0 + $0x48] sm:$0xff]
  %v228 = vld [vmem:[%s0 + $0x50] sm:$0xff]
  %v229 = vld [vmem:[%s0 + $0x58] sm:$0xff]
  %v230 = vld [vmem:[%s0 + $0x60] sm:$0xff]
  %v231 = vld [vmem:[%s0 + $0x68] sm:$0xff]
  %v232 = vld [vmem:[%s0 + $0x70] sm:$0xff]
  %v233 = vld [vmem:[%s0 + $0x78] sm:$0xff]
  %v234 = vld [vmem:[%s0 + $0x80] sm:$0xff]
  %v235 = vld [vmem:[%s0 + $0x88] sm:$0xff]
  %v236 = vld [vmem:[%s0 + $0x90] sm:$0xff]
  %v237 = vld [vmem:[%s0 + $0x98] sm:$0xff]
  %v238 = vld [vmem:[%s0 + $0xa0] sm:$0xff]
  %v239 = vld [vmem:[%s0 + $0xa8] sm:$0xff]
  %v240 = vld [vmem:[%s0 + $0xb0] sm:$0xff]
  %v241 = vld [vmem:[%s0 + $0xb8] sm:$0xff]
  %v242 = vld [vmem:[%s0 + $0xc0] sm:$0xff]
  %v243 = vld [vmem:[%s0 + $0xc8] sm:$0xff]
  %v244 = vld [vmem:[%s0 + $0xd0] sm:$0xff]
  %v245 = vld [vmem:[%s0 + $0xd8] sm:$0xff]
  %v246 = vld [vmem:[%s0 + $0xe0] sm:$0xff]
  %v247 = vld [vmem:[%s0 + $0xe8] sm:$0xff]
  %v248 = vld [vmem:[%s0 + $0xf0] sm:$0xff]
  %v249 = vld [vmem:[%s0 + $0xf8] sm:$0xff]
  %v250 = vld [vmem:[%s0 + $0x100] sm:$0xff]
  %v251 = vld [vmem:[%s0 + $0x108] sm:$0xff]
  %v252 = vld [vmem:[%s0 + $0x110] sm:$0xff]
  %v253 = vld [vmem:[%s0 + $0x118] sm:$0xff]
  %v254 = vld [vmem:[%s0 + $0x120] sm:$0xff]
  %v255 = vld [vmem:[%s0 + $0x128] sm:$0xff]
  %v256 = vld [vmem:[%s0 + $0x130] sm:$0xff]
  %v257 = vld [vmem:[%s0 + $0x138] sm:$0xff]
  %v258 = vld [vmem:[%s0 + $0x140] sm:$0xff]
  %v259 = vld [vmem:[%s0 + $0x148] sm:$0xff]
  %v260 = vld [vmem:[%s0 + $0x150] sm:$0xff]
  %v261 = vld [vmem:[%s0 + $0x158] sm:$0xff]
  %v262 = vld [vmem:[%s0 + $0x160] sm:$0xff]
  %v263 = vld [vmem:[%s0 + $0x168] sm:$0xff]
  %v264 = vld [vmem:[%s0 + $0x170] sm:$0xff]
  %v265 = vld [vmem:[%s0 + $0x178] sm:$0xff]
  %v266 = vld [vmem:[%s0 + $0x180] sm:$0xff]
  %v267 = vld [vmem:[%s0 + $0x188] sm:$0xff]
  %v268 = vld [vmem:[%s0 + $0x190] sm:$0xff]
  %v269 = vld [vmem:[%s0 + $0x198] sm:$0xff]
  %v270 = vld [vmem:[%s0 + $0x1a0] sm:$0xff]
  %v271 = vld [vmem:[%s0 + $0x1a8] sm:$0xff]
  %v272 = vld [vmem:[%s0 + $0x1b0] sm:$0xff]
  %v273 = vld [vmem:[%s0 + $0x1b8] sm:$0xff]
  %v274 = vld [vmem:[%s0 + $0x1c0] sm:$0xff]
  %v275 = vld [vmem:[%s0 + $0x1c8] sm:$0xff]
  %v276 = vld [vmem:[%s0 + $0x1d0] sm:$0xff]
  %v277 = vld [vmem:[%s0 + $0x1d8] sm:$0xff]
  %v278 = vld [vmem:[%s0 + $0x1e0] sm:$0xff]
  %v279 = vld [vmem:[%s0 + $0x1e8] sm:$0xff]
  %v280 = vld [vmem:[%s0 + $0x1f0] sm:$0xff]
  %v281 = vld [vmem:[%s0 + $0x1f8] sm:$0xff]
  %v282 = vld [vmem:[%s0 + $0x200] sm:$0xff]
  %v283 = vld [vmem:[%s0 + $0x208] sm:$0xff]
  %v284 = vld [vmem:[%s0 + $0x210] sm:$0xff]
  %v285 = vld [vmem:[%s0 + $0x218] sm:$0xff]
  %v286 = vld [vmem:[%s0 + $0x220] sm:$0xff]
  %v287 = vld [vmem:[%s0 + $0x228] sm:$0xff]
  %v288 = vld [vmem:[%s0 + $0x230] sm:$0xff]
  %v289 = vld [vmem:[%s0 + $0x238] sm:$0xff]
  %v290 = vld [vmem:[%s0 + $0x240] sm:$0xff]
  %v291 = vld [vmem:[%s0 + $0x248] sm:$0xff]
  %v292 = vld [vmem:[%s0 + $0x250] sm:$0xff]
  %v293 = vld [vmem:[%s0 + $0x258] sm:$0xff]
  %v294 = vld [vmem:[%s0 + $0x260] sm:$0xff]
  %v295 = vld [vmem:[%s0 + $0x268] sm:$0xff]
  %v296 = vld [vmem:[%s0 + $0x270] sm:$0xff]
  %v297 = vld [vmem:[%s0 + $0x278] sm:$0xff]
  %v298 = vld [vmem:[%s0 + $0x280] sm:$0xff]
  %v299 = vld [vmem:[%s0 + $0x288] sm:$0xff]
  %v300 = vld [vmem:[%s0 + $0x290] sm:$0xff]
  %v301 = vld [vmem:[%s0 + $0x298] sm:$0xff]
  %v302 = vld [vmem:[%s0 + $0x2a0] sm:$0xff]
  %v303 = vld [vmem:[%s0 + $0x2a8] sm:$0xff]
  %v304 = vld [vmem:[%s0 + $0x2b0] sm:$0xff]
  %v305 = vld [vmem:[%s0 + $0x2b8] sm:$0xff]
  %v306 = vld [vmem:[%s0 + $0x2c0] sm:$0xff]
  %v307 = vld [vmem:[%s0 + $0x2c8] sm:$0xff]
  %v308 = vld [vmem:[%s0 + $0x2d0] sm:$0xff]
  %v309 = vld [vmem:[%s0 + $0x2d8] sm:$0xff]
  %v310 = vld [vmem:[%s0 + $0x2e0] sm:$0xff]
  %v311 = vld [vmem:[%s0 + $0x2e8] sm:$0xff]
  %v312 = vld [vmem:[%s0 + $0x2f0] sm:$0xff]
  %v313 = vld [vmem:[%s0 + $0x2f8] sm:$0xff]
  %v314 = vld [vmem:[%s0 + $0x300] sm:$0xff]
  %v315 = vld [vmem:[%s0 + $0x308] sm:$0xff]
  %v316 = vld [vmem:[%s0 + $0x310] sm:$0xff]
  %v317 = vld [vmem:[%s0 + $0x318] sm:$0xff]
  %v318 = vld [vmem:[%s0 + $0x320] sm:$0xff]
  %v319 = vld [vmem:[%s0 + $0x328] sm:$0xff]
  %v320 = vld [vmem:[%s0 + $0x330] sm:$0xff]
  %v321 = vld [vmem:[%s0 + $0x338] sm:$0xff]
  %v322 = vld [vmem:[%s0 + $0x340] sm:$0xff]
  %v323 = vld [vmem:[%s0 + $0x348] sm:$0xff]
  %v324 = vld [vmem:[%s0 + $0x350] sm:$0xff]
  %v325 = vld [vmem:[%s0 + $0x358] sm:$0xff]
  %v326 = vld [vmem:[%s0 + $0x360] sm:$0xff]
  %v327 = vld [vmem:[%s0 + $0x368] sm:$0xff]
  %v328 = vld [vmem:[%s0 + $0x370] sm:$0xff]
  %v329 = vld [vmem:[%s0 + $0x378] sm:$0xff]
  %v330 = vld [vmem:[%s0 + $0x380] sm:$0xff]
  %v331 = vld [vmem:[%s0 + $0x388] sm:$0xff]
  %v332 = vld [vmem:[%s0 + $0x390] sm:$0xff]
  %v333 = vld [vmem:[%s0 + $0x398] sm:$0xff]
  %v334 = vld [vmem:[%s0 + $0x3a0] sm:$0xff]
  %v335 = vld [vmem:[%s0 + $0x3a8] sm:$0xff]
  %v336 = vld [vmem:[%s0 + $0x3b0] sm:$0xff]
  %v337 = vld [vmem:[%s0 + $0x3b8] sm:$0xff]
  %v338 = vld [vmem:[%s0 + $0x3c0] sm:$0xff]
  %v339 = vld [vmem:[%s0 + $0x3c8] sm:$0xff]
  %v340 = vld [vmem:[%s0 + $0x3d0] sm:$0xff]
  %v341 = vld [vmem:[%s0 + $0x3d8] sm:$0xff]
  %v342 = vld [vmem:[%s0 + $0x3e0] sm:$0xff]
  %v343 = vld [vmem:[%s0 + $0x3e8] sm:$0xff]
  %v344 = vld [vmem:[%s0 + $0x3f0] sm:$0xff]
  %v345 = vld [vmem:[%s0 + $0x3f8] sm:$0xff]
  %v474 = vunpack.c.l.b16 %v218
  %v475 = vunpack.c.h.b16 %v218
  %v476 = vunpack.c.l.b16 %v219
  %v477 = vunpack.c.h.b16 %v219
  %v478 = vunpack.c.l.b16 %v220
  %v479 = vunpack.c.h.b16 %v220
  %v480 = vunpack.c.l.b16 %v221
  %v481 = vunpack.c.h.b16 %v221
  %v482 = vunpack.c.l.b16 %v222
  %v483 = vunpack.c.h.b16 %v222
  %v484 = vunpack.c.l.b16 %v223
  %v485 = vunpack.c.h.b16 %v223
  %v486 = vunpack.c.l.b16 %v224
  %v487 = vunpack.c.h.b16 %v224
  %v488 = vunpack.c.l.b16 %v225
  %v489 = vunpack.c.h.b16 %v225
  %v490 = vunpack.c.l.b16 %v226
  %v491 = vunpack.c.h.b16 %v226
  %v492 = vunpack.c.l.b16 %v227
  %v493 = vunpack.c.h.b16 %v227
  %v494 = vunpack.c.l.b16 %v228
  %v495 = vunpack.c.h.b16 %v228
  %v496 = vunpack.c.l.b16 %v229
  %v497 = vunpack.c.h.b16 %v229
  %v498 = vunpack.c.l.b16 %v230
  %v499 = vunpack.c.h.b16 %v230
  %v500 = vunpack.c.l.b16 %v231
  %v501 = vunpack.c.h.b16 %v231
  %v502 = vunpack.c.l.b16 %v232
  %v503 = vunpack.c.h.b16 %v232
  %v504 = vunpack.c.l.b16 %v233
  %v505 = vunpack.c.h.b16 %v233
  %v506 = vunpack.c.l.b16 %v234
  %v507 = vunpack.c.h.b16 %v234
  %v508 = vunpack.c.l.b16 %v235
  %v509 = vunpack.c.h.b16 %v235
  %v510 = vunpack.c.l.b16 %v236
  %v511 = vunpack.c.h.b16 %v236
  %v512 = vunpack.c.l.b16 %v237
  %v513 = vunpack.c.h.b16 %v237
  %v514 = vunpack.c.l.b16 %v238
  %v515 = vunpack.c.h.b16 %v238
  %v516 = vunpack.c.l.b16 %v239
  %v517 = vunpack.c.h.b16 %v239
  %v518 = vunpack.c.l.b16 %v240
  %v519 = vunpack.c.h.b16 %v240
  %v520 = vunpack.c.l.b16 %v241
  %v521 = vunpack.c.h.b16 %v241
  %v522 = vunpack.c.l.b16 %v242
  %v523 = vunpack.c.h.b16 %v242
  %v524 = vunpack.c.l.b16 %v243
  %v525 = vunpack.c.h.b16 %v243
  %v526 = vunpack.c.l.b16 %v244
  %v527 = vunpack.c.h.b16 %v244
  %v528 = vunpack.c.l.b16 %v245
  %v529 = vunpack.c.h.b16 %v245
  %v530 = vunpack.c.l.b16 %v246
  %v531 = vunpack.c.h.b16 %v246
  %v532 = vunpack.c.l.b16 %v247
  %v533 = vunpack.c.h.b16 %v247
  %v534 = vunpack.c.l.b16 %v248
  %v535 = vunpack.c.h.b16 %v248
  %v536 = vunpack.c.l.b16 %v249
  %v537 = vunpack.c.h.b16 %v249
  %v538 = vunpack.c.l.b16 %v250
  %v539 = vunpack.c.h.b16 %v250
  %v540 = vunpack.c.l.b16 %v251
  %v541 = vunpack.c.h.b16 %v251
  %v542 = vunpack.c.l.b16 %v252
  %v543 = vunpack.c.h.b16 %v252
  %v544 = vunpack.c.l.b16 %v253
  %v545 = vunpack.c.h.b16 %v253
  %v546 = vunpack.c.l.b16 %v254
  %v547 = vunpack.c.h.b16 %v254
  %v548 = vunpack.c.l.b16 %v255
  %v549 = vunpack.c.h.b16 %v255
  %v550 = vunpack.c.l.b16 %v256
  %v551 = vunpack.c.h.b16 %v256
  %v552 = vunpack.c.l.b16 %v257
  %v553 = vunpack.c.h.b16 %v257
  %v554 = vunpack.c.l.b16 %v258
  %v555 = vunpack.c.h.b16 %v258
  %v556 = vunpack.c.l.b16 %v259
  %v557 = vunpack.c.h.b16 %v259
  %v558 = vunpack.c.l.b16 %v260
  %v559 = vunpack.c.h.b16 %v260
  %v560 = vunpack.c.l.b16 %v261
  %v561 = vunpack.c.h.b16 %v261
  %v562 = vunpack.c.l.b16 %v262
  %v563 = vunpack.c.h.b16 %v262
  %v564 = vunpack.c.l.b16 %v263
  %v565 = vunpack.c.h.b16 %v263
  %v566 = vunpack.c.l.b16 %v264
  %v567 = vunpack.c.h.b16 %v264
  %v568 = vunpack.c.l.b16 %v265
  %v569 = vunpack.c.h.b16 %v265
  %v570 = vunpack.c.l.b16 %v266
  %v571 = vunpack.c.h.b16 %v266
  %v572 = vunpack.c.l.b16 %v267
  %v573 = vunpack.c.h.b16 %v267
  %v574 = vunpack.c.l.b16 %v268
  %v575 = vunpack.c.h.b16 %v268
  %v576 = vunpack.c.l.b16 %v269
  %v577 = vunpack.c.h.b16 %v269
  %v578 = vunpack.c.l.b16 %v270
  %v579 = vunpack.c.h.b16 %v270
  %v580 = vunpack.c.l.b16 %v271
  %v581 = vunpack.c.h.b16 %v271
  %v582 = vunpack.c.l.b16 %v272
  %v583 = vunpack.c.h.b16 %v272
  %v584 = vunpack.c.l.b16 %v273
  %v585 = vunpack.c.h.b16 %v273
  %v586 = vunpack.c.l.b16 %v274
  %v587 = vunpack.c.h.b16 %v274
  %v588 = vunpack.c.l.b16 %v275
  %v589 = vunpack.c.h.b16 %v275
  %v590 = vunpack.c.l.b16 %v276
  %v591 = vunpack.c.h.b16 %v276
  %v592 = vunpack.c.l.b16 %v277
  %v593 = vunpack.c.h.b16 %v277
  %v594 = vunpack.c.l.b16 %v278
  %v595 = vunpack.c.h.b16 %v278
  %v596 = vunpack.c.l.b16 %v279
  %v597 = vunpack.c.h.b16 %v279
  %v598 = vunpack.c.l.b16 %v280
  %v599 = vunpack.c.h.b16 %v280
  %v600 = vunpack.c.l.b16 %v281
  %v601 = vunpack.c.h.b16 %v281
  %v602 = vunpack.c.l.b16 %v282
  %v603 = vunpack.c.h.b16 %v282
  %v604 = vunpack.c.l.b16 %v283
  %v605 = vunpack.c.h.b16 %v283
  %v606 = vunpack.c.l.b16 %v284
  %v607 = vunpack.c.h.b16 %v284
  %v608 = vunpack.c.l.b16 %v285
  %v609 = vunpack.c.h.b16 %v285
  %v610 = vunpack.c.l.b16 %v286
  %v611 = vunpack.c.h.b16 %v286
  %v612 = vunpack.c.l.b16 %v287
  %v613 = vunpack.c.h.b16 %v287
  %v614 = vunpack.c.l.b16 %v288
  %v615 = vunpack.c.h.b16 %v288
  %v616 = vunpack.c.l.b16 %v289
  %v617 = vunpack.c.h.b16 %v289
  %v618 = vunpack.c.l.b16 %v290
  %v619 = vunpack.c.h.b16 %v290
  %v620 = vunpack.c.l.b16 %v291
  %v621 = vunpack.c.h.b16 %v291
  %v622 = vunpack.c.l.b16 %v292
  %v623 = vunpack.c.h.b16 %v292
  %v624 = vunpack.c.l.b16 %v293
  %v625 = vunpack.c.h.b16 %v293
  %v626 = vunpack.c.l.b16 %v294
  %v627 = vunpack.c.h.b16 %v294
  %v628 = vunpack.c.l.b16 %v295
  %v629 = vunpack.c.h.b16 %v295
  %v630 = vunpack.c.l.b16 %v296
  %v631 = vunpack.c.h.b16 %v296
  %v632 = vunpack.c.l.b16 %v297
  %v633 = vunpack.c.h.b16 %v297
  %v634 = vunpack.c.l.b16 %v298
  %v635 = vunpack.c.h.b16 %v298
  %v636 = vunpack.c.l.b16 %v299
  %v637 = vunpack.c.h.b16 %v299
  %v638 = vunpack.c.l.b16 %v300
  %v639 = vunpack.c.h.b16 %v300
  %v640 = vunpack.c.l.b16 %v301
  %v641 = vunpack.c.h.b16 %v301
  %v642 = vunpack.c.l.b16 %v302
  %v643 = vunpack.c.h.b16 %v302
  %v644 = vunpack.c.l.b16 %v303
  %v645 = vunpack.c.h.b16 %v303
  %v646 = vunpack.c.l.b16 %v304
  %v647 = vunpack.c.h.b16 %v304
  %v648 = vunpack.c.l.b16 %v305
  %v649 = vunpack.c.h.b16 %v305
  %v650 = vunpack.c.l.b16 %v306
  %v651 = vunpack.c.h.b16 %v306
  %v652 = vunpack.c.l.b16 %v307
  %v653 = vunpack.c.h.b16 %v307
  %v654 = vunpack.c.l.b16 %v308
  %v655 = vunpack.c.h.b16 %v308
  %v656 = vunpack.c.l.b16 %v309
  %v657 = vunpack.c.h.b16 %v309
  %v658 = vunpack.c.l.b16 %v310
  %v659 = vunpack.c.h.b16 %v310
  %v660 = vunpack.c.l.b16 %v311
  %v661 = vunpack.c.h.b16 %v311
  %v662 = vunpack.c.l.b16 %v312
  %v663 = vunpack.c.h.b16 %v312
  %v664 = vunpack.c.l.b16 %v313
  %v665 = vunpack.c.h.b16 %v313
  %v666 = vunpack.c.l.b16 %v314
  %v667 = vunpack.c.h.b16 %v314
  %v668 = vunpack.c.l.b16 %v315
  %v669 = vunpack.c.h.b16 %v315
  %v670 = vunpack.c.l.b16 %v316
  %v671 = vunpack.c.h.b16 %v316
  %v672 = vunpack.c.l.b16 %v317
  %v673 = vunpack.c.h.b16 %v317
  %v674 = vunpack.c.l.b16 %v318
  %v675 = vunpack.c.h.b16 %v318
  %v676 = vunpack.c.l.b16 %v319
  %v677 = vunpack.c.h.b16 %v319
  %v678 = vunpack.c.l.b16 %v320
  %v679 = vunpack.c.h.b16 %v320
  %v680 = vunpack.c.l.b16 %v321
  %v681 = vunpack.c.h.b16 %v321
  %v682 = vunpack.c.l.b16 %v322
  %v683 = vunpack.c.h.b16 %v322
  %v684 = vunpack.c.l.b16 %v323
  %v685 = vunpack.c.h.b16 %v323
  %v686 = vunpack.c.l.b16 %v324
  %v687 = vunpack.c.h.b16 %v324
  %v688 = vunpack.c.l.b16 %v325
  %v689 = vunpack.c.h.b16 %v325
  %v690 = vunpack.c.l.b16 %v326
  %v691 = vunpack.c.h.b16 %v326
  %v692 = vunpack.c.l.b16 %v327
  %v693 = vunpack.c.h.b16 %v327
  %v694 = vunpack.c.l.b16 %v328
  %v695 = vunpack.c.h.b16 %v328
  %v696 = vunpack.c.l.b16 %v329
  %v697 = vunpack.c.h.b16 %v329
  %v698 = vunpack.c.l.b16 %v330
  %v699 = vunpack.c.h.b16 %v330
  %v700 = vunpack.c.l.b16 %v331
  %v701 = vunpack.c.h.b16 %v331
  %v702 = vunpack.c.l.b16 %v332
  %v703 = vunpack.c.h.b16 %v332
  %v704 = vunpack.c.l.b16 %v333
  %v705 = vunpack.c.h.b16 %v333
  %v706 = vunpack.c.l.b16 %v334
  %v707 = vunpack.c.h.b16 %v334
  %v708 = vunpack.c.l.b16 %v335
  %v709 = vunpack.c.h.b16 %v335
  %v710 = vunpack.c.l.b16 %v336
  %v711 = vunpack.c.h.b16 %v336
  %v712 = vunpack.c.l.b16 %v337
  %v713 = vunpack.c.h.b16 %v337
  %v714 = vunpack.c.l.b16 %v338
  %v715 = vunpack.c.h.b16 %v338
  %v716 = vunpack.c.l.b16 %v339
  %v717 = vunpack.c.h.b16 %v339
  %v718 = vunpack.c.l.b16 %v340
  %v719 = vunpack.c.h.b16 %v340
  %v720 = vunpack.c.l.b16 %v341
  %v721 = vunpack.c.h.b16 %v341
  %v722 = vunpack.c.l.b16 %v342
  %v723 = vunpack.c.h.b16 %v342
  %v724 = vunpack.c.l.b16 %v343
  %v725 = vunpack.c.h.b16 %v343
  %v726 = vunpack.c.l.b16 %v344
  %v727 = vunpack.c.h.b16 %v344
  %v728 = vunpack.c.l.b16 %v345
  %v729 = vunpack.c.h.b16 %v345
  %v730 = vpack.c.b16 %v478, %v474
  %v731 = vpack.c.b16 %v479, %v475
  %v732 = vpack.c.b16 %v480, %v476
  %v733 = vpack.c.b16 %v481, %v477
  %v734 = vpack.c.b16 %v486, %v482
  %v735 = vpack.c.b16 %v487, %v483
  %v736 = vpack.c.b16 %v488, %v484
  %v737 = vpack.c.b16 %v489, %v485
  %v738 = vpack.c.b16 %v494, %v490
  %v739 = vpack.c.b16 %v495, %v491
  %v740 = vpack.c.b16 %v496, %v492
  %v741 = vpack.c.b16 %v497, %v493
  %v742 = vpack.c.b16 %v502, %v498
  %v743 = vpack.c.b16 %v503, %v499
  %v744 = vpack.c.b16 %v504, %v500
  %v745 = vpack.c.b16 %v505, %v501
  %v746 = vpack.c.b16 %v510, %v506
  %v747 = vpack.c.b16 %v511, %v507
  %v748 = vpack.c.b16 %v512, %v508
  %v749 = vpack.c.b16 %v513, %v509
  %v750 = vpack.c.b16 %v518, %v514
  %v751 = vpack.c.b16 %v519, %v515
  %v752 = vpack.c.b16 %v520, %v516
  %v753 = vpack.c.b16 %v521, %v517
  %v754 = vpack.c.b16 %v526, %v522
  %v755 = vpack.c.b16 %v527, %v523
  %v756 = vpack.c.b16 %v528, %v524
  %v757 = vpack.c.b16 %v529, %v525
  %v758 = vpack.c.b16 %v534, %v530
  %v759 = vpack.c.b16 %v535, %v531
  %v760 = vpack.c.b16 %v536, %v532
  %v761 = vpack.c.b16 %v537, %v533
  %v762 = vpack.c.b16 %v542, %v538
  %v763 = vpack.c.b16 %v543, %v539
  %v764 = vpack.c.b16 %v544, %v540
  %v765 = vpack.c.b16 %v545, %v541
  %v766 = vpack.c.b16 %v550, %v546
  %v767 = vpack.c.b16 %v551, %v547
  %v768 = vpack.c.b16 %v552, %v548
  %v769 = vpack.c.b16 %v553, %v549
  %v770 = vpack.c.b16 %v558, %v554
  %v771 = vpack.c.b16 %v559, %v555
  %v772 = vpack.c.b16 %v560, %v556
  %v773 = vpack.c.b16 %v561, %v557
  %v774 = vpack.c.b16 %v566, %v562
  %v775 = vpack.c.b16 %v567, %v563
  %v776 = vpack.c.b16 %v568, %v564
  %v777 = vpack.c.b16 %v569, %v565
  %v778 = vpack.c.b16 %v574, %v570
  %v779 = vpack.c.b16 %v575, %v571
  %v780 = vpack.c.b16 %v576, %v572
  %v781 = vpack.c.b16 %v577, %v573
  %v782 = vpack.c.b16 %v582, %v578
  %v783 = vpack.c.b16 %v583, %v579
  %v784 = vpack.c.b16 %v584, %v580
  %v785 = vpack.c.b16 %v585, %v581
  %v786 = vpack.c.b16 %v590, %v586
  %v787 = vpack.c.b16 %v591, %v587
  %v788 = vpack.c.b16 %v592, %v588
  %v789 = vpack.c.b16 %v593, %v589
  %v790 = vpack.c.b16 %v598, %v594
  %v791 = vpack.c.b16 %v599, %v595
  %v792 = vpack.c.b16 %v600, %v596
  %v793 = vpack.c.b16 %v601, %v597
  %v794 = vpack.c.b16 %v606, %v602
  %v795 = vpack.c.b16 %v607, %v603
  %v796 = vpack.c.b16 %v608, %v604
  %v797 = vpack.c.b16 %v609, %v605
  %v798 = vpack.c.b16 %v614, %v610
  %v799 = vpack.c.b16 %v615, %v611
  %v800 = vpack.c.b16 %v616, %v612
  %v801 = vpack.c.b16 %v617, %v613
  %v802 = vpack.c.b16 %v622, %v618
  %v803 = vpack.c.b16 %v623, %v619
  %v804 = vpack.c.b16 %v624, %v620
  %v805 = vpack.c.b16 %v625, %v621
  %v806 = vpack.c.b16 %v630, %v626
  %v807 = vpack.c.b16 %v631, %v627
  %v808 = vpack.c.b16 %v632, %v628
  %v809 = vpack.c.b16 %v633, %v629
  %v810 = vpack.c.b16 %v638, %v634
  %v811 = vpack.c.b16 %v639, %v635
  %v812 = vpack.c.b16 %v640, %v636
  %v813 = vpack.c.b16 %v641, %v637
  %v814 = vpack.c.b16 %v646, %v642
  %v815 = vpack.c.b16 %v647, %v643
  %v816 = vpack.c.b16 %v648, %v644
  %v817 = vpack.c.b16 %v649, %v645
  %v818 = vpack.c.b16 %v654, %v650
  %v819 = vpack.c.b16 %v655, %v651
  %v820 = vpack.c.b16 %v656, %v652
  %v821 = vpack.c.b16 %v657, %v653
  %v822 = vpack.c.b16 %v662, %v658
  %v823 = vpack.c.b16 %v663, %v659
  %v824 = vpack.c.b16 %v664, %v660
  %v825 = vpack.c.b16 %v665, %v661
  %v826 = vpack.c.b16 %v670, %v666
  %v827 = vpack.c.b16 %v671, %v667
  %v828 = vpack.c.b16 %v672, %v668
  %v829 = vpack.c.b16 %v673, %v669
  %v830 = vpack.c.b16 %v678, %v674
  %v831 = vpack.c.b16 %v679, %v675
  %v832 = vpack.c.b16 %v680, %v676
  %v833 = vpack.c.b16 %v681, %v677
  %v834 = vpack.c.b16 %v686, %v682
  %v835 = vpack.c.b16 %v687, %v683
  %v836 = vpack.c.b16 %v688, %v684
  %v837 = vpack.c.b16 %v689, %v685
  %v838 = vpack.c.b16 %v694, %v690
  %v839 = vpack.c.b16 %v695, %v691
  %v840 = vpack.c.b16 %v696, %v692
  %v841 = vpack.c.b16 %v697, %v693
  %v842 = vpack.c.b16 %v702, %v698
  %v843 = vpack.c.b16 %v703, %v699
  %v844 = vpack.c.b16 %v704, %v700
  %v845 = vpack.c.b16 %v705, %v701
  %v846 = vpack.c.b16 %v710, %v706
  %v847 = vpack.c.b16 %v711, %v707
  %v848 = vpack.c.b16 %v712, %v708
  %v849 = vpack.c.b16 %v713, %v709
  %v850 = vpack.c.b16 %v718, %v714
  %v851 = vpack.c.b16 %v719, %v715
  %v852 = vpack.c.b16 %v720, %v716
  %v853 = vpack.c.b16 %v721, %v717
  %v854 = vpack.c.b16 %v726, %v722
  %v855 = vpack.c.b16 %v727, %v723
  %v856 = vpack.c.b16 %v728, %v724
  %v857 = vpack.c.b16 %v729, %v725
  %v1050 = vunpack.c.l.b16 %v90
  %v1051 = vunpack.c.l.b16 %v91
  %v1052 = vunpack.c.l.b16 %v92
  %v1053 = vunpack.c.l.b16 %v93
  %v1054 = vunpack.c.l.b16 %v94
  %v1055 = vunpack.c.l.b16 %v95
  %v1056 = vunpack.c.l.b16 %v96
  %v1057 = vunpack.c.l.b16 %v97
  %v1058 = vunpack.c.l.b16 %v98
  %v1059 = vunpack.c.l.b16 %v99
  %v1060 = vunpack.c.l.b16 %v100
  %v1061 = vunpack.c.l.b16 %v101
  %v1062 = vunpack.c.l.b16 %v102
  %v1063 = vunpack.c.l.b16 %v103
  %v1064 = vunpack.c.l.b16 %v104
  %v1065 = vunpack.c.l.b16 %v105
  %v1066 = vunpack.c.l.b16 %v106
  %v1067 = vunpack.c.l.b16 %v107
  %v1068 = vunpack.c.l.b16 %v108
  %v1069 = vunpack.c.l.b16 %v109
  %v1070 = vunpack.c.l.b16 %v110
  %v1071 = vunpack.c.l.b16 %v111
  %v1072 = vunpack.c.l.b16 %v112
  %v1073 = vunpack.c.l.b16 %v113
  %v1074 = vunpack.c.l.b16 %v114
  %v1075 = vunpack.c.l.b16 %v115
  %v1076 = vunpack.c.l.b16 %v116
  %v1077 = vunpack.c.l.b16 %v117
  %v1078 = vunpack.c.l.b16 %v118
  %v1079 = vunpack.c.l.b16 %v119
  %v1080 = vunpack.c.l.b16 %v120
  %v1081 = vunpack.c.l.b16 %v121
  %v1082 = vunpack.c.l.b16 %v122
  %v1083 = vunpack.c.l.b16 %v123
  %v1084 = vunpack.c.l.b16 %v124
  %v1085 = vunpack.c.l.b16 %v125
  %v1086 = vunpack.c.l.b16 %v126
  %v1087 = vunpack.c.l.b16 %v127
  %v1088 = vunpack.c.l.b16 %v128
  %v1089 = vunpack.c.l.b16 %v129
  %v1090 = vunpack.c.l.b16 %v130
  %v1091 = vunpack.c.l.b16 %v131
  %v1092 = vunpack.c.l.b16 %v132
  %v1093 = vunpack.c.l.b16 %v133
  %v1094 = vunpack.c.l.b16 %v134
  %v1095 = vunpack.c.l.b16 %v135
  %v1096 = vunpack.c.l.b16 %v136
  %v1097 = vunpack.c.l.b16 %v137
  %v1098 = vunpack.c.l.b16 %v138
  %v1099 = vunpack.c.l.b16 %v139
  %v1100 = vunpack.c.l.b16 %v140
  %v1101 = vunpack.c.l.b16 %v141
  %v1102 = vunpack.c.l.b16 %v142
  %v1103 = vunpack.c.l.b16 %v143
  %v1104 = vunpack.c.l.b16 %v144
  %v1105 = vunpack.c.l.b16 %v145
  %v1106 = vunpack.c.l.b16 %v146
  %v1107 = vunpack.c.l.b16 %v147
  %v1108 = vunpack.c.l.b16 %v148
  %v1109 = vunpack.c.l.b16 %v149
  %v1110 = vunpack.c.l.b16 %v150
  %v1111 = vunpack.c.l.b16 %v151
  %v1112 = vunpack.c.l.b16 %v152
  %v1113 = vunpack.c.l.b16 %v153
  %v1114 = vpack.c.b16 %v1051, %v1050
  %v1115 = vpack.c.b16 %v1053, %v1052
  %v1116 = vpack.c.b16 %v1055, %v1054
  %v1117 = vpack.c.b16 %v1057, %v1056
  %v1118 = vpack.c.b16 %v1059, %v1058
  %v1119 = vpack.c.b16 %v1061, %v1060
  %v1120 = vpack.c.b16 %v1063, %v1062
  %v1121 = vpack.c.b16 %v1065, %v1064
  %v1122 = vpack.c.b16 %v1067, %v1066
  %v1123 = vpack.c.b16 %v1069, %v1068
  %v1124 = vpack.c.b16 %v1071, %v1070
  %v1125 = vpack.c.b16 %v1073, %v1072
  %v1126 = vpack.c.b16 %v1075, %v1074
  %v1127 = vpack.c.b16 %v1077, %v1076
  %v1128 = vpack.c.b16 %v1079, %v1078
  %v1129 = vpack.c.b16 %v1081, %v1080
  %v1130 = vpack.c.b16 %v1083, %v1082
  %v1131 = vpack.c.b16 %v1085, %v1084
  %v1132 = vpack.c.b16 %v1087, %v1086
  %v1133 = vpack.c.b16 %v1089, %v1088
  %v1134 = vpack.c.b16 %v1091, %v1090
  %v1135 = vpack.c.b16 %v1093, %v1092
  %v1136 = vpack.c.b16 %v1095, %v1094
  %v1137 = vpack.c.b16 %v1097, %v1096
  %v1138 = vpack.c.b16 %v1099, %v1098
  %v1139 = vpack.c.b16 %v1101, %v1100
  %v1140 = vpack.c.b16 %v1103, %v1102
  %v1141 = vpack.c.b16 %v1105, %v1104
  %v1142 = vpack.c.b16 %v1107, %v1106
  %v1143 = vpack.c.b16 %v1109, %v1108
  %v1144 = vpack.c.b16 %v1111, %v1110
  %v1145 = vpack.c.b16 %v1113, %v1112
  %1178 = vmatprep.subr.bf16.mxu0 0
  %1179 = vmatpush1.bf16.msra.mxu0 %v1121
  %1180 = vmatprep.subr.bf16.mxu0 0
  %1181 = vmatpush1.bf16.msra.mxu0 %v1120
  %1182 = vmatprep.subr.bf16.mxu0 0
  %1183 = vmatpush1.bf16.msra.mxu0 %v1119
  %1184 = vmatprep.subr.bf16.mxu0 0
  %1185 = vmatpush1.bf16.msra.mxu0 %v1118
  %1186 = vmatprep.subr.bf16.mxu0 0
  %1187 = vmatpush1.bf16.msra.mxu0 %v1117
  %1188 = vmatprep.subr.bf16.mxu0 0
  %1189 = vmatpush1.bf16.msra.mxu0 %v1116
  %1190 = vmatprep.subr.bf16.mxu0 0
  %1191 = vmatpush1.bf16.msra.mxu0 %v1115
  %1192 = vmatprep.subr.bf16.mxu0 0
  %1193 = vmatpush1.bf16.msra.mxu0 %v1114
  %1194 = vmatprep.subr.bf16.mxu0 0
  %1195 = vmatpush2.bf16.msra.mxu0 %v1129
  %1196 = vmatprep.subr.bf16.mxu0 0
  %1197 = vmatpush2.bf16.msra.mxu0 %v1128
  %1198 = vmatprep.subr.bf16.mxu0 0
  %1199 = vmatpush2.bf16.msra.mxu0 %v1127
  %1200 = vmatprep.subr.bf16.mxu0 0
  %1201 = vmatpush2.bf16.msra.mxu0 %v1126
  %1202 = vmatprep.subr.bf16.mxu0 0
  %1203 = vmatpush2.bf16.msra.mxu0 %v1125
  %1204 = vmatprep.subr.bf16.mxu0 0
  %1205 = vmatpush2.bf16.msra.mxu0 %v1124
  %1206 = vmatprep.subr.bf16.mxu0 0
  %1207 = vmatpush2.bf16.msra.mxu0 %v1123
  %1208 = vmatprep.subr.bf16.mxu0 0
  %1209 = vmatpush2.bf16.msra.mxu0 %v1122
  %1210 = vmatprep.mubr.bf16.mxu0 %v731
  %1211 = vmatmul.mubr.bf16.gmra.mxu0 %v730
  %v1212 = vpop.f32.mrf.mxu0
  %v1213 = vadd.f32 0.0, %v1212
  %v1214 = vpop.f32.mrf.mxu0
  %v1215 = vpop.f32.mrf.mxu0
  %v1216 = vadd.f32 0.0, %v1215
  %v1217 = vpop.f32.mrf.mxu0
  %1218 = vmatprep.mubr.bf16.mxu0 %v735
  %1219 = vmatmul.mubr.bf16.gmra.mxu0 %v734
  %v1220 = vpop.f32.mrf.mxu0
  %v1221 = vadd.f32 0.0, %v1220
  %v1222 = vpop.f32.mrf.mxu0
  %v1223 = vpop.f32.mrf.mxu0
  %v1224 = vadd.f32 0.0, %v1223
  %v1225 = vpop.f32.mrf.mxu0
  %1226 = vmatprep.mubr.bf16.mxu0 %v739
  %1227 = vmatmul.mubr.bf16.gmra.mxu0 %v738
  %v1228 = vpop.f32.mrf.mxu0
  %v1229 = vadd.f32 0.0, %v1228
  %v1230 = vpop.f32.mrf.mxu0
  %v1231 = vpop.f32.mrf.mxu0
  %v1232 = vadd.f32 0.0, %v1231
  %v1233 = vpop.f32.mrf.mxu0
  %1234 = vmatprep.mubr.bf16.mxu0 %v743
  %1235 = vmatmul.mubr.bf16.gmra.mxu0 %v742
  %v1236 = vpop.f32.mrf.mxu0
  %v1237 = vadd.f32 0.0, %v1236
  %v1238 = vpop.f32.mrf.mxu0
  %v1239 = vpop.f32.mrf.mxu0
  %v1240 = vadd.f32 0.0, %v1239
  %v1241 = vpop.f32.mrf.mxu0
  %1242 = vmatprep.mubr.bf16.mxu0 %v747
  %1243 = vmatmul.mubr.bf16.gmra.mxu0 %v746
  %v1244 = vpop.f32.mrf.mxu0
  %v1245 = vadd.f32 0.0, %v1244
  %v1246 = vpop.f32.mrf.mxu0
  %v1247 = vpop.f32.mrf.mxu0
  %v1248 = vadd.f32 0.0, %v1247
  %v1249 = vpop.f32.mrf.mxu0
  %1250 = vmatprep.mubr.bf16.mxu0 %v751
  %1251 = vmatmul.mubr.bf16.gmra.mxu0 %v750
  %v1252 = vpop.f32.mrf.mxu0
  %v1253 = vadd.f32 0.0, %v1252
  %v1254 = vpop.f32.mrf.mxu0
  %v1255 = vpop.f32.mrf.mxu0
  %v1256 = vadd.f32 0.0, %v1255
  %v1257 = vpop.f32.mrf.mxu0
  %1258 = vmatprep.mubr.bf16.mxu0 %v755
  %1259 = vmatmul.mubr.bf16.gmra.mxu0 %v754
  %v1260 = vpop.f32.mrf.mxu0
  %v1261 = vadd.f32 0.0, %v1260
  %v1262 = vpop.f32.mrf.mxu0
  %v1263 = vpop.f32.mrf.mxu0
  %v1264 = vadd.f32 0.0, %v1263
  %v1265 = vpop.f32.mrf.mxu0
  %1266 = vmatprep.mubr.bf16.mxu0 %v759
  %1267 = vmatmul.mubr.bf16.gmra.mxu0 %v758
  %v1268 = vpop.f32.mrf.mxu0
  %v1269 = vadd.f32 0.0, %v1268
  %v1270 = vpop.f32.mrf.mxu0
  %v1271 = vpop.f32.mrf.mxu0
  %v1272 = vadd.f32 0.0, %v1271
  %v1273 = vpop.f32.mrf.mxu0
  %1274 = vmatprep.mubr.bf16.mxu0 %v763
  %1275 = vmatmul.mubr.bf16.gmra.mxu0 %v762
  %v1276 = vpop.f32.mrf.mxu0
  %v1277 = vadd.f32 0.0, %v1276
  %v1278 = vpop.f32.mrf.mxu0
  %v1279 = vpop.f32.mrf.mxu0
  %v1280 = vadd.f32 0.0, %v1279
  %v1281 = vpop.f32.mrf.mxu0
  %1282 = vmatprep.mubr.bf16.mxu0 %v767
  %1283 = vmatmul.mubr.bf16.gmra.mxu0 %v766
  %v1284 = vpop.f32.mrf.mxu0
  %v1285 = vadd.f32 0.0, %v1284
  %v1286 = vpop.f32.mrf.mxu0
  %v1287 = vpop.f32.mrf.mxu0
  %v1288 = vadd.f32 0.0, %v1287
  %v1289 = vpop.f32.mrf.mxu0
  %1290 = vmatprep.mubr.bf16.mxu0 %v771
  %1291 = vmatmul.mubr.bf16.gmra.mxu0 %v770
  %v1292 = vpop.f32.mrf.mxu0
  %v1293 = vadd.f32 0.0, %v1292
  %v1294 = vpop.f32.mrf.mxu0
  %v1295 = vpop.f32.mrf.mxu0
  %v1296 = vadd.f32 0.0, %v1295
  %v1297 = vpop.f32.mrf.mxu0
  %1298 = vmatprep.mubr.bf16.mxu0 %v775
  %1299 = vmatmul.mubr.bf16.gmra.mxu0 %v774
  %v1300 = vpop.f32.mrf.mxu0
  %v1301 = vadd.f32 0.0, %v1300
  %v1302 = vpop.f32.mrf.mxu0
  %v1303 = vpop.f32.mrf.mxu0
  %v1304 = vadd.f32 0.0, %v1303
  %v1305 = vpop.f32.mrf.mxu0
  %1306 = vmatprep.mubr.bf16.mxu0 %v779
  %1307 = vmatmul.mubr.bf16.gmra.mxu0 %v778
  %v1308 = vpop.f32.mrf.mxu0
  %v1309 = vadd.f32 0.0, %v1308
  %v1310 = vpop.f32.mrf.mxu0
  %v1311 = vpop.f32.mrf.mxu0
  %v1312 = vadd.f32 0.0, %v1311
  %v1313 = vpop.f32.mrf.mxu0
  %1314 = vmatprep.mubr.bf16.mxu0 %v783
  %1315 = vmatmul.mubr.bf16.gmra.mxu0 %v782
  %v1316 = vpop.f32.mrf.mxu0
  %v1317 = vadd.f32 0.0, %v1316
  %v1318 = vpop.f32.mrf.mxu0
  %v1319 = vpop.f32.mrf.mxu0
  %v1320 = vadd.f32 0.0, %v1319
  %v1321 = vpop.f32.mrf.mxu0
  %1322 = vmatprep.mubr.bf16.mxu0 %v787
  %1323 = vmatmul.mubr.bf16.gmra.mxu0 %v786
  %v1324 = vpop.f32.mrf.mxu0
  %v1325 = vadd.f32 0.0, %v1324
  %v1326 = vpop.f32.mrf.mxu0
  %v1327 = vpop.f32.mrf.mxu0
  %v1328 = vadd.f32 0.0, %v1327
  %v1329 = vpop.f32.mrf.mxu0
  %1330 = vmatprep.mubr.bf16.mxu0 %v791
  %1331 = vmatmul.mubr.bf16.gmra.mxu0 %v790
  %v1332 = vpop.f32.mrf.mxu0
  %v1333 = vadd.f32 0.0, %v1332
  %v1334 = vpop.f32.mrf.mxu0
  %v1335 = vpop.f32.mrf.mxu0
  %v1336 = vadd.f32 0.0, %v1335
  %v1337 = vpop.f32.mrf.mxu0
  %1338 = vmatprep.mubr.bf16.mxu0 %v795
  %1339 = vmatmul.mubr.bf16.gmra.mxu0 %v794
  %v1340 = vpop.f32.mrf.mxu0
  %v1341 = vadd.f32 0.0, %v1340
  %v1342 = vpop.f32.mrf.mxu0
  %v1343 = vpop.f32.mrf.mxu0
  %v1344 = vadd.f32 0.0, %v1343
  %v1345 = vpop.f32.mrf.mxu0
  %1346 = vmatprep.mubr.bf16.mxu0 %v799
  %1347 = vmatmul.mubr.bf16.gmra.mxu0 %v798
  %v1348 = vpop.f32.mrf.mxu0
  %v1349 = vadd.f32 0.0, %v1348
  %v1350 = vpop.f32.mrf.mxu0
  %v1351 = vpop.f32.mrf.mxu0
  %v1352 = vadd.f32 0.0, %v1351
  %v1353 = vpop.f32.mrf.mxu0
  %1354 = vmatprep.mubr.bf16.mxu0 %v803
  %1355 = vmatmul.mubr.bf16.gmra.mxu0 %v802
  %v1356 = vpop.f32.mrf.mxu0
  %v1357 = vadd.f32 0.0, %v1356
  %v1358 = vpop.f32.mrf.mxu0
  %v1359 = vpop.f32.mrf.mxu0
  %v1360 = vadd.f32 0.0, %v1359
  %v1361 = vpop.f32.mrf.mxu0
  %1362 = vmatprep.mubr.bf16.mxu0 %v807
  %1363 = vmatmul.mubr.bf16.gmra.mxu0 %v806
  %v1364 = vpop.f32.mrf.mxu0
  %v1365 = vadd.f32 0.0, %v1364
  %v1366 = vpop.f32.mrf.mxu0
  %v1367 = vpop.f32.mrf.mxu0
  %v1368 = vadd.f32 0.0, %v1367
  %v1369 = vpop.f32.mrf.mxu0
  %1370 = vmatprep.mubr.bf16.mxu0 %v811
  %1371 = vmatmul.mubr.bf16.gmra.mxu0 %v810
  %v1372 = vpop.f32.mrf.mxu0
  %v1373 = vadd.f32 0.0, %v1372
  %v1374 = vpop.f32.mrf.mxu0
  %v1375 = vpop.f32.mrf.mxu0
  %v1376 = vadd.f32 0.0, %v1375
  %v1377 = vpop.f32.mrf.mxu0
  %1378 = vmatprep.mubr.bf16.mxu0 %v815
  %1379 = vmatmul.mubr.bf16.gmra.mxu0 %v814
  %v1380 = vpop.f32.mrf.mxu0
  %v1381 = vadd.f32 0.0, %v1380
  %v1382 = vpop.f32.mrf.mxu0
  %v1383 = vpop.f32.mrf.mxu0
  %v1384 = vadd.f32 0.0, %v1383
  %v1385 = vpop.f32.mrf.mxu0
  %1386 = vmatprep.mubr.bf16.mxu0 %v819
  %1387 = vmatmul.mubr.bf16.gmra.mxu0 %v818
  %v1388 = vpop.f32.mrf.mxu0
  %v1389 = vadd.f32 0.0, %v1388
  %v1390 = vpop.f32.mrf.mxu0
  %v1391 = vpop.f32.mrf.mxu0
  %v1392 = vadd.f32 0.0, %v1391
  %v1393 = vpop.f32.mrf.mxu0
  %1394 = vmatprep.mubr.bf16.mxu0 %v823
  %1395 = vmatmul.mubr.bf16.gmra.mxu0 %v822
  %v1396 = vpop.f32.mrf.mxu0
  %v1397 = vadd.f32 0.0, %v1396
  %v1398 = vpop.f32.mrf.mxu0
  %v1399 = vpop.f32.mrf.mxu0
  %v1400 = vadd.f32 0.0, %v1399
  %v1401 = vpop.f32.mrf.mxu0
  %1402 = vmatprep.mubr.bf16.mxu0 %v827
  %1403 = vmatmul.mubr.bf16.gmra.mxu0 %v826
  %v1404 = vpop.f32.mrf.mxu0
  %v1405 = vadd.f32 0.0, %v1404
  %v1406 = vpop.f32.mrf.mxu0
  %v1407 = vpop.f32.mrf.mxu0
  %v1408 = vadd.f32 0.0, %v1407
  %v1409 = vpop.f32.mrf.mxu0
  %1410 = vmatprep.mubr.bf16.mxu0 %v831
  %1411 = vmatmul.mubr.bf16.gmra.mxu0 %v830
  %v1412 = vpop.f32.mrf.mxu0
  %v1413 = vadd.f32 0.0, %v1412
  %v1414 = vpop.f32.mrf.mxu0
  %v1415 = vpop.f32.mrf.mxu0
  %v1416 = vadd.f32 0.0, %v1415
  %v1417 = vpop.f32.mrf.mxu0
  %1418 = vmatprep.mubr.bf16.mxu0 %v835
  %1419 = vmatmul.mubr.bf16.gmra.mxu0 %v834
  %v1420 = vpop.f32.mrf.mxu0
  %v1421 = vadd.f32 0.0, %v1420
  %v1422 = vpop.f32.mrf.mxu0
  %v1423 = vpop.f32.mrf.mxu0
  %v1424 = vadd.f32 0.0, %v1423
  %v1425 = vpop.f32.mrf.mxu0
  %1426 = vmatprep.mubr.bf16.mxu0 %v839
  %1427 = vmatmul.mubr.bf16.gmra.mxu0 %v838
  %v1428 = vpop.f32.mrf.mxu0
  %v1429 = vadd.f32 0.0, %v1428
  %v1430 = vpop.f32.mrf.mxu0
  %v1431 = vpop.f32.mrf.mxu0
  %v1432 = vadd.f32 0.0, %v1431
  %v1433 = vpop.f32.mrf.mxu0
  %1434 = vmatprep.mubr.bf16.mxu0 %v843
  %1435 = vmatmul.mubr.bf16.gmra.mxu0 %v842
  %v1436 = vpop.f32.mrf.mxu0
  %v1437 = vadd.f32 0.0, %v1436
  %v1438 = vpop.f32.mrf.mxu0
  %v1439 = vpop.f32.mrf.mxu0
  %v1440 = vadd.f32 0.0, %v1439
  %v1441 = vpop.f32.mrf.mxu0
  %1442 = vmatprep.mubr.bf16.mxu0 %v847
  %1443 = vmatmul.mubr.bf16.gmra.mxu0 %v846
  %v1444 = vpop.f32.mrf.mxu0
  %v1445 = vadd.f32 0.0, %v1444
  %v1446 = vpop.f32.mrf.mxu0
  %v1447 = vpop.f32.mrf.mxu0
  %v1448 = vadd.f32 0.0, %v1447
  %v1449 = vpop.f32.mrf.mxu0
  %1450 = vmatprep.mubr.bf16.mxu0 %v851
  %1451 = vmatmul.mubr.bf16.gmra.mxu0 %v850
  %v1452 = vpop.f32.mrf.mxu0
  %v1453 = vadd.f32 0.0, %v1452
  %v1454 = vpop.f32.mrf.mxu0
  %v1455 = vpop.f32.mrf.mxu0
  %v1456 = vadd.f32 0.0, %v1455
  %v1457 = vpop.f32.mrf.mxu0
  %1458 = vmatprep.mubr.bf16.mxu0 %v855
  %1459 = vmatmul.mubr.bf16.gmra.mxu0 %v854
  %v1460 = vpop.f32.mrf.mxu0
  %v1461 = vadd.f32 0.0, %v1460
  %v1462 = vpop.f32.mrf.mxu0
  %v1463 = vpop.f32.mrf.mxu0
  %v1464 = vadd.f32 0.0, %v1463
  %v1465 = vpop.f32.mrf.mxu0
  %1466 = vdwg.mxu0
  %1467 = vmatprep.subr.bf16.mxu0 0
  %1468 = vmatpush1.bf16.msra.mxu0 %v1137
  %1469 = vmatprep.subr.bf16.mxu0 0
  %1470 = vmatpush1.bf16.msra.mxu0 %v1136
  %1471 = vmatprep.subr.bf16.mxu0 0
  %1472 = vmatpush1.bf16.msra.mxu0 %v1135
  %1473 = vmatprep.subr.bf16.mxu0 0
  %1474 = vmatpush1.bf16.msra.mxu0 %v1134
  %1475 = vmatprep.subr.bf16.mxu0 0
  %1476 = vmatpush1.bf16.msra.mxu0 %v1133
  %1477 = vmatprep.subr.bf16.mxu0 0
  %1478 = vmatpush1.bf16.msra.mxu0 %v1132
  %1479 = vmatprep.subr.bf16.mxu0 0
  %1480 = vmatpush1.bf16.msra.mxu0 %v1131
  %1481 = vmatprep.subr.bf16.mxu0 0
  %1482 = vmatpush1.bf16.msra.mxu0 %v1130
  %1483 = vmatprep.subr.bf16.mxu0 0
  %1484 = vmatpush2.bf16.msra.mxu0 %v1145
  %1485 = vmatprep.subr.bf16.mxu0 0
  %1486 = vmatpush2.bf16.msra.mxu0 %v1144
  %1487 = vmatprep.subr.bf16.mxu0 0
  %1488 = vmatpush2.bf16.msra.mxu0 %v1143
  %1489 = vmatprep.subr.bf16.mxu0 0
  %1490 = vmatpush2.bf16.msra.mxu0 %v1142
  %1491 = vmatprep.subr.bf16.mxu0 0
  %1492 = vmatpush2.bf16.msra.mxu0 %v1141
  %1493 = vmatprep.subr.bf16.mxu0 0
  %1494 = vmatpush2.bf16.msra.mxu0 %v1140
  %1495 = vmatprep.subr.bf16.mxu0 0
  %1496 = vmatpush2.bf16.msra.mxu0 %v1139
  %1497 = vmatprep.subr.bf16.mxu0 0
  %1498 = vmatpush2.bf16.msra.mxu0 %v1138
  %1499 = vmatprep.mubr.bf16.mxu0 %v733
  %1500 = vmatmul.mubr.bf16.gmra.mxu0 %v732
  %v1501 = vpop.f32.mrf.mxu0
  %v1502 = vadd.f32 %v1213, %v1501
  %v1503 = vpop.f32.mrf.mxu0
  %v1504 = vpop.f32.mrf.mxu0
  %v1505 = vadd.f32 %v1216, %v1504
  %v1506 = vpop.f32.mrf.mxu0
  %1507 = vmatprep.mubr.bf16.mxu0 %v737
  %1508 = vmatmul.mubr.bf16.gmra.mxu0 %v736
  %v1509 = vpop.f32.mrf.mxu0
  %v1510 = vadd.f32 %v1221, %v1509
  %v1511 = vpop.f32.mrf.mxu0
  %v1512 = vpop.f32.mrf.mxu0
  %v1513 = vadd.f32 %v1224, %v1512
  %v1514 = vpop.f32.mrf.mxu0
  %1515 = vmatprep.mubr.bf16.mxu0 %v741
  %1516 = vmatmul.mubr.bf16.gmra.mxu0 %v740
  %v1517 = vpop.f32.mrf.mxu0
  %v1518 = vadd.f32 %v1229, %v1517
  %v1519 = vpop.f32.mrf.mxu0
  %v1520 = vpop.f32.mrf.mxu0
  %v1521 = vadd.f32 %v1232, %v1520
  %v1522 = vpop.f32.mrf.mxu0
  %1523 = vmatprep.mubr.bf16.mxu0 %v745
  %1524 = vmatmul.mubr.bf16.gmra.mxu0 %v744
  %v1525 = vpop.f32.mrf.mxu0
  %v1526 = vadd.f32 %v1237, %v1525
  %v1527 = vpop.f32.mrf.mxu0
  %v1528 = vpop.f32.mrf.mxu0
  %v1529 = vadd.f32 %v1240, %v1528
  %v1530 = vpop.f32.mrf.mxu0
  %1531 = vmatprep.mubr.bf16.mxu0 %v749
  %1532 = vmatmul.mubr.bf16.gmra.mxu0 %v748
  %v1533 = vpop.f32.mrf.mxu0
  %v1534 = vadd.f32 %v1245, %v1533
  %v1535 = vpop.f32.mrf.mxu0
  %v1536 = vpop.f32.mrf.mxu0
  %v1537 = vadd.f32 %v1248, %v1536
  %v1538 = vpop.f32.mrf.mxu0
  %1539 = vmatprep.mubr.bf16.mxu0 %v753
  %1540 = vmatmul.mubr.bf16.gmra.mxu0 %v752
  %v1541 = vpop.f32.mrf.mxu0
  %v1542 = vadd.f32 %v1253, %v1541
  %v1543 = vpop.f32.mrf.mxu0
  %v1544 = vpop.f32.mrf.mxu0
  %v1545 = vadd.f32 %v1256, %v1544
  %v1546 = vpop.f32.mrf.mxu0
  %1547 = vmatprep.mubr.bf16.mxu0 %v757
  %1548 = vmatmul.mubr.bf16.gmra.mxu0 %v756
  %v1549 = vpop.f32.mrf.mxu0
  %v1550 = vadd.f32 %v1261, %v1549
  %v1551 = vpop.f32.mrf.mxu0
  %v1552 = vpop.f32.mrf.mxu0
  %v1553 = vadd.f32 %v1264, %v1552
  %v1554 = vpop.f32.mrf.mxu0
  %1555 = vmatprep.mubr.bf16.mxu0 %v761
  %1556 = vmatmul.mubr.bf16.gmra.mxu0 %v760
  %v1557 = vpop.f32.mrf.mxu0
  %v1558 = vadd.f32 %v1269, %v1557
  %v1559 = vpop.f32.mrf.mxu0
  %v1560 = vpop.f32.mrf.mxu0
  %v1561 = vadd.f32 %v1272, %v1560
  %v1562 = vpop.f32.mrf.mxu0
  %1563 = vmatprep.mubr.bf16.mxu0 %v765
  %1564 = vmatmul.mubr.bf16.gmra.mxu0 %v764
  %v1565 = vpop.f32.mrf.mxu0
  %v1566 = vadd.f32 %v1277, %v1565
  %v1567 = vpop.f32.mrf.mxu0
  %v1568 = vpop.f32.mrf.mxu0
  %v1569 = vadd.f32 %v1280, %v1568
  %v1570 = vpop.f32.mrf.mxu0
  %1571 = vmatprep.mubr.bf16.mxu0 %v769
  %1572 = vmatmul.mubr.bf16.gmra.mxu0 %v768
  %v1573 = vpop.f32.mrf.mxu0
  %v1574 = vadd.f32 %v1285, %v1573
  %v1575 = vpop.f32.mrf.mxu0
  %v1576 = vpop.f32.mrf.mxu0
  %v1577 = vadd.f32 %v1288, %v1576
  %v1578 = vpop.f32.mrf.mxu0
  %1579 = vmatprep.mubr.bf16.mxu0 %v773
  %1580 = vmatmul.mubr.bf16.gmra.mxu0 %v772
  %v1581 = vpop.f32.mrf.mxu0
  %v1582 = vadd.f32 %v1293, %v1581
  %v1583 = vpop.f32.mrf.mxu0
  %v1584 = vpop.f32.mrf.mxu0
  %v1585 = vadd.f32 %v1296, %v1584
  %v1586 = vpop.f32.mrf.mxu0
  %1587 = vmatprep.mubr.bf16.mxu0 %v777
  %1588 = vmatmul.mubr.bf16.gmra.mxu0 %v776
  %v1589 = vpop.f32.mrf.mxu0
  %v1590 = vadd.f32 %v1301, %v1589
  %v1591 = vpop.f32.mrf.mxu0
  %v1592 = vpop.f32.mrf.mxu0
  %v1593 = vadd.f32 %v1304, %v1592
  %v1594 = vpop.f32.mrf.mxu0
  %1595 = vmatprep.mubr.bf16.mxu0 %v781
  %1596 = vmatmul.mubr.bf16.gmra.mxu0 %v780
  %v1597 = vpop.f32.mrf.mxu0
  %v1598 = vadd.f32 %v1309, %v1597
  %v1599 = vpop.f32.mrf.mxu0
  %v1600 = vpop.f32.mrf.mxu0
  %v1601 = vadd.f32 %v1312, %v1600
  %v1602 = vpop.f32.mrf.mxu0
  %1603 = vmatprep.mubr.bf16.mxu0 %v785
  %1604 = vmatmul.mubr.bf16.gmra.mxu0 %v784
  %v1605 = vpop.f32.mrf.mxu0
  %v1606 = vadd.f32 %v1317, %v1605
  %v1607 = vpop.f32.mrf.mxu0
  %v1608 = vpop.f32.mrf.mxu0
  %v1609 = vadd.f32 %v1320, %v1608
  %v1610 = vpop.f32.mrf.mxu0
  %1611 = vmatprep.mubr.bf16.mxu0 %v789
  %1612 = vmatmul.mubr.bf16.gmra.mxu0 %v788
  %v1613 = vpop.f32.mrf.mxu0
  %v1614 = vadd.f32 %v1325, %v1613
  %v1615 = vpop.f32.mrf.mxu0
  %v1616 = vpop.f32.mrf.mxu0
  %v1617 = vadd.f32 %v1328, %v1616
  %v1618 = vpop.f32.mrf.mxu0
  %1619 = vmatprep.mubr.bf16.mxu0 %v793
  %1620 = vmatmul.mubr.bf16.gmra.mxu0 %v792
  %v1621 = vpop.f32.mrf.mxu0
  %v1622 = vadd.f32 %v1333, %v1621
  %v1623 = vpop.f32.mrf.mxu0
  %v1624 = vpop.f32.mrf.mxu0
  %v1625 = vadd.f32 %v1336, %v1624
  %v1626 = vpop.f32.mrf.mxu0
  %1627 = vmatprep.mubr.bf16.mxu0 %v797
  %1628 = vmatmul.mubr.bf16.gmra.mxu0 %v796
  %v1629 = vpop.f32.mrf.mxu0
  %v1630 = vadd.f32 %v1341, %v1629
  %v1631 = vpop.f32.mrf.mxu0
  %v1632 = vpop.f32.mrf.mxu0
  %v1633 = vadd.f32 %v1344, %v1632
  %v1634 = vpop.f32.mrf.mxu0
  %1635 = vmatprep.mubr.bf16.mxu0 %v801
  %1636 = vmatmul.mubr.bf16.gmra.mxu0 %v800
  %v1637 = vpop.f32.mrf.mxu0
  %v1638 = vadd.f32 %v1349, %v1637
  %v1639 = vpop.f32.mrf.mxu0
  %v1640 = vpop.f32.mrf.mxu0
  %v1641 = vadd.f32 %v1352, %v1640
  %v1642 = vpop.f32.mrf.mxu0
  %1643 = vmatprep.mubr.bf16.mxu0 %v805
  %1644 = vmatmul.mubr.bf16.gmra.mxu0 %v804
  %v1645 = vpop.f32.mrf.mxu0
  %v1646 = vadd.f32 %v1357, %v1645
  %v1647 = vpop.f32.mrf.mxu0
  %v1648 = vpop.f32.mrf.mxu0
  %v1649 = vadd.f32 %v1360, %v1648
  %v1650 = vpop.f32.mrf.mxu0
  %1651 = vmatprep.mubr.bf16.mxu0 %v809
  %1652 = vmatmul.mubr.bf16.gmra.mxu0 %v808
  %v1653 = vpop.f32.mrf.mxu0
  %v1654 = vadd.f32 %v1365, %v1653
  %v1655 = vpop.f32.mrf.mxu0
  %v1656 = vpop.f32.mrf.mxu0
  %v1657 = vadd.f32 %v1368, %v1656
  %v1658 = vpop.f32.mrf.mxu0
  %1659 = vmatprep.mubr.bf16.mxu0 %v813
  %1660 = vmatmul.mubr.bf16.gmra.mxu0 %v812
  %v1661 = vpop.f32.mrf.mxu0
  %v1662 = vadd.f32 %v1373, %v1661
  %v1663 = vpop.f32.mrf.mxu0
  %v1664 = vpop.f32.mrf.mxu0
  %v1665 = vadd.f32 %v1376, %v1664
  %v1666 = vpop.f32.mrf.mxu0
  %1667 = vmatprep.mubr.bf16.mxu0 %v817
  %1668 = vmatmul.mubr.bf16.gmra.mxu0 %v816
  %v1669 = vpop.f32.mrf.mxu0
  %v1670 = vadd.f32 %v1381, %v1669
  %v1671 = vpop.f32.mrf.mxu0
  %v1672 = vpop.f32.mrf.mxu0
  %v1673 = vadd.f32 %v1384, %v1672
  %v1674 = vpop.f32.mrf.mxu0
  %1675 = vmatprep.mubr.bf16.mxu0 %v821
  %1676 = vmatmul.mubr.bf16.gmra.mxu0 %v820
  %v1677 = vpop.f32.mrf.mxu0
  %v1678 = vadd.f32 %v1389, %v1677
  %v1679 = vpop.f32.mrf.mxu0
  %v1680 = vpop.f32.mrf.mxu0
  %v1681 = vadd.f32 %v1392, %v1680
  %v1682 = vpop.f32.mrf.mxu0
  %1683 = vmatprep.mubr.bf16.mxu0 %v825
  %1684 = vmatmul.mubr.bf16.gmra.mxu0 %v824
  %v1685 = vpop.f32.mrf.mxu0
  %v1686 = vadd.f32 %v1397, %v1685
  %v1687 = vpop.f32.mrf.mxu0
  %v1688 = vpop.f32.mrf.mxu0
  %v1689 = vadd.f32 %v1400, %v1688
  %v1690 = vpop.f32.mrf.mxu0
  %1691 = vmatprep.mubr.bf16.mxu0 %v829
  %1692 = vmatmul.mubr.bf16.gmra.mxu0 %v828
  %v1693 = vpop.f32.mrf.mxu0
  %v1694 = vadd.f32 %v1405, %v1693
  %v1695 = vpop.f32.mrf.mxu0
  %v1696 = vpop.f32.mrf.mxu0
  %v1697 = vadd.f32 %v1408, %v1696
  %v1698 = vpop.f32.mrf.mxu0
  %1699 = vmatprep.mubr.bf16.mxu0 %v833
  %1700 = vmatmul.mubr.bf16.gmra.mxu0 %v832
  %v1701 = vpop.f32.mrf.mxu0
  %v1702 = vadd.f32 %v1413, %v1701
  %v1703 = vpop.f32.mrf.mxu0
  %v1704 = vpop.f32.mrf.mxu0
  %v1705 = vadd.f32 %v1416, %v1704
  %v1706 = vpop.f32.mrf.mxu0
  %1707 = vmatprep.mubr.bf16.mxu0 %v837
  %1708 = vmatmul.mubr.bf16.gmra.mxu0 %v836
  %v1709 = vpop.f32.mrf.mxu0
  %v1710 = vadd.f32 %v1421, %v1709
  %v1711 = vpop.f32.mrf.mxu0
  %v1712 = vpop.f32.mrf.mxu0
  %v1713 = vadd.f32 %v1424, %v1712
  %v1714 = vpop.f32.mrf.mxu0
  %1715 = vmatprep.mubr.bf16.mxu0 %v841
  %1716 = vmatmul.mubr.bf16.gmra.mxu0 %v840
  %v1717 = vpop.f32.mrf.mxu0
  %v1718 = vadd.f32 %v1429, %v1717
  %v1719 = vpop.f32.mrf.mxu0
  %v1720 = vpop.f32.mrf.mxu0
  %v1721 = vadd.f32 %v1432, %v1720
  %v1722 = vpop.f32.mrf.mxu0
  %1723 = vmatprep.mubr.bf16.mxu0 %v845
  %1724 = vmatmul.mubr.bf16.gmra.mxu0 %v844
  %v1725 = vpop.f32.mrf.mxu0
  %v1726 = vadd.f32 %v1437, %v1725
  %v1727 = vpop.f32.mrf.mxu0
  %v1728 = vpop.f32.mrf.mxu0
  %v1729 = vadd.f32 %v1440, %v1728
  %v1730 = vpop.f32.mrf.mxu0
  %1731 = vmatprep.mubr.bf16.mxu0 %v849
  %1732 = vmatmul.mubr.bf16.gmra.mxu0 %v848
  %v1733 = vpop.f32.mrf.mxu0
  %v1734 = vadd.f32 %v1445, %v1733
  %v1735 = vpop.f32.mrf.mxu0
  %v1736 = vpop.f32.mrf.mxu0
  %v1737 = vadd.f32 %v1448, %v1736
  %v1738 = vpop.f32.mrf.mxu0
  %1739 = vmatprep.mubr.bf16.mxu0 %v853
  %1740 = vmatmul.mubr.bf16.gmra.mxu0 %v852
  %v1741 = vpop.f32.mrf.mxu0
  %v1742 = vadd.f32 %v1453, %v1741
  %v1743 = vpop.f32.mrf.mxu0
  %v1744 = vpop.f32.mrf.mxu0
  %v1745 = vadd.f32 %v1456, %v1744
  %v1746 = vpop.f32.mrf.mxu0
  %1747 = vmatprep.mubr.bf16.mxu0 %v857
  %1748 = vmatmul.mubr.bf16.gmra.mxu0 %v856
  %v1749 = vpop.f32.mrf.mxu0
  %v1750 = vadd.f32 %v1461, %v1749
  %v1751 = vpop.f32.mrf.mxu0
  %v1752 = vpop.f32.mrf.mxu0
  %v1753 = vadd.f32 %v1464, %v1752
  %v1754 = vpop.f32.mrf.mxu0
  %1755 = vdwg.mxu0
  %v1756 = vadd.f32 %v154, %v1502
  %v1757 = vadd.f32 %v155, %v1505
  %v1758 = vadd.f32 %v156, %v1510
  %v1759 = vadd.f32 %v157, %v1513
  %v1760 = vadd.f32 %v158, %v1518
  %v1761 = vadd.f32 %v159, %v1521
  %v1762 = vadd.f32 %v160, %v1526
  %v1763 = vadd.f32 %v161, %v1529
  %v1764 = vadd.f32 %v162, %v1534
  %v1765 = vadd.f32 %v163, %v1537
  %v1766 = vadd.f32 %v164, %v1542
  %v1767 = vadd.f32 %v165, %v1545
  %v1768 = vadd.f32 %v166, %v1550
  %v1769 = vadd.f32 %v167, %v1553
  %v1770 = vadd.f32 %v168, %v1558
  %v1771 = vadd.f32 %v169, %v1561
  %v1772 = vadd.f32 %v170, %v1566
  %v1773 = vadd.f32 %v171, %v1569
  %v1774 = vadd.f32 %v172, %v1574
  %v1775 = vadd.f32 %v173, %v1577
  %v1776 = vadd.f32 %v174, %v1582
  %v1777 = vadd.f32 %v175, %v1585
  %v1778 = vadd.f32 %v176, %v1590
  %v1779 = vadd.f32 %v177, %v1593
  %v1780 = vadd.f32 %v178, %v1598
  %v1781 = vadd.f32 %v179, %v1601
  %v1782 = vadd.f32 %v180, %v1606
  %v1783 = vadd.f32 %v181, %v1609
  %v1784 = vadd.f32 %v182, %v1614
  %v1785 = vadd.f32 %v183, %v1617
  %v1786 = vadd.f32 %v184, %v1622
  %v1787 = vadd.f32 %v185, %v1625
  %v1788 = vadd.f32 %v186, %v1630
  %v1789 = vadd.f32 %v187, %v1633
  %v1790 = vadd.f32 %v188, %v1638
  %v1791 = vadd.f32 %v189, %v1641
  %v1792 = vadd.f32 %v190, %v1646
  %v1793 = vadd.f32 %v191, %v1649
  %v1794 = vadd.f32 %v192, %v1654
  %v1795 = vadd.f32 %v193, %v1657
  %v1796 = vadd.f32 %v194, %v1662
  %v1797 = vadd.f32 %v195, %v1665
  %v1798 = vadd.f32 %v196, %v1670
  %v1799 = vadd.f32 %v197, %v1673
  %v1800 = vadd.f32 %v198, %v1678
  %v1801 = vadd.f32 %v199, %v1681
  %v1802 = vadd.f32 %v200, %v1686
  %v1803 = vadd.f32 %v201, %v1689
  %v1804 = vadd.f32 %v202, %v1694
  %v1805 = vadd.f32 %v203, %v1697
  %v1806 = vadd.f32 %v204, %v1702
  %v1807 = vadd.f32 %v205, %v1705
  %v1808 = vadd.f32 %v206, %v1710
  %v1809 = vadd.f32 %v207, %v1713
  %v1810 = vadd.f32 %v208, %v1718
  %v1811 = vadd.f32 %v209, %v1721
  %v1812 = vadd.f32 %v210, %v1726
  %v1813 = vadd.f32 %v211, %v1729
  %v1814 = vadd.f32 %v212, %v1734
  %v1815 = vadd.f32 %v213, %v1737
  %v1816 = vadd.f32 %v214, %v1742
  %v1817 = vadd.f32 %v215, %v1745
  %v1818 = vadd.f32 %v216, %v1750
  %v1819 = vadd.f32 %v217, %v1753
  %1820 = vst [vmem:[#allocation2] sm:$0xff] %v1756
  %1821 = vst [vmem:[#allocation2 + $0x8] sm:$0xff] %v1757
  %1822 = vst [vmem:[#allocation2 + $0x10] sm:$0xff] %v1758
  %1823 = vst [vmem:[#allocation2 + $0x18] sm:$0xff] %v1759
  %1824 = vst [vmem:[#allocation2 + $0x20] sm:$0xff] %v1760
  %1825 = vst [vmem:[#allocation2 + $0x28] sm:$0xff] %v1761
  %1826 = vst [vmem:[#allocation2 + $0x30] sm:$0xff] %v1762
  %1827 = vst [vmem:[#allocation2 + $0x38] sm:$0xff] %v1763
  %1828 = vst [vmem:[#allocation2 + $0x40] sm:$0xff] %v1764
  %1829 = vst [vmem:[#allocation2 + $0x48] sm:$0xff] %v1765
  %1830 = vst [vmem:[#allocation2 + $0x50] sm:$0xff] %v1766
  %1831 = vst [vmem:[#allocation2 + $0x58] sm:$0xff] %v1767
  %1832 = vst [vmem:[#allocation2 + $0x60] sm:$0xff] %v1768
  %1833 = vst [vmem:[#allocation2 + $0x68] sm:$0xff] %v1769
  %1834 = vst [vmem:[#allocation2 + $0x70] sm:$0xff] %v1770
  %1835 = vst [vmem:[#allocation2 + $0x78] sm:$0xff] %v1771
  %1836 = vst [vmem:[#allocation2 + $0x80] sm:$0xff] %v1772
  %1837 = vst [vmem:[#allocation2 + $0x88] sm:$0xff] %v1773
  %1838 = vst [vmem:[#allocation2 + $0x90] sm:$0xff] %v1774
  %1839 = vst [vmem:[#allocation2 + $0x98] sm:$0xff] %v1775
  %1840 = vst [vmem:[#allocation2 + $0xa0] sm:$0xff] %v1776
  %1841 = vst [vmem:[#allocation2 + $0xa8] sm:$0xff] %v1777
  %1842 = vst [vmem:[#allocation2 + $0xb0] sm:$0xff] %v1778
  %1843 = vst [vmem:[#allocation2 + $0xb8] sm:$0xff] %v1779
  %1844 = vst [vmem:[#allocation2 + $0xc0] sm:$0xff] %v1780
  %1845 = vst [vmem:[#allocation2 + $0xc8] sm:$0xff] %v1781
  %1846 = vst [vmem:[#allocation2 + $0xd0] sm:$0xff] %v1782
  %1847 = vst [vmem:[#allocation2 + $0xd8] sm:$0xff] %v1783
  %1848 = vst [vmem:[#allocation2 + $0xe0] sm:$0xff] %v1784
  %1849 = vst [vmem:[#allocation2 + $0xe8] sm:$0xff] %v1785
  %1850 = vst [vmem:[#allocation2 + $0xf0] sm:$0xff] %v1786
  %1851 = vst [vmem:[#allocation2 + $0xf8] sm:$0xff] %v1787
  %1852 = vst [vmem:[#allocation2 + $0x100] sm:$0xff] %v1788
  %1853 = vst [vmem:[#allocation2 + $0x108] sm:$0xff] %v1789
  %1854 = vst [vmem:[#allocation2 + $0x110] sm:$0xff] %v1790
  %1855 = vst [vmem:[#allocation2 + $0x118] sm:$0xff] %v1791
  %1856 = vst [vmem:[#allocation2 + $0x120] sm:$0xff] %v1792
  %1857 = vst [vmem:[#allocation2 + $0x128] sm:$0xff] %v1793
  %1858 = vst [vmem:[#allocation2 + $0x130] sm:$0xff] %v1794
  %1859 = vst [vmem:[#allocation2 + $0x138] sm:$0xff] %v1795
  %1860 = vst [vmem:[#allocation2 + $0x140] sm:$0xff] %v1796
  %1861 = vst [vmem:[#allocation2 + $0x148] sm:$0xff] %v1797
  %1862 = vst [vmem:[#allocation2 + $0x150] sm:$0xff] %v1798
  %1863 = vst [vmem:[#allocation2 + $0x158] sm:$0xff] %v1799
  %1864 = vst [vmem:[#allocation2 + $0x160] sm:$0xff] %v1800
  %1865 = vst [vmem:[#allocation2 + $0x168] sm:$0xff] %v1801
  %1866 = vst [vmem:[#allocation2 + $0x170] sm:$0xff] %v1802
  %1867 = vst [vmem:[#allocation2 + $0x178] sm:$0xff] %v1803
  %1868 = vst [vmem:[#allocation2 + $0x180] sm:$0xff] %v1804
  %1869 = vst [vmem:[#allocation2 + $0x188] sm:$0xff] %v1805
  %1870 = vst [vmem:[#allocation2 + $0x190] sm:$0xff] %v1806
  %1871 = vst [vmem:[#allocation2 + $0x198] sm:$0xff] %v1807
  %1872 = vst [vmem:[#allocation2 + $0x1a0] sm:$0xff] %v1808
  %1873 = vst [vmem:[#allocation2 + $0x1a8] sm:$0xff] %v1809
  %1874 = vst [vmem:[#allocation2 + $0x1b0] sm:$0xff] %v1810
  %1875 = vst [vmem:[#allocation2 + $0x1b8] sm:$0xff] %v1811
  %1876 = vst [vmem:[#allocation2 + $0x1c0] sm:$0xff] %v1812
  %1877 = vst [vmem:[#allocation2 + $0x1c8] sm:$0xff] %v1813
  %1878 = vst [vmem:[#allocation2 + $0x1d0] sm:$0xff] %v1814
  %1879 = vst [vmem:[#allocation2 + $0x1d8] sm:$0xff] %v1815
  %1880 = vst [vmem:[#allocation2 + $0x1e0] sm:$0xff] %v1816
  %1881 = vst [vmem:[#allocation2 + $0x1e8] sm:$0xff] %v1817
  %1882 = vst [vmem:[#allocation2 + $0x1f0] sm:$0xff] %v1818
  %1883 = vst [vmem:[#allocation2 + $0x1f8] sm:$0xff] %v1819
  // Predicated region
  $region18: #{rating_prediction_gnn_forward.4} parent=0 // pred_check
    %p1884 = pneg %p17
  $region19: #{rating_prediction_gnn_forward.4} parent=0 // pred_check_branch
    %1886 = sbr.rel (%p1884) target = $region21
  $region20: #{rating_prediction_gnn_forward.4} parent=0 // pred_region
    %v1887 = vld [vmem:[%s2] sm:$0xff]
    %v1888 = vld [vmem:[%s2 + $0x8] sm:$0xff]
    %v1889 = vld [vmem:[%s2 + $0x10] sm:$0xff]
    %v1890 = vld [vmem:[%s2 + $0x18] sm:$0xff]
    %v1891 = vld [vmem:[%s2 + $0x20] sm:$0xff]
    %v1892 = vld [vmem:[%s2 + $0x28] sm:$0xff]
    %v1893 = vld [vmem:[%s2 + $0x30] sm:$0xff]
    %v1894 = vld [vmem:[%s2 + $0x38] sm:$0xff]
    %v1895 = vld [vmem:[%s2 + $0x40] sm:$0xff]
    %v1896 = vld [vmem:[%s2 + $0x48] sm:$0xff]
    %v1897 = vld [vmem:[%s2 + $0x50] sm:$0xff]
    %v1898 = vld [vmem:[%s2 + $0x58] sm:$0xff]
    %v1899 = vld [vmem:[%s2 + $0x60] sm:$0xff]
    %v1900 = vld [vmem:[%s2 + $0x68] sm:$0xff]
    %v1901 = vld [vmem:[%s2 + $0x70] sm:$0xff]
    %v1902 = vld [vmem:[%s2 + $0x78] sm:$0xff]
    %v1903 = vld [vmem:[%s2 + $0x80] sm:$0xff]
    %v1904 = vld [vmem:[%s2 + $0x88] sm:$0xff]
    %v1905 = vld [vmem:[%s2 + $0x90] sm:$0xff]
    %v1906 = vld [vmem:[%s2 + $0x98] sm:$0xff]
    %v1907 = vld [vmem:[%s2 + $0xa0] sm:$0xff]
    %v1908 = vld [vmem:[%s2 + $0xa8] sm:$0xff]
    %v1909 = vld [vmem:[%s2 + $0xb0] sm:$0xff]
    %v1910 = vld [vmem:[%s2 + $0xb8] sm:$0xff]
    %v1911 = vld [vmem:[%s2 + $0xc0] sm:$0xff]
    %v1912 = vld [vmem:[%s2 + $0xc8] sm:$0xff]
    %v1913 = vld [vmem:[%s2 + $0xd0] sm:$0xff]
    %v1914 = vld [vmem:[%s2 + $0xd8] sm:$0xff]
    %v1915 = vld [vmem:[%s2 + $0xe0] sm:$0xff]
    %v1916 = vld [vmem:[%s2 + $0xe8] sm:$0xff]
    %v1917 = vld [vmem:[%s2 + $0xf0] sm:$0xff]
    %v1918 = vld [vmem:[%s2 + $0xf8] sm:$0xff]
    %v1919 = vld [vmem:[%s2 + $0x100] sm:$0xff]
    %v1920 = vld [vmem:[%s2 + $0x108] sm:$0xff]
    %v1921 = vld [vmem:[%s2 + $0x110] sm:$0xff]
    %v1922 = vld [vmem:[%s2 + $0x118] sm:$0xff]
    %v1923 = vld [vmem:[%s2 + $0x120] sm:$0xff]
    %v1924 = vld [vmem:[%s2 + $0x128] sm:$0xff]
    %v1925 = vld [vmem:[%s2 + $0x130] sm:$0xff]
    %v1926 = vld [vmem:[%s2 + $0x138] sm:$0xff]
    %v1927 = vld [vmem:[%s2 + $0x140] sm:$0xff]
    %v1928 = vld [vmem:[%s2 + $0x148] sm:$0xff]
    %v1929 = vld [vmem:[%s2 + $0x150] sm:$0xff]
    %v1930 = vld [vmem:[%s2 + $0x158] sm:$0xff]
    %v1931 = vld [vmem:[%s2 + $0x160] sm:$0xff]
    %v1932 = vld [vmem:[%s2 + $0x168] sm:$0xff]
    %v1933 = vld [vmem:[%s2 + $0x170] sm:$0xff]
    %v1934 = vld [vmem:[%s2 + $0x178] sm:$0xff]
    %v1935 = vld [vmem:[%s2 + $0x180] sm:$0xff]
    %v1936 = vld [vmem:[%s2 + $0x188] sm:$0xff]
    %v1937 = vld [vmem:[%s2 + $0x190] sm:$0xff]
    %v1938 = vld [vmem:[%s2 + $0x198] sm:$0xff]
    %v1939 = vld [vmem:[%s2 + $0x1a0] sm:$0xff]
    %v1940 = vld [vmem:[%s2 + $0x1a8] sm:$0xff]
    %v1941 = vld [vmem:[%s2 + $0x1b0] sm:$0xff]
    %v1942 = vld [vmem:[%s2 + $0x1b8] sm:$0xff]
    %v1943 = vld [vmem:[%s2 + $0x1c0] sm:$0xff]
    %v1944 = vld [vmem:[%s2 + $0x1c8] sm:$0xff]
    %v1945 = vld [vmem:[%s2 + $0x1d0] sm:$0xff]
    %v1946 = vld [vmem:[%s2 + $0x1d8] sm:$0xff]
    %v1947 = vld [vmem:[%s2 + $0x1e0] sm:$0xff]
    %v1948 = vld [vmem:[%s2 + $0x1e8] sm:$0xff]
    %v1949 = vld [vmem:[%s2 + $0x1f0] sm:$0xff]
    %v1950 = vld [vmem:[%s2 + $0x1f8] sm:$0xff]
    %v1951 = vld [vmem:[#allocation2] sm:$0xff]
    %v1952 = vld [vmem:[#allocation2 + $0x8] sm:$0xff]
    %v1953 = vld [vmem:[#allocation2 + $0x10] sm:$0xff]
    %v1954 = vld [vmem:[#allocation2 + $0x18] sm:$0xff]
    %v1955 = vld [vmem:[#allocation2 + $0x20] sm:$0xff]
    %v1956 = vld [vmem:[#allocation2 + $0x28] sm:$0xff]
    %v1957 = vld [vmem:[#allocation2 + $0x30] sm:$0xff]
    %v1958 = vld [vmem:[#allocation2 + $0x38] sm:$0xff]
    %v1959 = vld [vmem:[#allocation2 + $0x40] sm:$0xff]
    %v1960 = vld [vmem:[#allocation2 + $0x48] sm:$0xff]
    %v1961 = vld [vmem:[#allocation2 + $0x50] sm:$0xff]
    %v1962 = vld [vmem:[#allocation2 + $0x58] sm:$0xff]
    %v1963 = vld [vmem:[#allocation2 + $0x60] sm:$0xff]
    %v1964 = vld [vmem:[#allocation2 + $0x68] sm:$0xff]
    %v1965 = vld [vmem:[#allocation2 + $0x70] sm:$0xff]
    %v1966 = vld [vmem:[#allocation2 + $0x78] sm:$0xff]
    %v1967 = vld [vmem:[#allocation2 + $0x80] sm:$0xff]
    %v1968 = vld [vmem:[#allocation2 + $0x88] sm:$0xff]
    %v1969 = vld [vmem:[#allocation2 + $0x90] sm:$0xff]
    %v1970 = vld [vmem:[#allocation2 + $0x98] sm:$0xff]
    %v1971 = vld [vmem:[#allocation2 + $0xa0] sm:$0xff]
    %v1972 = vld [vmem:[#allocation2 + $0xa8] sm:$0xff]
    %v1973 = vld [vmem:[#allocation2 + $0xb0] sm:$0xff]
    %v1974 = vld [vmem:[#allocation2 + $0xb8] sm:$0xff]
    %v1975 = vld [vmem:[#allocation2 + $0xc0] sm:$0xff]
    %v1976 = vld [vmem:[#allocation2 + $0xc8] sm:$0xff]
    %v1977 = vld [vmem:[#allocation2 + $0xd0] sm:$0xff]
    %v1978 = vld [vmem:[#allocation2 + $0xd8] sm:$0xff]
    %v1979 = vld [vmem:[#allocation2 + $0xe0] sm:$0xff]
    %v1980 = vld [vmem:[#allocation2 + $0xe8] sm:$0xff]
    %v1981 = vld [vmem:[#allocation2 + $0xf0] sm:$0xff]
    %v1982 = vld [vmem:[#allocation2 + $0xf8] sm:$0xff]
    %v1983 = vld [vmem:[#allocation2 + $0x100] sm:$0xff]
    %v1984 = vld [vmem:[#allocation2 + $0x108] sm:$0xff]
    %v1985 = vld [vmem:[#allocation2 + $0x110] sm:$0xff]
    %v1986 = vld [vmem:[#allocation2 + $0x118] sm:$0xff]
    %v1987 = vld [vmem:[#allocation2 + $0x120] sm:$0xff]
    %v1988 = vld [vmem:[#allocation2 + $0x128] sm:$0xff]
    %v1989 = vld [vmem:[#allocation2 + $0x130] sm:$0xff]
    %v1990 = vld [vmem:[#allocation2 + $0x138] sm:$0xff]
    %v1991 = vld [vmem:[#allocation2 + $0x140] sm:$0xff]
    %v1992 = vld [vmem:[#allocation2 + $0x148] sm:$0xff]
    %v1993 = vld [vmem:[#allocation2 + $0x150] sm:$0xff]
    %v1994 = vld [vmem:[#allocation2 + $0x158] sm:$0xff]
    %v1995 = vld [vmem:[#allocation2 + $0x160] sm:$0xff]
    %v1996 = vld [vmem:[#allocation2 + $0x168] sm:$0xff]
    %v1997 = vld [vmem:[#allocation2 + $0x170] sm:$0xff]
    %v1998 = vld [vmem:[#allocation2 + $0x178] sm:$0xff]
    %v1999 = vld [vmem:[#allocation2 + $0x180] sm:$0xff]
    %v2000 = vld [vmem:[#allocation2 + $0x188] sm:$0xff]
    %v2001 = vld [vmem:[#allocation2 + $0x190] sm:$0xff]
    %v2002 = vld [vmem:[#allocation2 + $0x198] sm:$0xff]
    %v2003 = vld [vmem:[#allocation2 + $0x1a0] sm:$0xff]
    %v2004 = vld [vmem:[#allocation2 + $0x1a8] sm:$0xff]
    %v2005 = vld [vmem:[#allocation2 + $0x1b0] sm:$0xff]
    %v2006 = vld [vmem:[#allocation2 + $0x1b8] sm:$0xff]
    %v2007 = vld [vmem:[#allocation2 + $0x1c0] sm:$0xff]
    %v2008 = vld [vmem:[#allocation2 + $0x1c8] sm:$0xff]
    %v2009 = vld [vmem:[#allocation2 + $0x1d0] sm:$0xff]
    %v2010 = vld [vmem:[#allocation2 + $0x1d8] sm:$0xff]
    %v2011 = vld [vmem:[#allocation2 + $0x1e0] sm:$0xff]
    %v2012 = vld [vmem:[#allocation2 + $0x1e8] sm:$0xff]
    %v2013 = vld [vmem:[#allocation2 + $0x1f0] sm:$0xff]
    %v2014 = vld [vmem:[#allocation2 + $0x1f8] sm:$0xff]
    %v2015 = vadd.f32 %v1887, %v1951
    %v2016 = vadd.f32 %v1888, %v1952
    %v2017 = vadd.f32 %v1889, %v1953
    %v2018 = vadd.f32 %v1890, %v1954
    %v2019 = vadd.f32 %v1891, %v1955
    %v2020 = vadd.f32 %v1892, %v1956
    %v2021 = vadd.f32 %v1893, %v1957
    %v2022 = vadd.f32 %v1894, %v1958
    %v2023 = vadd.f32 %v1895, %v1959
    %v2024 = vadd.f32 %v1896, %v1960
    %v2025 = vadd.f32 %v1897, %v1961
    %v2026 = vadd.f32 %v1898, %v1962
    %v2027 = vadd.f32 %v1899, %v1963
    %v2028 = vadd.f32 %v1900, %v1964
    %v2029 = vadd.f32 %v1901, %v1965
    %v2030 = vadd.f32 %v1902, %v1966
    %v2031 = vadd.f32 %v1903, %v1967
    %v2032 = vadd.f32 %v1904, %v1968
    %v2033 = vadd.f32 %v1905, %v1969
    %v2034 = vadd.f32 %v1906, %v1970
    %v2035 = vadd.f32 %v1907, %v1971
    %v2036 = vadd.f32 %v1908, %v1972
    %v2037 = vadd.f32 %v1909, %v1973
    %v2038 = vadd.f32 %v1910, %v1974
    %v2039 = vadd.f32 %v1911, %v1975
    %v2040 = vadd.f32 %v1912, %v1976
    %v2041 = vadd.f32 %v1913, %v1977
    %v2042 = vadd.f32 %v1914, %v1978
    %v2043 = vadd.f32 %v1915, %v1979
    %v2044 = vadd.f32 %v1916, %v1980
    %v2045 = vadd.f32 %v1917, %v1981
    %v2046 = vadd.f32 %v1918, %v1982
    %v2047 = vadd.f32 %v1919, %v1983
    %v2048 = vadd.f32 %v1920, %v1984
    %v2049 = vadd.f32 %v1921, %v1985
    %v2050 = vadd.f32 %v1922, %v1986
    %v2051 = vadd.f32 %v1923, %v1987
    %v2052 = vadd.f32 %v1924, %v1988
    %v2053 = vadd.f32 %v1925, %v1989
    %v2054 = vadd.f32 %v1926, %v1990
    %v2055 = vadd.f32 %v1927, %v1991
    %v2056 = vadd.f32 %v1928, %v1992
    %v2057 = vadd.f32 %v1929, %v1993
    %v2058 = vadd.f32 %v1930, %v1994
    %v2059 = vadd.f32 %v1931, %v1995
    %v2060 = vadd.f32 %v1932, %v1996
    %v2061 = vadd.f32 %v1933, %v1997
    %v2062 = vadd.f32 %v1934, %v1998
    %v2063 = vadd.f32 %v1935, %v1999
    %v2064 = vadd.f32 %v1936, %v2000
    %v2065 = vadd.f32 %v1937, %v2001
    %v2066 = vadd.f32 %v1938, %v2002
    %v2067 = vadd.f32 %v1939, %v2003
    %v2068 = vadd.f32 %v1940, %v2004
    %v2069 = vadd.f32 %v1941, %v2005
    %v2070 = vadd.f32 %v1942, %v2006
    %v2071 = vadd.f32 %v1943, %v2007
    %v2072 = vadd.f32 %v1944, %v2008
    %v2073 = vadd.f32 %v1945, %v2009
    %v2074 = vadd.f32 %v1946, %v2010
    %v2075 = vadd.f32 %v1947, %v2011
    %v2076 = vadd.f32 %v1948, %v2012
    %v2077 = vadd.f32 %v1949, %v2013
    %v2078 = vadd.f32 %v1950, %v2014
    %2079 = vst [vmem:[%s4] sm:$0xff] %v2015
    %2080 = vst [vmem:[%s4 + $0x8] sm:$0xff] %v2016
    %2081 = vst [vmem:[%s4 + $0x10] sm:$0xff] %v2017
    %2082 = vst [vmem:[%s4 + $0x18] sm:$0xff] %v2018
    %2083 = vst [vmem:[%s4 + $0x20] sm:$0xff] %v2019
    %2084 = vst [vmem:[%s4 + $0x28] sm:$0xff] %v2020
    %2085 = vst [vmem:[%s4 + $0x30] sm:$0xff] %v2021
    %2086 = vst [vmem:[%s4 + $0x38] sm:$0xff] %v2022
    %2087 = vst [vmem:[%s4 + $0x40] sm:$0xff] %v2023
    %2088 = vst [vmem:[%s4 + $0x48] sm:$0xff] %v2024
    %2089 = vst [vmem:[%s4 + $0x50] sm:$0xff] %v2025
    %2090 = vst [vmem:[%s4 + $0x58] sm:$0xff] %v2026
    %2091 = vst [vmem:[%s4 + $0x60] sm:$0xff] %v2027
    %2092 = vst [vmem:[%s4 + $0x68] sm:$0xff] %v2028
    %2093 = vst [vmem:[%s4 + $0x70] sm:$0xff] %v2029
    %2094 = vst [vmem:[%s4 + $0x78] sm:$0xff] %v2030
    %2095 = vst [vmem:[%s4 + $0x80] sm:$0xff] %v2031
    %2096 = vst [vmem:[%s4 + $0x88] sm:$0xff] %v2032
    %2097 = vst [vmem:[%s4 + $0x90] sm:$0xff] %v2033
    %2098 = vst [vmem:[%s4 + $0x98] sm:$0xff] %v2034
    %2099 = vst [vmem:[%s4 + $0xa0] sm:$0xff] %v2035
    %2100 = vst [vmem:[%s4 + $0xa8] sm:$0xff] %v2036
    %2101 = vst [vmem:[%s4 + $0xb0] sm:$0xff] %v2037
    %2102 = vst [vmem:[%s4 + $0xb8] sm:$0xff] %v2038
    %2103 = vst [vmem:[%s4 + $0xc0] sm:$0xff] %v2039
    %2104 = vst [vmem:[%s4 + $0xc8] sm:$0xff] %v2040
    %2105 = vst [vmem:[%s4 + $0xd0] sm:$0xff] %v2041
    %2106 = vst [vmem:[%s4 + $0xd8] sm:$0xff] %v2042
    %2107 = vst [vmem:[%s4 + $0xe0] sm:$0xff] %v2043
    %2108 = vst [vmem:[%s4 + $0xe8] sm:$0xff] %v2044
    %2109 = vst [vmem:[%s4 + $0xf0] sm:$0xff] %v2045
    %2110 = vst [vmem:[%s4 + $0xf8] sm:$0xff] %v2046
    %2111 = vst [vmem:[%s4 + $0x100] sm:$0xff] %v2047
    %2112 = vst [vmem:[%s4 + $0x108] sm:$0xff] %v2048
    %2113 = vst [vmem:[%s4 + $0x110] sm:$0xff] %v2049
    %2114 = vst [vmem:[%s4 + $0x118] sm:$0xff] %v2050
    %2115 = vst [vmem:[%s4 + $0x120] sm:$0xff] %v2051
    %2116 = vst [vmem:[%s4 + $0x128] sm:$0xff] %v2052
    %2117 = vst [vmem:[%s4 + $0x130] sm:$0xff] %v2053
    %2118 = vst [vmem:[%s4 + $0x138] sm:$0xff] %v2054
    %2119 = vst [vmem:[%s4 + $0x140] sm:$0xff] %v2055
    %2120 = vst [vmem:[%s4 + $0x148] sm:$0xff] %v2056
    %2121 = vst [vmem:[%s4 + $0x150] sm:$0xff] %v2057
    %2122 = vst [vmem:[%s4 + $0x158] sm:$0xff] %v2058
    %2123 = vst [vmem:[%s4 + $0x160] sm:$0xff] %v2059
    %2124 = vst [vmem:[%s4 + $0x168] sm:$0xff] %v2060
    %2125 = vst [vmem:[%s4 + $0x170] sm:$0xff] %v2061
    %2126 = vst [vmem:[%s4 + $0x178] sm:$0xff] %v2062
    %2127 = vst [vmem:[%s4 + $0x180] sm:$0xff] %v2063
    %2128 = vst [vmem:[%s4 + $0x188] sm:$0xff] %v2064
    %2129 = vst [vmem:[%s4 + $0x190] sm:$0xff] %v2065
    %2130 = vst [vmem:[%s4 + $0x198] sm:$0xff] %v2066
    %2131 = vst [vmem:[%s4 + $0x1a0] sm:$0xff] %v2067
    %2132 = vst [vmem:[%s4 + $0x1a8] sm:$0xff] %v2068
    %2133 = vst [vmem:[%s4 + $0x1b0] sm:$0xff] %v2069
    %2134 = vst [vmem:[%s4 + $0x1b8] sm:$0xff] %v2070
    %2135 = vst [vmem:[%s4 + $0x1c0] sm:$0xff] %v2071
    %2136 = vst [vmem:[%s4 + $0x1c8] sm:$0xff] %v2072
    %2137 = vst [vmem:[%s4 + $0x1d0] sm:$0xff] %v2073
    %2138 = vst [vmem:[%s4 + $0x1d8] sm:$0xff] %v2074
    %2139 = vst [vmem:[%s4 + $0x1e0] sm:$0xff] %v2075
    %2140 = vst [vmem:[%s4 + $0x1e8] sm:$0xff] %v2076
    %2141 = vst [vmem:[%s4 + $0x1f0] sm:$0xff] %v2077
    %2142 = vst [vmem:[%s4 + $0x1f8] sm:$0xff] %v2078
    %v2143 = vld [vmem:[#allocation2] sm:$0xff]
    %v2144 = vld [vmem:[#allocation2 + $0x8] sm:$0xff]
    %v2145 = vld [vmem:[#allocation2 + $0x10] sm:$0xff]
    %v2146 = vld [vmem:[#allocation2 + $0x18] sm:$0xff]
    %v2147 = vld [vmem:[#allocation2 + $0x20] sm:$0xff]
    %v2148 = vld [vmem:[#allocation2 + $0x28] sm:$0xff]
    %v2149 = vld [vmem:[#allocation2 + $0x30] sm:$0xff]
    %v2150 = vld [vmem:[#allocation2 + $0x38] sm:$0xff]
    %v2151 = vld [vmem:[#allocation2 + $0x40] sm:$0xff]
    %v2152 = vld [vmem:[#allocation2 + $0x48] sm:$0xff]
    %v2153 = vld [vmem:[#allocation2 + $0x50] sm:$0xff]
    %v2154 = vld [vmem:[#allocation2 + $0x58] sm:$0xff]
    %v2155 = vld [vmem:[#allocation2 + $0x60] sm:$0xff]
    %v2156 = vld [vmem:[#allocation2 + $0x68] sm:$0xff]
    %v2157 = vld [vmem:[#allocation2 + $0x70] sm:$0xff]
    %v2158 = vld [vmem:[#allocation2 + $0x78] sm:$0xff]
    %v2159 = vld [vmem:[#allocation2 + $0x80] sm:$0xff]
    %v2160 = vld [vmem:[#allocation2 + $0x88] sm:$0xff]
    %v2161 = vld [vmem:[#allocation2 + $0x90] sm:$0xff]
    %v2162 = vld [vmem:[#allocation2 + $0x98] sm:$0xff]
    %v2163 = vld [vmem:[#allocation2 + $0xa0] sm:$0xff]
    %v2164 = vld [vmem:[#allocation2 + $0xa8] sm:$0xff]
    %v2165 = vld [vmem:[#allocation2 + $0xb0] sm:$0xff]
    %v2166 = vld [vmem:[#allocation2 + $0xb8] sm:$0xff]
    %v2167 = vld [vmem:[#allocation2 + $0xc0] sm:$0xff]
    %v2168 = vld [vmem:[#allocation2 + $0xc8] sm:$0xff]
    %v2169 = vld [vmem:[#allocation2 + $0xd0] sm:$0xff]
    %v2170 = vld [vmem:[#allocation2 + $0xd8] sm:$0xff]
    %v2171 = vld [vmem:[#allocation2 + $0xe0] sm:$0xff]
    %v2172 = vld [vmem:[#allocation2 + $0xe8] sm:$0xff]
    %v2173 = vld [vmem:[#allocation2 + $0xf0] sm:$0xff]
    %v2174 = vld [vmem:[#allocation2 + $0xf8] sm:$0xff]
    %v2175 = vld [vmem:[#allocation2 + $0x100] sm:$0xff]
    %v2176 = vld [vmem:[#allocation2 + $0x108] sm:$0xff]
    %v2177 = vld [vmem:[#allocation2 + $0x110] sm:$0xff]
    %v2178 = vld [vmem:[#allocation2 + $0x118] sm:$0xff]
    %v2179 = vld [vmem:[#allocation2 + $0x120] sm:$0xff]
    %v2180 = vld [vmem:[#allocation2 + $0x128] sm:$0xff]
    %v2181 = vld [vmem:[#allocation2 + $0x130] sm:$0xff]
    %v2182 = vld [vmem:[#allocation2 + $0x138] sm:$0xff]
    %v2183 = vld [vmem:[#allocation2 + $0x140] sm:$0xff]
    %v2184 = vld [vmem:[#allocation2 + $0x148] sm:$0xff]
    %v2185 = vld [vmem:[#allocation2 + $0x150] sm:$0xff]
    %v2186 = vld [vmem:[#allocation2 + $0x158] sm:$0xff]
    %v2187 = vld [vmem:[#allocation2 + $0x160] sm:$0xff]
    %v2188 = vld [vmem:[#allocation2 + $0x168] sm:$0xff]
    %v2189 = vld [vmem:[#allocation2 + $0x170] sm:$0xff]
    %v2190 = vld [vmem:[#allocation2 + $0x178] sm:$0xff]
    %v2191 = vld [vmem:[#allocation2 + $0x180] sm:$0xff]
    %v2192 = vld [vmem:[#allocation2 + $0x188] sm:$0xff]
    %v2193 = vld [vmem:[#allocation2 + $0x190] sm:$0xff]
    %v2194 = vld [vmem:[#allocation2 + $0x198] sm:$0xff]
    %v2195 = vld [vmem:[#allocation2 + $0x1a0] sm:$0xff]
    %v2196 = vld [vmem:[#allocation2 + $0x1a8] sm:$0xff]
    %v2197 = vld [vmem:[#allocation2 + $0x1b0] sm:$0xff]
    %v2198 = vld [vmem:[#allocation2 + $0x1b8] sm:$0xff]
    %v2199 = vld [vmem:[#allocation2 + $0x1c0] sm:$0xff]
    %v2200 = vld [vmem:[#allocation2 + $0x1c8] sm:$0xff]
    %v2201 = vld [vmem:[#allocation2 + $0x1d0] sm:$0xff]
    %v2202 = vld [vmem:[#allocation2 + $0x1d8] sm:$0xff]
    %v2203 = vld [vmem:[#allocation2 + $0x1e0] sm:$0xff]
    %v2204 = vld [vmem:[#allocation2 + $0x1e8] sm:$0xff]
    %v2205 = vld [vmem:[#allocation2 + $0x1f0] sm:$0xff]
    %v2206 = vld [vmem:[#allocation2 + $0x1f8] sm:$0xff]
    %v2207 = vpack.c.bf16 %v2144, %v2143
    %v2208 = vpack.c.bf16 %v2146, %v2145
    %v2209 = vpack.c.bf16 %v2148, %v2147
    %v2210 = vpack.c.bf16 %v2150, %v2149
    %v2211 = vpack.c.bf16 %v2152, %v2151
    %v2212 = vpack.c.bf16 %v2154, %v2153
    %v2213 = vpack.c.bf16 %v2156, %v2155
    %v2214 = vpack.c.bf16 %v2158, %v2157
    %v2215 = vpack.c.bf16 %v2160, %v2159
    %v2216 = vpack.c.bf16 %v2162, %v2161
    %v2217 = vpack.c.bf16 %v2164, %v2163
    %v2218 = vpack.c.bf16 %v2166, %v2165
    %v2219 = vpack.c.bf16 %v2168, %v2167
    %v2220 = vpack.c.bf16 %v2170, %v2169
    %v2221 = vpack.c.bf16 %v2172, %v2171
    %v2222 = vpack.c.bf16 %v2174, %v2173
    %v2223 = vpack.c.bf16 %v2176, %v2175
    %v2224 = vpack.c.bf16 %v2178, %v2177
    %v2225 = vpack.c.bf16 %v2180, %v2179
    %v2226 = vpack.c.bf16 %v2182, %v2181
    %v2227 = vpack.c.bf16 %v2184, %v2183
    %v2228 = vpack.c.bf16 %v2186, %v2185
    %v2229 = vpack.c.bf16 %v2188, %v2187
    %v2230 = vpack.c.bf16 %v2190, %v2189
    %v2231 = vpack.c.bf16 %v2192, %v2191
    %v2232 = vpack.c.bf16 %v2194, %v2193
    %v2233 = vpack.c.bf16 %v2196, %v2195
    %v2234 = vpack.c.bf16 %v2198, %v2197
    %v2235 = vpack.c.bf16 %v2200, %v2199
    %v2236 = vpack.c.bf16 %v2202, %v2201
    %v2237 = vpack.c.bf16 %v2204, %v2203
    %v2238 = vpack.c.bf16 %v2206, %v2205
    %v2271 = vunpack.c.l.b16 %v2207
    %v2272 = vunpack.c.h.b16 %v2207
    %v2273 = vunpack.c.l.b16 %v2208
    %v2274 = vunpack.c.h.b16 %v2208
    %v2275 = vunpack.c.l.b16 %v2209
    %v2276 = vunpack.c.h.b16 %v2209
    %v2277 = vunpack.c.l.b16 %v2210
    %v2278 = vunpack.c.h.b16 %v2210
    %v2279 = vunpack.c.l.b16 %v2211
    %v2280 = vunpack.c.h.b16 %v2211
    %v2281 = vunpack.c.l.b16 %v2212
    %v2282 = vunpack.c.h.b16 %v2212
    %v2283 = vunpack.c.l.b16 %v2213
    %v2284 = vunpack.c.h.b16 %v2213
    %v2285 = vunpack.c.l.b16 %v2214
    %v2286 = vunpack.c.h.b16 %v2214
    %v2287 = vunpack.c.l.b16 %v2215
    %v2288 = vunpack.c.h.b16 %v2215
    %v2289 = vunpack.c.l.b16 %v2216
    %v2290 = vunpack.c.h.b16 %v2216
    %v2291 = vunpack.c.l.b16 %v2217
    %v2292 = vunpack.c.h.b16 %v2217
    %v2293 = vunpack.c.l.b16 %v2218
    %v2294 = vunpack.c.h.b16 %v2218
    %v2295 = vunpack.c.l.b16 %v2219
    %v2296 = vunpack.c.h.b16 %v2219
    %v2297 = vunpack.c.l.b16 %v2220
    %v2298 = vunpack.c.h.b16 %v2220
    %v2299 = vunpack.c.l.b16 %v2221
    %v2300 = vunpack.c.h.b16 %v2221
    %v2301 = vunpack.c.l.b16 %v2222
    %v2302 = vunpack.c.h.b16 %v2222
    %v2303 = vunpack.c.l.b16 %v2223
    %v2304 = vunpack.c.h.b16 %v2223
    %v2305 = vunpack.c.l.b16 %v2224
    %v2306 = vunpack.c.h.b16 %v2224
    %v2307 = vunpack.c.l.b16 %v2225
    %v2308 = vunpack.c.h.b16 %v2225
    %v2309 = vunpack.c.l.b16 %v2226
    %v2310 = vunpack.c.h.b16 %v2226
    %v2311 = vunpack.c.l.b16 %v2227
    %v2312 = vunpack.c.h.b16 %v2227
    %v2313 = vunpack.c.l.b16 %v2228
    %v2314 = vunpack.c.h.b16 %v2228
    %v2315 = vunpack.c.l.b16 %v2229
    %v2316 = vunpack.c.h.b16 %v2229
    %v2317 = vunpack.c.l.b16 %v2230
    %v2318 = vunpack.c.h.b16 %v2230
    %v2319 = vunpack.c.l.b16 %v2231
    %v2320 = vunpack.c.h.b16 %v2231
    %v2321 = vunpack.c.l.b16 %v2232
    %v2322 = vunpack.c.h.b16 %v2232
    %v2323 = vunpack.c.l.b16 %v2233
    %v2324 = vunpack.c.h.b16 %v2233
    %v2325 = vunpack.c.l.b16 %v2234
    %v2326 = vunpack.c.h.b16 %v2234
    %v2327 = vunpack.c.l.b16 %v2235
    %v2328 = vunpack.c.h.b16 %v2235
    %v2329 = vunpack.c.l.b16 %v2236
    %v2330 = vunpack.c.h.b16 %v2236
    %v2331 = vunpack.c.l.b16 %v2237
    %v2332 = vunpack.c.h.b16 %v2237
    %v2333 = vunpack.c.l.b16 %v2238
    %v2334 = vunpack.c.h.b16 %v2238
    %v2335 = vpack.c.b16 %v2271, %v2271
    %v2336 = vpack.c.b16 %v2272, %v2272
    %v2337 = vpack.c.b16 %v2273, %v2273
    %v2338 = vpack.c.b16 %v2274, %v2274
    %v2339 = vpack.c.b16 %v2275, %v2275
    %v2340 = vpack.c.b16 %v2276, %v2276
    %v2341 = vpack.c.b16 %v2277, %v2277
    %v2342 = vpack.c.b16 %v2278, %v2278
    %v2343 = vpack.c.b16 %v2279, %v2279
    %v2344 = vpack.c.b16 %v2280, %v2280
    %v2345 = vpack.c.b16 %v2281, %v2281
    %v2346 = vpack.c.b16 %v2282, %v2282
    %v2347 = vpack.c.b16 %v2283, %v2283
    %v2348 = vpack.c.b16 %v2284, %v2284
    %v2349 = vpack.c.b16 %v2285, %v2285
    %v2350 = vpack.c.b16 %v2286, %v2286
    %v2351 = vpack.c.b16 %v2287, %v2287
    %v2352 = vpack.c.b16 %v2288, %v2288
    %v2353 = vpack.c.b16 %v2289, %v2289
    %v2354 = vpack.c.b16 %v2290, %v2290
    %v2355 = vpack.c.b16 %v2291, %v2291
    %v2356 = vpack.c.b16 %v2292, %v2292
    %v2357 = vpack.c.b16 %v2293, %v2293
    %v2358 = vpack.c.b16 %v2294, %v2294
    %v2359 = vpack.c.b16 %v2295, %v2295
    %v2360 = vpack.c.b16 %v2296, %v2296
    %v2361 = vpack.c.b16 %v2297, %v2297
    %v2362 = vpack.c.b16 %v2298, %v2298
    %v2363 = vpack.c.b16 %v2299, %v2299
    %v2364 = vpack.c.b16 %v2300, %v2300
    %v2365 = vpack.c.b16 %v2301, %v2301
    %v2366 = vpack.c.b16 %v2302, %v2302
    %v2367 = vpack.c.b16 %v2303, %v2303
    %v2368 = vpack.c.b16 %v2304, %v2304
    %v2369 = vpack.c.b16 %v2305, %v2305
    %v2370 = vpack.c.b16 %v2306, %v2306
    %v2371 = vpack.c.b16 %v2307, %v2307
    %v2372 = vpack.c.b16 %v2308, %v2308
    %v2373 = vpack.c.b16 %v2309, %v2309
    %v2374 = vpack.c.b16 %v2310, %v2310
    %v2375 = vpack.c.b16 %v2311, %v2311
    %v2376 = vpack.c.b16 %v2312, %v2312
    %v2377 = vpack.c.b16 %v2313, %v2313
    %v2378 = vpack.c.b16 %v2314, %v2314
    %v2379 = vpack.c.b16 %v2315, %v2315
    %v2380 = vpack.c.b16 %v2316, %v2316
    %v2381 = vpack.c.b16 %v2317, %v2317
    %v2382 = vpack.c.b16 %v2318, %v2318
    %v2383 = vpack.c.b16 %v2319, %v2319
    %v2384 = vpack.c.b16 %v2320, %v2320
    %v2385 = vpack.c.b16 %v2321, %v2321
    %v2386 = vpack.c.b16 %v2322, %v2322
    %v2387 = vpack.c.b16 %v2323, %v2323
    %v2388 = vpack.c.b16 %v2324, %v2324
    %v2389 = vpack.c.b16 %v2325, %v2325
    %v2390 = vpack.c.b16 %v2326, %v2326
    %v2391 = vpack.c.b16 %v2327, %v2327
    %v2392 = vpack.c.b16 %v2328, %v2328
    %v2393 = vpack.c.b16 %v2329, %v2329
    %v2394 = vpack.c.b16 %v2330, %v2330
    %v2395 = vpack.c.b16 %v2331, %v2331
    %v2396 = vpack.c.b16 %v2332, %v2332
    %v2397 = vpack.c.b16 %v2333, %v2333
    %v2398 = vpack.c.b16 %v2334, %v2334
    %2463 = vst [vmem:[%s3] sm:$0xf] %v2335
    %2464 = vst [vmem:[%s3 + $0x4] sm:$0xf] %v2336
    %2465 = vst [vmem:[%s3 + $0x8] sm:$0xf] %v2337
    %2466 = vst [vmem:[%s3 + $0xc] sm:$0xf] %v2338
    %2467 = vst [vmem:[%s3 + $0x10] sm:$0xf] %v2339
    %2468 = vst [vmem:[%s3 + $0x14] sm:$0xf] %v2340
    %2469 = vst [vmem:[%s3 + $0x18] sm:$0xf] %v2341
    %2470 = vst [vmem:[%s3 + $0x1c] sm:$0xf] %v2342
    %2471 = vst [vmem:[%s3 + $0x20] sm:$0xf] %v2343
    %2472 = vst [vmem:[%s3 + $0x24] sm:$0xf] %v2344
    %2473 = vst [vmem:[%s3 + $0x28] sm:$0xf] %v2345
    %2474 = vst [vmem:[%s3 + $0x2c] sm:$0xf] %v2346
    %2475 = vst [vmem:[%s3 + $0x30] sm:$0xf] %v2347
    %2476 = vst [vmem:[%s3 + $0x34] sm:$0xf] %v2348
    %2477 = vst [vmem:[%s3 + $0x38] sm:$0xf] %v2349
    %2478 = vst [vmem:[%s3 + $0x3c] sm:$0xf] %v2350
    %2479 = vst [vmem:[%s3 + $0x40] sm:$0xf] %v2351
    %2480 = vst [vmem:[%s3 + $0x44] sm:$0xf] %v2352
    %2481 = vst [vmem:[%s3 + $0x48] sm:$0xf] %v2353
    %2482 = vst [vmem:[%s3 + $0x4c] sm:$0xf] %v2354
    %2483 = vst [vmem:[%s3 + $0x50] sm:$0xf] %v2355
    %2484 = vst [vmem:[%s3 + $0x54] sm:$0xf] %v2356
    %2485 = vst [vmem:[%s3 + $0x58] sm:$0xf] %v2357
    %2486 = vst [vmem:[%s3 + $0x5c] sm:$0xf] %v2358
    %2487 = vst [vmem:[%s3 + $0x60] sm:$0xf] %v2359
    %2488 = vst [vmem:[%s3 + $0x64] sm:$0xf] %v2360
    %2489 = vst [vmem:[%s3 + $0x68] sm:$0xf] %v2361
    %2490 = vst [vmem:[%s3 + $0x6c] sm:$0xf] %v2362
    %2491 = vst [vmem:[%s3 + $0x70] sm:$0xf] %v2363
    %2492 = vst [vmem:[%s3 + $0x74] sm:$0xf] %v2364
    %2493 = vst [vmem:[%s3 + $0x78] sm:$0xf] %v2365
    %2494 = vst [vmem:[%s3 + $0x7c] sm:$0xf] %v2366
    %2495 = vst [vmem:[%s3 + $0x80] sm:$0xf] %v2367
    %2496 = vst [vmem:[%s3 + $0x84] sm:$0xf] %v2368
    %2497 = vst [vmem:[%s3 + $0x88] sm:$0xf] %v2369
    %2498 = vst [vmem:[%s3 + $0x8c] sm:$0xf] %v2370
    %2499 = vst [vmem:[%s3 + $0x90] sm:$0xf] %v2371
    %2500 = vst [vmem:[%s3 + $0x94] sm:$0xf] %v2372
    %2501 = vst [vmem:[%s3 + $0x98] sm:$0xf] %v2373
    %2502 = vst [vmem:[%s3 + $0x9c] sm:$0xf] %v2374
    %2503 = vst [vmem:[%s3 + $0xa0] sm:$0xf] %v2375
    %2504 = vst [vmem:[%s3 + $0xa4] sm:$0xf] %v2376
    %2505 = vst [vmem:[%s3 + $0xa8] sm:$0xf] %v2377
    %2506 = vst [vmem:[%s3 + $0xac] sm:$0xf] %v2378
    %2507 = vst [vmem:[%s3 + $0xb0] sm:$0xf] %v2379
    %2508 = vst [vmem:[%s3 + $0xb4] sm:$0xf] %v2380
    %2509 = vst [vmem:[%s3 + $0xb8] sm:$0xf] %v2381
    %2510 = vst [vmem:[%s3 + $0xbc] sm:$0xf] %v2382
    %2511 = vst [vmem:[%s3 + $0xc0] sm:$0xf] %v2383
    %2512 = vst [vmem:[%s3 + $0xc4] sm:$0xf] %v2384
    %2513 = vst [vmem:[%s3 + $0xc8] sm:$0xf] %v2385
    %2514 = vst [vmem:[%s3 + $0xcc] sm:$0xf] %v2386
    %2515 = vst [vmem:[%s3 + $0xd0] sm:$0xf] %v2387
    %2516 = vst [vmem:[%s3 + $0xd4] sm:$0xf] %v2388
    %2517 = vst [vmem:[%s3 + $0xd8] sm:$0xf] %v2389
    %2518 = vst [vmem:[%s3 + $0xdc] sm:$0xf] %v2390
    %2519 = vst [vmem:[%s3 + $0xe0] sm:$0xf] %v2391
    %2520 = vst [vmem:[%s3 + $0xe4] sm:$0xf] %v2392
    %2521 = vst [vmem:[%s3 + $0xe8] sm:$0xf] %v2393
    %2522 = vst [vmem:[%s3 + $0xec] sm:$0xf] %v2394
    %2523 = vst [vmem:[%s3 + $0xf0] sm:$0xf] %v2395
    %2524 = vst [vmem:[%s3 + $0xf4] sm:$0xf] %v2396
    %2525 = vst [vmem:[%s3 + $0xf8] sm:$0xf] %v2397
    %2526 = vst [vmem:[%s3 + $0xfc] sm:$0xf] %v2398
  $region21: #{rating_prediction_gnn_forward.4} parent=0 // pred_fallthru
    _
  // Predicated region
  $region22: #{rating_prediction_gnn_forward.4} parent=0 // pred_check
    _
  $region23: #{rating_prediction_gnn_forward.4} parent=0 // pred_check_branch
    %2528 = sbr.rel (0) target = $region25
  $region24: #{rating_prediction_gnn_forward.4} parent=0 // pred_region
    _
  $region25: #{rating_prediction_gnn_forward.4} parent=0 // pred_fallthru
    _
  // Predicated region
  $region26: #{rating_prediction_gnn_forward.4} parent=0 // pred_check
    _
  $region27: #{rating_prediction_gnn_forward.4} parent=0 // pred_check_branch
    %2530 = sbr.rel (0) target = $region29
  $region28: #{rating_prediction_gnn_forward.4} parent=0 // pred_region
    _
  $region29: #{rating_prediction_gnn_forward.4} parent=0 // pred_fallthru
    _
  // Predicated region
  $region30: #{rating_prediction_gnn_forward.4} parent=0 // pred_check
    _
  $region31: #{rating_prediction_gnn_forward.4} parent=0 // pred_check_branch
    %2532 = sbr.rel (0) target = $region33
  $region32: #{rating_prediction_gnn_forward.4} parent=0 // pred_region
    _
  $region33: #{rating_prediction_gnn_forward.4} parent=0 // pred_fallthru
    _
  // Predicated region
  $region34: #{rating_prediction_gnn_forward.4} parent=0 // pred_check
    _
  $region35: #{rating_prediction_gnn_forward.4} parent=0 // pred_check_branch
    %2534 = sbr.rel (0) target = $region37
  $region36: #{rating_prediction_gnn_forward.4} parent=0 // pred_region
    _
  $region37: #{rating_prediction_gnn_forward.4} parent=0 // pred_fallthru
    _

</llo_original>
